<compile_context>
chip_gen: v5e
topology: v5e:2x2
jax: 0.10.0
libtpu: 0.0.40
codegen_flags: <defaults>
</compile_context>

<pallas_src>
import math

import numpy as np
import jax
import jax.numpy as jnp
from jax.experimental import pallas as pl
from jax.experimental.pallas import tpu as pltpu

# ---------------- configuration (small toy sizes) ----------------
B = 2          # batch
S = 8          # seq_len (time points)
D = 4          # ndims / channels
NK = 32        # nkernel
NHEADS = 4
DH = NK // NHEADS
NLAYERS = 2
NEG_INF = -1.0e10     # torch masked_fill(-10e9)
NEG_PAD = -2.0e10     # additive bias for length-padding key columns
SCALE = 1.0 / math.sqrt(NK)

# ---------------- packed weight buffer layout ----------------
NMAT_PER_LAYER = 19
NMAT = NMAT_PER_LAYER * NLAYERS
VOFF = NMAT * NK                 # start of the "vector" (bias / small) section
VROWS_FIXED = 24
VROWS_LAYER = 16
RW = VOFF + VROWS_FIXED + VROWS_LAYER * NLAYERS

# fixed vector rows (relative to VOFF)
V_WE0, V_WE1, V_BE, V_WT, V_BT = 0, 1, 2, 3, 4
V_WOUT_U, V_WOUT_T, V_WOUT_C, V_BOUT = 5, 6, 7, 8
V_HEADMASK = 9                   # NHEADS rows of 0/1 head-selection masks
V_C0 = 16                        # D rows: relu(wc + bc)

# per-layer bias block rows (relative to block start)
LB_CT_BQ, LB_CT_BK, LB_CT_BV, LB_CT_BO = 0, 1, 2, 3
LB_TC_BQ, LB_TC_BK, LB_TC_BV, LB_TC_BO = 4, 5, 6, 7
LB_EN_B = 8
LB_CA_BQ, LB_CA_BK, LB_CA_BV, LB_CA_BO = 9, 10, 11, 12

# per-layer matrix slots (NK x NK each)
M_CT_WQ, M_CT_WKT, M_CT_WKU, M_CT_WVT, M_CT_WVU, M_CT_WO = 0, 1, 2, 3, 4, 5
M_TC_WQ, M_TC_WKC, M_TC_WKU, M_TC_WVC, M_TC_WVU, M_TC_WO = 6, 7, 8, 9, 10, 11
M_EN_WU, M_EN_WT, M_EN_WC = 12, 13, 14
M_CA_WQ, M_CA_WK, M_CA_WV, M_CA_WO = 15, 16, 17, 18


# ---------------- packed data buffer layout ----------------
def data_layout(Lp):
    Sp = ((S + 7) // 8) * 8
    Dp = ((D + 7) // 8) * 8
    off = dict(uval=0, uind=Lp, mk=2 * Lp, gt=3 * Lp, gc=4 * Lp,
               tq=5 * Lp, tbias=5 * Lp + Sp, cbias=5 * Lp + 2 * Sp)
    rd = 5 * Lp + 2 * Sp + Dp
    return off, rd


# ---------------- Pallas kernel ----------------
def make_kernel(Lp):
    off, rd = data_layout(Lp)
    F32 = jnp.float32

    def kernel(d_ref, w_ref, o_ref):
        def dslab(name, nrow, ncol):
            r = off[name]
            return d_ref[0, r:r + nrow, 0:ncol]

        def wmat(i):
            return w_ref[i * NK:(i + 1) * NK, :]

        def wrow(r):
            return w_ref[r:r + 1, :]

        def dot(a, b):
            return jnp.dot(a, b, preferred_element_type=F32)

        def dot_t(a, b):   # contract last dims: A @ B^T
            return jax.lax.dot_general(a, b, (((1,), (1,)), ((), ())),
                                       preferred_element_type=F32)

        uval = dslab('uval', Lp, 1)
        uind = dslab('uind', Lp, 1)
        mk = dslab('mk', Lp, 1)
        GT = dslab('gt', Lp, S)          # one-hot gather matrices
        GC = dslab('gc', Lp, D)
        Tq = dslab('tq', S, 1)
        Tbias = dslab('tbias', S, Lp)    # additive attention bias (0/-1e10/-2e10)
        Cbias = dslab('cbias', D, Lp)

        # --- init linears (tiny fan-in expressed as broadcasts) ---
        U = jax.nn.relu(uval * wrow(VOFF + V_WE0) + uind * wrow(VOFF + V_WE1)
                        + wrow(VOFF + V_BE)) * mk                  # (Lp, NK)
        T = jnp.sin(Tq * wrow(VOFF + V_WT) + wrow(VOFF + V_BT))    # (S, NK)
        C = w_ref[VOFF + V_C0:VOFF + V_C0 + D, :]                  # relu(wc+bc)

        hmask = [wrow(VOFF + V_HEADMASK + h) for h in range(NHEADS)]

        def mab(Qp, Kp, Vp, Wo, bo, bias):
            # GraFITi MAB on pre-projected Q/K/V; heads via 0/1 lane masks,
            # so no width-8 lane slices and no lane-axis concat.
            out = Qp
            for h in range(NHEADS):
                hm = hmask[h]
                att = dot_t(Qp * hm, Kp) * SCALE
                if bias is not None:
                    att = att + bias
                m = jnp.max(att, axis=-1, keepdims=True)
                e = jnp.exp(att - m)
                A = e / jnp.sum(e, axis=-1, keepdims=True)
                out = out + dot(A, Vp * hm)
            return out + jax.nn.relu(dot(out, Wo) + bo)

        for i in range(NLAYERS):
            mb = i * NMAT_PER_LAYER
            bb = VOFF + VROWS_FIXED + i * VROWS_LAYER

            k_t = dot(GT, T)   # gather(T_, T_inds_) as one-hot matmul (Lp, NK)
            k_c = dot(GC, C)   # gather(C_, C_inds_)

            # channel-time attention: Q = C, K = [k_t, U] (split weights)
            Qp = dot(C, wmat(mb + M_CT_WQ)) + wrow(bb + LB_CT_BQ)
            Kp = (dot(k_t, wmat(mb + M_CT_WKT)) + dot(U, wmat(mb + M_CT_WKU))
                  + wrow(bb + LB_CT_BK))
            Vp = (dot(k_t, wmat(mb + M_CT_WVT)) + dot(U, wmat(mb + M_CT_WVU))
                  + wrow(bb + LB_CT_BV))
            Cn = mab(Qp, Kp, Vp, wmat(mb + M_CT_WO), wrow(bb + LB_CT_BO), Cbias)

            # time-channel attention: Q = T, K = [k_c, U]
            Qp = dot(T, wmat(mb + M_TC_WQ)) + wrow(bb + LB_TC_BQ)
            Kp = (dot(k_c, wmat(mb + M_TC_WKC)) + dot(U, wmat(mb + M_TC_WKU))
                  + wrow(bb + LB_TC_BK))
            Vp = (dot(k_c, wmat(mb + M_TC_WVC)) + dot(U, wmat(mb + M_TC_WVU))
                  + wrow(bb + LB_TC_BV))
            Tn = mab(Qp, Kp, Vp, wmat(mb + M_TC_WO), wrow(bb + LB_TC_BO), Tbias)

            # edge update (3-way split of edge_nn weight)
            U = jax.nn.relu(U + dot(U, wmat(mb + M_EN_WU))
                            + dot(k_t, wmat(mb + M_EN_WT))
                            + dot(k_c, wmat(mb + M_EN_WC))
                            + wrow(bb + LB_EN_B)) * mk

            # channel self-attention (no mask)
            Qp = dot(Cn, wmat(mb + M_CA_WQ)) + wrow(bb + LB_CA_BQ)
            Kp = dot(Cn, wmat(mb + M_CA_WK)) + wrow(bb + LB_CA_BK)
            Vp = dot(Cn, wmat(mb + M_CA_WV)) + wrow(bb + LB_CA_BV)
            C = mab(Qp, Kp, Vp, wmat(mb + M_CA_WO), wrow(bb + LB_CA_BO), None)
            T = Tn

        k_t = dot(GT, T)
        k_c = dot(GC, C)
        # lane-dense (1, Lp) output row: output linear split three ways
        out = (dot_t(wrow(VOFF + V_WOUT_U), U)
               + dot_t(wrow(VOFF + V_WOUT_T), k_t)
               + dot_t(wrow(VOFF + V_WOUT_C), k_c)
               + w_ref[VOFF + V_BOUT:VOFF + V_BOUT + 1, 0:1])
        o_ref[0] = out

    return kernel, rd


def encoder_pallas(data_packed, wbuf, Lp):
    kernel, rd = make_kernel(Lp)
    Bn = data_packed.shape[0]
    assert data_packed.shape == (Bn, rd, 128)
    assert wbuf.shape == (RW, NK)
    return pl.pallas_call(
        kernel,
        out_shape=jax.ShapeDtypeStruct((Bn, 1, Lp), jnp.float32),
        grid_spec=pltpu.PrefetchScalarGridSpec(
            num_scalar_prefetch=0,
            grid=(Bn,),
            in_specs=[pl.BlockSpec((1, rd, 128), lambda b: (b, 0, 0)),
                      pl.BlockSpec((RW, NK), lambda b: (0, 0))],
            out_specs=pl.BlockSpec((1, 1, Lp), lambda b: (b, 0, 0)),
        ),
        compiler_params=pltpu.CompilerParams(
            dimension_semantics=("parallel",)),
    )(data_packed, wbuf)


# ---------------- host-side preprocessing & packing (glue) ----------------
def preprocess(context_x, value, mask, target_value, target_mask):
    # TODO(synk): masked-select + pad to data-dependent obs_len has dynamic
    # shapes; done on host (numpy) rather than inside the fixed-shape kernel.
    cx = np.asarray(context_x, np.float32)
    val = np.asarray(value, np.float32)
    mk = np.asarray(mask, np.float32)
    tv = np.asarray(target_value, np.float32)
    tm = np.asarray(target_mask, np.float32)
    Bn, Sn = cx.shape
    Dn = val.shape[-1]
    full_len = Sn * Dn
    T_inds = np.broadcast_to(np.arange(Sn)[None, :, None], (Bn, Sn, Dn))
    C_inds = np.broadcast_to(np.arange(Dn)[None, None, :], (Bn, Sn, Dn))
    mkb = mk.astype(bool)

    def sel_pad(arr):
        rows = []
        for b in range(Bn):
            v = arr[b][mkb[b]].astype(np.float32)
            out = np.zeros(full_len, np.float32)
            out[:v.shape[0]] = v
            rows.append(out)
        return np.stack(rows)

    T_inds_ = sel_pad(T_inds)
    C_inds_ = sel_pad(C_inds)
    U_flat = sel_pad(val)
    tU_ = sel_pad(tv)
    tM_ = sel_pad(tm)
    mk_ = sel_pad(mk)

    obs_len = int(mk_.sum(-1).max())
    Lp = ((obs_len + 7) // 8) * 8      # sublane-aligned event length
    off, rd = data_layout(Lp)

    cut = lambda a: a[:, :obs_len]
    mk_o = cut(mk_)
    Ti_o = cut(T_inds_).astype(np.int32)
    Ci_o = cut(C_inds_).astype(np.int32)
    Uf_o = cut(U_flat)
    tM_o = cut(tM_)
    tU_o = cut(tU_) * tM_o
    Uind_o = 1.0 - mk_o + tM_o

    gt = (Ti_o[:, :, None] == np.arange(Sn)[None, None, :]).astype(np.float32)
    gc = (Ci_o[:, :, None] == np.arange(Dn)[None, None, :]).astype(np.float32)
    Cmask01 = ((np.arange(Dn)[None, :, None] == Ci_o[:, None, :]).astype(np.float32)
               * mk_o[:, None, :])                       # (B, D, L0)
    Tmask01 = ((Ti_o[:, None, :] == np.arange(Sn)[None, :, None]).astype(np.float32)
               * mk_o[:, None, :])                       # (B, S, L0)

    data = np.zeros((Bn, rd, 128), np.float32)
    L0 = obs_len
    data[:, off['uval']:off['uval'] + L0, 0] = Uf_o
    data[:, off['uind']:off['uind'] + L0, 0] = Uind_o
    data[:, off['mk']:off['mk'] + L0, 0] = mk_o
    data[:, off['gt']:off['gt'] + L0, :Sn] = gt
    data[:, off['gc']:off['gc'] + L0, :Dn] = gc
    data[:, off['tq']:off['tq'] + Sn, 0] = cx
    tb = np.full((Bn, Sn, Lp), NEG_PAD, np.float32)
    tb[:, :, :L0] = np.where(Tmask01 > 0, 0.0, NEG_INF).astype(np.float32)
    cb = np.full((Bn, Dn, Lp), NEG_PAD, np.float32)
    cb[:, :, :L0] = np.where(Cmask01 > 0, 0.0, NEG_INF).astype(np.float32)
    data[:, off['tbias']:off['tbias'] + Sn, :Lp] = tb
    data[:, off['cbias']:off['cbias'] + Dn, :Lp] = cb

    ref_inputs = dict(U0=np.stack([Uf_o, Uind_o], axis=-1), mk=mk_o,
                      Ti=Ti_o, Ci=Ci_o, Tq=cx[:, :, None],
                      Cmask=Cmask01, Tmask=Tmask01)
    return data, ref_inputs, tU_o, tM_o, obs_len, Lp


# ---------------- parameters (PyTorch Linear-style init) ----------------
def _linear(key, fan_in, fan_out):
    k1, k2 = jax.random.split(key)
    bound = 1.0 / math.sqrt(fan_in)
    W = jax.random.uniform(k1, (fan_in, fan_out), jnp.float32, -bound, bound)
    b = jax.random.uniform(k2, (fan_out,), jnp.float32, -bound, bound)
    return np.asarray(W), np.asarray(b)


def init_params(key):
    keys = jax.random.split(key, 4 + NLAYERS)
    p = {'edge': _linear(keys[0], 2, NK),
         'chan': _linear(keys[1], D, NK),
         'time': _linear(keys[2], 1, NK),
         'out': _linear(keys[3], 3 * NK, 1),
         'layers': []}
    for i in range(NLAYERS):
        ks = jax.random.split(keys[4 + i], 13)
        p['layers'].append({
            'ct': {'q': _linear(ks[0], NK, NK), 'k': _linear(ks[1], 2 * NK, NK),
                   'v': _linear(ks[2], 2 * NK, NK), 'o': _linear(ks[3], NK, NK)},
            'tc': {'q': _linear(ks[4], NK, NK), 'k': _linear(ks[5], 2 * NK, NK),
                   'v': _linear(ks[6], 2 * NK, NK), 'o': _linear(ks[7], NK, NK)},
            'ca': {'q': _linear(ks[8], NK, NK), 'k': _linear(ks[9], NK, NK),
                   'v': _linear(ks[10], NK, NK), 'o': _linear(ks[11], NK, NK)},
            'en': _linear(ks[12], 3 * NK, NK)})
    return p


def pack_weights(p):
    buf = np.zeros((RW, NK), np.float32)
    mats = []
    for lp in p['layers']:
        ct, tc, ca = lp['ct'], lp['tc'], lp['ca']
        enw, _ = lp['en']
        mats += [ct['q'][0], ct['k'][0][:NK], ct['k'][0][NK:],
                 ct['v'][0][:NK], ct['v'][0][NK:], ct['o'][0]]
        mats += [tc['q'][0], tc['k'][0][:NK], tc['k'][0][NK:],
                 tc['v'][0][:NK], tc['v'][0][NK:], tc['o'][0]]
        mats += [enw[:NK], enw[NK:2 * NK], enw[2 * NK:]]
        mats += [ca['q'][0], ca['k'][0], ca['v'][0], ca['o'][0]]
    assert len(mats) == NMAT
    for m, W in enumerate(mats):
        buf[m * NK:(m + 1) * NK, :] = W

    ew, eb = p['edge']
    cw, cbv = p['chan']
    tw, tbv = p['time']
    ow, ob = p['out']
    v = VOFF
    buf[v + V_WE0] = ew[0]
    buf[v + V_WE1] = ew[1]
    buf[v + V_BE] = eb
    buf[v + V_WT] = tw[0]
    buf[v + V_BT] = tbv
    wout = ow[:, 0]
    buf[v + V_WOUT_U] = wout[:NK]
    buf[v + V_WOUT_T] = wout[NK:2 * NK]
    buf[v + V_WOUT_C] = wout[2 * NK:]
    buf[v + V_BOUT, :] = float(ob[0])
    for h in range(NHEADS):
        buf[v + V_HEADMASK + h, h * DH:(h + 1) * DH] = 1.0
    buf[v + V_C0:v + V_C0 + D] = np.maximum(cw + cbv[None, :], 0.0)  # relu(wc+bc)

    for i, lp in enumerate(p['layers']):
        r = VOFF + VROWS_FIXED + i * VROWS_LAYER
        ct, tc, ca = lp['ct'], lp['tc'], lp['ca']
        buf[r + LB_CT_BQ] = ct['q'][1]; buf[r + LB_CT_BK] = ct['k'][1]
        buf[r + LB_CT_BV] = ct['v'][1]; buf[r + LB_CT_BO] = ct['o'][1]
        buf[r + LB_TC_BQ] = tc['q'][1]; buf[r + LB_TC_BK] = tc['k'][1]
        buf[r + LB_TC_BV] = tc['v'][1]; buf[r + LB_TC_BO] = tc['o'][1]
        buf[r + LB_EN_B] = lp['en'][1]
        buf[r + LB_CA_BQ] = ca['q'][1]; buf[r + LB_CA_BK] = ca['k'][1]
        buf[r + LB_CA_BV] = ca['v'][1]; buf[r + LB_CA_BO] = ca['o'][1]
    return jnp.asarray(buf)


# ---------------- pure-JAX reference (mirrors the torch structure) --------
def _ref_mab(Q, K, wq, bq, wk, bk, wv, bv, wo, bo, mask):
    Qp = Q @ wq + bq
    Kp = K @ wk + bk
    Vp = K @ wv + bv
    heads = []
    for h in range(NHEADS):
        sl = slice(h * DH, (h + 1) * DH)
        att = (Qp[:, sl] @ Kp[:, sl].T) * SCALE
        if mask is not None:
            att = jnp.where(mask == 0.0, NEG_INF, att)
        A = jax.nn.softmax(att, axis=-1)
        heads.append(Qp[:, sl] + A @ Vp[:, sl])
    O = jnp.concatenate(heads, axis=-1)
    return O + jax.nn.relu(O @ wo + bo)


def encoder_reference(ref_inputs, p):
    ew, eb = p['edge']
    cw, cbv = p['chan']
    tw, tbv = p['time']
    ow, ob = p['out']
    outs = []
    Bn = ref_inputs['mk'].shape[0]
    for b in range(Bn):
        U0 = jnp.asarray(ref_inputs['U0'][b])
        mk = jnp.asarray(ref_inputs['mk'][b])
        Ti = jnp.asarray(ref_inputs['Ti'][b])
        Ci = jnp.asarray(ref_inputs['Ci'][b])
        Tq = jnp.asarray(ref_inputs['Tq'][b])
        Cm = jnp.asarray(ref_inputs['Cmask'][b])
        Tm = jnp.asarray(ref_inputs['Tmask'][b])
        U = jax.nn.relu(U0 @ ew + eb) * mk[:, None]
        T = jnp.sin(Tq @ tw + tbv)
        C = jax.nn.relu(jnp.eye(D, dtype=jnp.float32) @ cw + cbv)
        for lp in p['layers']:
            ct, tc, ca = lp['ct'], lp['tc'], lp['ca']
            enw, enb = lp['en']
            k_t = T[Ti]
            k_c = C[Ci]
            Cn = _ref_mab(C, jnp.concatenate([k_t, U], -1),
                          ct['q'][0], ct['q'][1], ct['k'][0], ct['k'][1],
                          ct['v'][0], ct['v'][1], ct['o'][0], ct['o'][1], Cm)
            Tn = _ref_mab(T, jnp.concatenate([k_c, U], -1),
                          tc['q'][0], tc['q'][1], tc['k'][0], tc['k'][1],
                          tc['v'][0], tc['v'][1], tc['o'][0], tc['o'][1], Tm)
            U = jax.nn.relu(U + jnp.concatenate([U, k_t, k_c], -1) @ enw
                            + enb) * mk[:, None]
            C = _ref_mab(Cn, Cn,
                         ca['q'][0], ca['q'][1], ca['k'][0], ca['k'][1],
                         ca['v'][0], ca['v'][1], ca['o'][0], ca['o'][1], None)
            T = Tn
        k_t = T[Ti]
        k_c = C[Ci]
        outs.append(jnp.concatenate([U, k_t, k_c], -1) @ ow + ob)
    return jnp.stack(outs)


# ---------------- main ----------------
if __name__ == "__main__":
    key = jax.random.PRNGKey(0)
    kx, kv, km, ktv, ktm, kp = jax.random.split(key, 6)
    context_x = jnp.sort(jax.random.uniform(kx, (B, S), jnp.float32), axis=-1)
    value = jax.random.normal(kv, (B, S, D), jnp.float32)
    mask = (jax.random.uniform(km, (B, S, D)) < 0.5).astype(jnp.float32)
    mask = mask.at[:, 0, 0].set(1.0)   # guarantee at least one observation
    target_value = jax.random.normal(ktv, (B, S, D), jnp.float32)
    target_mask = (jax.random.uniform(ktm, (B, S, D)) < 0.3).astype(jnp.float32)

    data_packed, ref_inputs, target_U_, target_mask_, obs_len, Lp = preprocess(
        context_x, value, mask, target_value, target_mask)
    params = init_params(kp)
    wbuf = pack_weights(params)

    out_rows = encoder_pallas(jnp.asarray(data_packed), wbuf, Lp)   # (B, 1, Lp)
    out_rows = jax.block_until_ready(out_rows)

    # module convention: forward returns (output (B,obs_len,1), target_U_, target_mask_)
    output = np.asarray(out_rows)[:, 0, :obs_len, None]
    result = (output, target_U_, target_mask_)

    ref = np.asarray(encoder_reference(ref_inputs, params))
    assert result[0].shape == (B, obs_len, 1)
    assert result[1].shape == (B, obs_len) and result[2].shape == (B, obs_len)
    assert np.allclose(result[0], ref, rtol=5e-3, atol=5e-3), \
        "Pallas kernel output does not match JAX reference"
    print("KERNEL_OK")
</pallas_src>

<mosaic_0001>
module attributes {stable_mosaic.version = 11 : i64} {
  func.func @kernel(%arg0: i32, %arg1: memref<1x144x128xf32, #tpu.memory_space<vmem>>, %arg2: memref<1272x32xf32, #tpu.memory_space<vmem>>, %arg3: memref<1x1x24xf32, #tpu.memory_space<vmem>>) attributes {dimension_semantics = [#tpu.dimension_semantics<parallel>], iteration_bounds = array<i64: 2>, scalar_prefetch = 0 : i64, scratch_operands = 0 : i64, tpu.core_type = #tpu.core_type<tc>, window_params = [{transform_indices = @transform_0, window_bounds = array<i64: 1, 144, 128>}, {pipeline_mode = #tpu.pipeline_mode<synchronous>, transform_indices = @transform_1, window_bounds = array<i64: 1272, 32>}, {transform_indices = @transform_2, window_bounds = array<i64: 1, 1, 24>}]} {
    %c0 = arith.constant 0 : index
    %c0_0 = arith.constant 0 : index
    %c0_1 = arith.constant 0 : index
    %0 = vector.load %arg1[%c0, %c0_0, %c0_1] : memref<1x144x128xf32, #tpu.memory_space<vmem>>, vector<1x24x1xf32>
    %1 = vector.shape_cast %0 : vector<1x24x1xf32> to vector<24x1xf32>
    %c0_2 = arith.constant 0 : index
    %c24 = arith.constant 24 : index
    %c0_3 = arith.constant 0 : index
    %2 = vector.load %arg1[%c0_2, %c24, %c0_3] : memref<1x144x128xf32, #tpu.memory_space<vmem>>, vector<1x24x1xf32>
    %3 = vector.shape_cast %2 : vector<1x24x1xf32> to vector<24x1xf32>
    %c0_4 = arith.constant 0 : index
    %c48 = arith.constant 48 : index
    %c0_5 = arith.constant 0 : index
    %4 = vector.load %arg1[%c0_4, %c48, %c0_5] : memref<1x144x128xf32, #tpu.memory_space<vmem>>, vector<1x24x1xf32>
    %5 = vector.shape_cast %4 : vector<1x24x1xf32> to vector<24x1xf32>
    %c0_6 = arith.constant 0 : index
    %c72 = arith.constant 72 : index
    %c0_7 = arith.constant 0 : index
    %6 = vector.load %arg1[%c0_6, %c72, %c0_7] : memref<1x144x128xf32, #tpu.memory_space<vmem>>, vector<1x24x8xf32>
    %7 = vector.shape_cast %6 : vector<1x24x8xf32> to vector<24x8xf32>
    %c0_8 = arith.constant 0 : index
    %c96 = arith.constant 96 : index
    %c0_9 = arith.constant 0 : index
    %8 = vector.load %arg1[%c0_8, %c96, %c0_9] : memref<1x144x128xf32, #tpu.memory_space<vmem>>, vector<1x24x4xf32>
    %9 = vector.shape_cast %8 : vector<1x24x4xf32> to vector<24x4xf32>
    %c0_10 = arith.constant 0 : index
    %c120 = arith.constant 120 : index
    %c0_11 = arith.constant 0 : index
    %10 = vector.load %arg1[%c0_10, %c120, %c0_11] : memref<1x144x128xf32, #tpu.memory_space<vmem>>, vector<1x8x1xf32>
    %11 = vector.shape_cast %10 : vector<1x8x1xf32> to vector<8x1xf32>
    %c0_12 = arith.constant 0 : index
    %c128 = arith.constant 128 : index
    %c0_13 = arith.constant 0 : index
    %12 = vector.load %arg1[%c0_12, %c128, %c0_13] : memref<1x144x128xf32, #tpu.memory_space<vmem>>, vector<1x8x24xf32>
    %13 = vector.shape_cast %12 : vector<1x8x24xf32> to vector<8x24xf32>
    %c0_14 = arith.constant 0 : index
    %c136 = arith.constant 136 : index
    %c0_15 = arith.constant 0 : index
    %14 = vector.load %arg1[%c0_14, %c136, %c0_15] : memref<1x144x128xf32, #tpu.memory_space<vmem>>, vector<1x4x24xf32>
    %15 = vector.shape_cast %14 : vector<1x4x24xf32> to vector<4x24xf32>
    %c1216 = arith.constant 1216 : index
    %c0_16 = arith.constant 0 : index
    %16 = vector.load %arg2[%c1216, %c0_16] : memref<1272x32xf32, #tpu.memory_space<vmem>>, vector<1x32xf32>
    %17 = vector.broadcast %1 : vector<24x1xf32> to vector<24x32xf32>
    %18 = vector.broadcast %16 : vector<1x32xf32> to vector<24x32xf32>
    %19 = arith.mulf %17, %18 : vector<24x32xf32>
    %c1217 = arith.constant 1217 : index
    %c0_17 = arith.constant 0 : index
    %20 = vector.load %arg2[%c1217, %c0_17] : memref<1272x32xf32, #tpu.memory_space<vmem>>, vector<1x32xf32>
    %21 = vector.broadcast %3 : vector<24x1xf32> to vector<24x32xf32>
    %22 = vector.broadcast %20 : vector<1x32xf32> to vector<24x32xf32>
    %23 = arith.mulf %21, %22 : vector<24x32xf32>
    %24 = arith.addf %19, %23 : vector<24x32xf32>
    %c1218 = arith.constant 1218 : index
    %c0_18 = arith.constant 0 : index
    %25 = vector.load %arg2[%c1218, %c0_18] : memref<1272x32xf32, #tpu.memory_space<vmem>>, vector<1x32xf32>
    %26 = vector.broadcast %25 : vector<1x32xf32> to vector<24x32xf32>
    %27 = arith.addf %24, %26 : vector<24x32xf32>
    %cst = arith.constant 0.000000e+00 : f32
    %28 = vector.broadcast %cst : f32 to vector<24x32xf32>
    %29 = arith.maximumf %27, %28 : vector<24x32xf32>
    %30 = vector.broadcast %5 : vector<24x1xf32> to vector<24x32xf32>
    %31 = arith.mulf %29, %30 : vector<24x32xf32>
    %c1219 = arith.constant 1219 : index
    %c0_19 = arith.constant 0 : index
    %32 = vector.load %arg2[%c1219, %c0_19] : memref<1272x32xf32, #tpu.memory_space<vmem>>, vector<1x32xf32>
    %33 = vector.broadcast %11 : vector<8x1xf32> to vector<8x32xf32>
    %34 = vector.broadcast %32 : vector<1x32xf32> to vector<8x32xf32>
    %35 = arith.mulf %33, %34 : vector<8x32xf32>
    %c1220 = arith.constant 1220 : index
    %c0_20 = arith.constant 0 : index
    %36 = vector.load %arg2[%c1220, %c0_20] : memref<1272x32xf32, #tpu.memory_space<vmem>>, vector<1x32xf32>
    %37 = vector.broadcast %36 : vector<1x32xf32> to vector<8x32xf32>
    %38 = arith.addf %35, %37 : vector<8x32xf32>
    %39 = math.sin %38 : vector<8x32xf32>
    %c1232 = arith.constant 1232 : index
    %c0_21 = arith.constant 0 : index
    %40 = vector.load %arg2[%c1232, %c0_21] : memref<1272x32xf32, #tpu.memory_space<vmem>>, vector<4x32xf32>
    %c1225 = arith.constant 1225 : index
    %c0_22 = arith.constant 0 : index
    %41 = vector.load %arg2[%c1225, %c0_22] : memref<1272x32xf32, #tpu.memory_space<vmem>>, vector<1x32xf32>
    %c1226 = arith.constant 1226 : index
    %c0_23 = arith.constant 0 : index
    %42 = vector.load %arg2[%c1226, %c0_23] : memref<1272x32xf32, #tpu.memory_space<vmem>>, vector<1x32xf32>
    %c1227 = arith.constant 1227 : index
    %c0_24 = arith.constant 0 : index
    %43 = vector.load %arg2[%c1227, %c0_24] : memref<1272x32xf32, #tpu.memory_space<vmem>>, vector<1x32xf32>
    %c1228 = arith.constant 1228 : index
    %c0_25 = arith.constant 0 : index
    %44 = vector.load %arg2[%c1228, %c0_25] : memref<1272x32xf32, #tpu.memory_space<vmem>>, vector<1x32xf32>
    %cst_26 = arith.constant dense<0.000000e+00> : vector<24x32xf32>
    %45 = tpu.matmul %7, %39, %cst_26 {dimension_numbers = #tpu.dot_dimension_numbers<[1], [0], [0], [1], [0, 0, 1, 1], [], []>} : vector<24x8xf32>, vector<8x32xf32>, vector<24x32xf32> -> vector<24x32xf32>
    %cst_27 = arith.constant dense<0.000000e+00> : vector<24x32xf32>
    %46 = tpu.matmul %9, %40, %cst_27 {dimension_numbers = #tpu.dot_dimension_numbers<[1], [0], [0], [1], [0, 0, 1, 1], [], []>} : vector<24x4xf32>, vector<4x32xf32>, vector<24x32xf32> -> vector<24x32xf32>
    %c0_28 = arith.constant 0 : index
    %c0_29 = arith.constant 0 : index
    %47 = vector.load %arg2[%c0_28, %c0_29] : memref<1272x32xf32, #tpu.memory_space<vmem>>, vector<32x32xf32>
    %cst_30 = arith.constant dense<0.000000e+00> : vector<4x32xf32>
    %48 = tpu.matmul %40, %47, %cst_30 {dimension_numbers = #tpu.dot_dimension_numbers<[1], [0], [0], [1], [0, 0, 1, 1], [], []>} : vector<4x32xf32>, vector<32x32xf32>, vector<4x32xf32> -> vector<4x32xf32>
    %c1240 = arith.constant 1240 : index
    %c0_31 = arith.constant 0 : index
    %49 = vector.load %arg2[%c1240, %c0_31] : memref<1272x32xf32, #tpu.memory_space<vmem>>, vector<1x32xf32>
    %50 = vector.broadcast %49 : vector<1x32xf32> to vector<4x32xf32>
    %51 = arith.addf %48, %50 : vector<4x32xf32>
    %c32 = arith.constant 32 : index
    %c0_32 = arith.constant 0 : index
    %52 = vector.load %arg2[%c32, %c0_32] : memref<1272x32xf32, #tpu.memory_space<vmem>>, vector<32x32xf32>
    %cst_33 = arith.constant dense<0.000000e+00> : vector<24x32xf32>
    %53 = tpu.matmul %45, %52, %cst_33 {dimension_numbers = #tpu.dot_dimension_numbers<[1], [0], [0], [1], [0, 0, 1, 1], [], []>} : vector<24x32xf32>, vector<32x32xf32>, vector<24x32xf32> -> vector<24x32xf32>
    %c64 = arith.constant 64 : index
    %c0_34 = arith.constant 0 : index
    %54 = vector.load %arg2[%c64, %c0_34] : memref<1272x32xf32, #tpu.memory_space<vmem>>, vector<32x32xf32>
    %cst_35 = arith.constant dense<0.000000e+00> : vector<24x32xf32>
    %55 = tpu.matmul %31, %54, %cst_35 {dimension_numbers = #tpu.dot_dimension_numbers<[1], [0], [0], [1], [0, 0, 1, 1], [], []>} : vector<24x32xf32>, vector<32x32xf32>, vector<24x32xf32> -> vector<24x32xf32>
    %56 = arith.addf %53, %55 : vector<24x32xf32>
    %c1241 = arith.constant 1241 : index
    %c0_36 = arith.constant 0 : index
    %57 = vector.load %arg2[%c1241, %c0_36] : memref<1272x32xf32, #tpu.memory_space<vmem>>, vector<1x32xf32>
    %58 = vector.broadcast %57 : vector<1x32xf32> to vector<24x32xf32>
    %59 = arith.addf %56, %58 : vector<24x32xf32>
    %c96_37 = arith.constant 96 : index
    %c0_38 = arith.constant 0 : index
    %60 = vector.load %arg2[%c96_37, %c0_38] : memref<1272x32xf32, #tpu.memory_space<vmem>>, vector<32x32xf32>
    %cst_39 = arith.constant dense<0.000000e+00> : vector<24x32xf32>
    %61 = tpu.matmul %45, %60, %cst_39 {dimension_numbers = #tpu.dot_dimension_numbers<[1], [0], [0], [1], [0, 0, 1, 1], [], []>} : vector<24x32xf32>, vector<32x32xf32>, vector<24x32xf32> -> vector<24x32xf32>
    %c128_40 = arith.constant 128 : index
    %c0_41 = arith.constant 0 : index
    %62 = vector.load %arg2[%c128_40, %c0_41] : memref<1272x32xf32, #tpu.memory_space<vmem>>, vector<32x32xf32>
    %cst_42 = arith.constant dense<0.000000e+00> : vector<24x32xf32>
    %63 = tpu.matmul %31, %62, %cst_42 {dimension_numbers = #tpu.dot_dimension_numbers<[1], [0], [0], [1], [0, 0, 1, 1], [], []>} : vector<24x32xf32>, vector<32x32xf32>, vector<24x32xf32> -> vector<24x32xf32>
    %64 = arith.addf %61, %63 : vector<24x32xf32>
    %c1242 = arith.constant 1242 : index
    %c0_43 = arith.constant 0 : index
    %65 = vector.load %arg2[%c1242, %c0_43] : memref<1272x32xf32, #tpu.memory_space<vmem>>, vector<1x32xf32>
    %66 = vector.broadcast %65 : vector<1x32xf32> to vector<24x32xf32>
    %67 = arith.addf %64, %66 : vector<24x32xf32>
    %c160 = arith.constant 160 : index
    %c0_44 = arith.constant 0 : index
    %68 = vector.load %arg2[%c160, %c0_44] : memref<1272x32xf32, #tpu.memory_space<vmem>>, vector<32x32xf32>
    %c1243 = arith.constant 1243 : index
    %c0_45 = arith.constant 0 : index
    %69 = vector.load %arg2[%c1243, %c0_45] : memref<1272x32xf32, #tpu.memory_space<vmem>>, vector<1x32xf32>
    %70 = vector.broadcast %41 : vector<1x32xf32> to vector<4x32xf32>
    %71 = arith.mulf %51, %70 : vector<4x32xf32>
    %cst_46 = arith.constant dense<0.000000e+00> : vector<4x24xf32>
    %72 = tpu.matmul %71, %59, %cst_46 {dimension_numbers = #tpu.dot_dimension_numbers<[1], [1], [0], [0], [0, 0, 1, 0], [], []>} : vector<4x32xf32>, vector<24x32xf32>, vector<4x24xf32> -> vector<4x24xf32>
    %cst_47 = arith.constant 0.176776692 : f32
    %73 = vector.broadcast %cst_47 : f32 to vector<4x24xf32>
    %74 = arith.mulf %72, %73 : vector<4x24xf32>
    %75 = arith.addf %74, %15 : vector<4x24xf32>
    %cst_48 = arith.constant dense<0xFF800000> : vector<4xf32>
    %76 = vector.multi_reduction <maximumf>, %75, %cst_48 [1] : vector<4x24xf32> to vector<4xf32>
    %77 = vector.shape_cast %76 : vector<4xf32> to vector<4x1xf32>
    %78 = vector.broadcast %77 : vector<4x1xf32> to vector<4x24xf32>
    %79 = arith.subf %75, %78 : vector<4x24xf32>
    %80 = math.exp %79 : vector<4x24xf32>
    %cst_49 = arith.constant dense<0.000000e+00> : vector<4xf32>
    %81 = vector.multi_reduction <add>, %80, %cst_49 [1] : vector<4x24xf32> to vector<4xf32>
    %82 = vector.shape_cast %81 : vector<4xf32> to vector<4x1xf32>
    %83 = vector.broadcast %82 : vector<4x1xf32> to vector<4x24xf32>
    %84 = arith.divf %80, %83 : vector<4x24xf32>
    %85 = vector.broadcast %41 : vector<1x32xf32> to vector<24x32xf32>
    %86 = arith.mulf %67, %85 : vector<24x32xf32>
    %cst_50 = arith.constant dense<0.000000e+00> : vector<4x32xf32>
    %87 = tpu.matmul %84, %86, %cst_50 {dimension_numbers = #tpu.dot_dimension_numbers<[1], [0], [0], [1], [0, 0, 1, 1], [], []>} : vector<4x24xf32>, vector<24x32xf32>, vector<4x32xf32> -> vector<4x32xf32>
    %88 = arith.addf %51, %87 : vector<4x32xf32>
    %89 = vector.broadcast %42 : vector<1x32xf32> to vector<4x32xf32>
    %90 = arith.mulf %51, %89 : vector<4x32xf32>
    %cst_51 = arith.constant dense<0.000000e+00> : vector<4x24xf32>
    %91 = tpu.matmul %90, %59, %cst_51 {dimension_numbers = #tpu.dot_dimension_numbers<[1], [1], [0], [0], [0, 0, 1, 0], [], []>} : vector<4x32xf32>, vector<24x32xf32>, vector<4x24xf32> -> vector<4x24xf32>
    %cst_52 = arith.constant 0.176776692 : f32
    %92 = vector.broadcast %cst_52 : f32 to vector<4x24xf32>
    %93 = arith.mulf %91, %92 : vector<4x24xf32>
    %94 = arith.addf %93, %15 : vector<4x24xf32>
    %cst_53 = arith.constant dense<0xFF800000> : vector<4xf32>
    %95 = vector.multi_reduction <maximumf>, %94, %cst_53 [1] : vector<4x24xf32> to vector<4xf32>
    %96 = vector.shape_cast %95 : vector<4xf32> to vector<4x1xf32>
    %97 = vector.broadcast %96 : vector<4x1xf32> to vector<4x24xf32>
    %98 = arith.subf %94, %97 : vector<4x24xf32>
    %99 = math.exp %98 : vector<4x24xf32>
    %cst_54 = arith.constant dense<0.000000e+00> : vector<4xf32>
    %100 = vector.multi_reduction <add>, %99, %cst_54 [1] : vector<4x24xf32> to vector<4xf32>
    %101 = vector.shape_cast %100 : vector<4xf32> to vector<4x1xf32>
    %102 = vector.broadcast %101 : vector<4x1xf32> to vector<4x24xf32>
    %103 = arith.divf %99, %102 : vector<4x24xf32>
    %104 = vector.broadcast %42 : vector<1x32xf32> to vector<24x32xf32>
    %105 = arith.mulf %67, %104 : vector<24x32xf32>
    %cst_55 = arith.constant dense<0.000000e+00> : vector<4x32xf32>
    %106 = tpu.matmul %103, %105, %cst_55 {dimension_numbers = #tpu.dot_dimension_numbers<[1], [0], [0], [1], [0, 0, 1, 1], [], []>} : vector<4x24xf32>, vector<24x32xf32>, vector<4x32xf32> -> vector<4x32xf32>
    %107 = arith.addf %88, %106 : vector<4x32xf32>
    %108 = vector.broadcast %43 : vector<1x32xf32> to vector<4x32xf32>
    %109 = arith.mulf %51, %108 : vector<4x32xf32>
    %cst_56 = arith.constant dense<0.000000e+00> : vector<4x24xf32>
    %110 = tpu.matmul %109, %59, %cst_56 {dimension_numbers = #tpu.dot_dimension_numbers<[1], [1], [0], [0], [0, 0, 1, 0], [], []>} : vector<4x32xf32>, vector<24x32xf32>, vector<4x24xf32> -> vector<4x24xf32>
    %cst_57 = arith.constant 0.176776692 : f32
    %111 = vector.broadcast %cst_57 : f32 to vector<4x24xf32>
    %112 = arith.mulf %110, %111 : vector<4x24xf32>
    %113 = arith.addf %112, %15 : vector<4x24xf32>
    %cst_58 = arith.constant dense<0xFF800000> : vector<4xf32>
    %114 = vector.multi_reduction <maximumf>, %113, %cst_58 [1] : vector<4x24xf32> to vector<4xf32>
    %115 = vector.shape_cast %114 : vector<4xf32> to vector<4x1xf32>
    %116 = vector.broadcast %115 : vector<4x1xf32> to vector<4x24xf32>
    %117 = arith.subf %113, %116 : vector<4x24xf32>
    %118 = math.exp %117 : vector<4x24xf32>
    %cst_59 = arith.constant dense<0.000000e+00> : vector<4xf32>
    %119 = vector.multi_reduction <add>, %118, %cst_59 [1] : vector<4x24xf32> to vector<4xf32>
    %120 = vector.shape_cast %119 : vector<4xf32> to vector<4x1xf32>
    %121 = vector.broadcast %120 : vector<4x1xf32> to vector<4x24xf32>
    %122 = arith.divf %118, %121 : vector<4x24xf32>
    %123 = vector.broadcast %43 : vector<1x32xf32> to vector<24x32xf32>
    %124 = arith.mulf %67, %123 : vector<24x32xf32>
    %cst_60 = arith.constant dense<0.000000e+00> : vector<4x32xf32>
    %125 = tpu.matmul %122, %124, %cst_60 {dimension_numbers = #tpu.dot_dimension_numbers<[1], [0], [0], [1], [0, 0, 1, 1], [], []>} : vector<4x24xf32>, vector<24x32xf32>, vector<4x32xf32> -> vector<4x32xf32>
    %126 = arith.addf %107, %125 : vector<4x32xf32>
    %127 = vector.broadcast %44 : vector<1x32xf32> to vector<4x32xf32>
    %128 = arith.mulf %51, %127 : vector<4x32xf32>
    %cst_61 = arith.constant dense<0.000000e+00> : vector<4x24xf32>
    %129 = tpu.matmul %128, %59, %cst_61 {dimension_numbers = #tpu.dot_dimension_numbers<[1], [1], [0], [0], [0, 0, 1, 0], [], []>} : vector<4x32xf32>, vector<24x32xf32>, vector<4x24xf32> -> vector<4x24xf32>
    %cst_62 = arith.constant 0.176776692 : f32
    %130 = vector.broadcast %cst_62 : f32 to vector<4x24xf32>
    %131 = arith.mulf %129, %130 : vector<4x24xf32>
    %132 = arith.addf %131, %15 : vector<4x24xf32>
    %cst_63 = arith.constant dense<0xFF800000> : vector<4xf32>
    %133 = vector.multi_reduction <maximumf>, %132, %cst_63 [1] : vector<4x24xf32> to vector<4xf32>
    %134 = vector.shape_cast %133 : vector<4xf32> to vector<4x1xf32>
    %135 = vector.broadcast %134 : vector<4x1xf32> to vector<4x24xf32>
    %136 = arith.subf %132, %135 : vector<4x24xf32>
    %137 = math.exp %136 : vector<4x24xf32>
    %cst_64 = arith.constant dense<0.000000e+00> : vector<4xf32>
    %138 = vector.multi_reduction <add>, %137, %cst_64 [1] : vector<4x24xf32> to vector<4xf32>
    %139 = vector.shape_cast %138 : vector<4xf32> to vector<4x1xf32>
    %140 = vector.broadcast %139 : vector<4x1xf32> to vector<4x24xf32>
    %141 = arith.divf %137, %140 : vector<4x24xf32>
    %142 = vector.broadcast %44 : vector<1x32xf32> to vector<24x32xf32>
    %143 = arith.mulf %67, %142 : vector<24x32xf32>
    %cst_65 = arith.constant dense<0.000000e+00> : vector<4x32xf32>
    %144 = tpu.matmul %141, %143, %cst_65 {dimension_numbers = #tpu.dot_dimension_numbers<[1], [0], [0], [1], [0, 0, 1, 1], [], []>} : vector<4x24xf32>, vector<24x32xf32>, vector<4x32xf32> -> vector<4x32xf32>
    %145 = arith.addf %126, %144 : vector<4x32xf32>
    %cst_66 = arith.constant dense<0.000000e+00> : vector<4x32xf32>
    %146 = tpu.matmul %145, %68, %cst_66 {dimension_numbers = #tpu.dot_dimension_numbers<[1], [0], [0], [1], [0, 0, 1, 1], [], []>} : vector<4x32xf32>, vector<32x32xf32>, vector<4x32xf32> -> vector<4x32xf32>
    %147 = vector.broadcast %69 : vector<1x32xf32> to vector<4x32xf32>
    %148 = arith.addf %146, %147 : vector<4x32xf32>
    %cst_67 = arith.constant 0.000000e+00 : f32
    %149 = vector.broadcast %cst_67 : f32 to vector<4x32xf32>
    %150 = arith.maximumf %148, %149 : vector<4x32xf32>
    %151 = arith.addf %145, %150 : vector<4x32xf32>
    %c192 = arith.constant 192 : index
    %c0_68 = arith.constant 0 : index
    %152 = vector.load %arg2[%c192, %c0_68] : memref<1272x32xf32, #tpu.memory_space<vmem>>, vector<32x32xf32>
    %cst_69 = arith.constant dense<0.000000e+00> : vector<8x32xf32>
    %153 = tpu.matmul %39, %152, %cst_69 {dimension_numbers = #tpu.dot_dimension_numbers<[1], [0], [0], [1], [0, 0, 1, 1], [], []>} : vector<8x32xf32>, vector<32x32xf32>, vector<8x32xf32> -> vector<8x32xf32>
    %c1244 = arith.constant 1244 : index
    %c0_70 = arith.constant 0 : index
    %154 = vector.load %arg2[%c1244, %c0_70] : memref<1272x32xf32, #tpu.memory_space<vmem>>, vector<1x32xf32>
    %155 = vector.broadcast %154 : vector<1x32xf32> to vector<8x32xf32>
    %156 = arith.addf %153, %155 : vector<8x32xf32>
    %c224 = arith.constant 224 : index
    %c0_71 = arith.constant 0 : index
    %157 = vector.load %arg2[%c224, %c0_71] : memref<1272x32xf32, #tpu.memory_space<vmem>>, vector<32x32xf32>
    %cst_72 = arith.constant dense<0.000000e+00> : vector<24x32xf32>
    %158 = tpu.matmul %46, %157, %cst_72 {dimension_numbers = #tpu.dot_dimension_numbers<[1], [0], [0], [1], [0, 0, 1, 1], [], []>} : vector<24x32xf32>, vector<32x32xf32>, vector<24x32xf32> -> vector<24x32xf32>
    %c256 = arith.constant 256 : index
    %c0_73 = arith.constant 0 : index
    %159 = vector.load %arg2[%c256, %c0_73] : memref<1272x32xf32, #tpu.memory_space<vmem>>, vector<32x32xf32>
    %cst_74 = arith.constant dense<0.000000e+00> : vector<24x32xf32>
    %160 = tpu.matmul %31, %159, %cst_74 {dimension_numbers = #tpu.dot_dimension_numbers<[1], [0], [0], [1], [0, 0, 1, 1], [], []>} : vector<24x32xf32>, vector<32x32xf32>, vector<24x32xf32> -> vector<24x32xf32>
    %161 = arith.addf %158, %160 : vector<24x32xf32>
    %c1245 = arith.constant 1245 : index
    %c0_75 = arith.constant 0 : index
    %162 = vector.load %arg2[%c1245, %c0_75] : memref<1272x32xf32, #tpu.memory_space<vmem>>, vector<1x32xf32>
    %163 = vector.broadcast %162 : vector<1x32xf32> to vector<24x32xf32>
    %164 = arith.addf %161, %163 : vector<24x32xf32>
    %c288 = arith.constant 288 : index
    %c0_76 = arith.constant 0 : index
    %165 = vector.load %arg2[%c288, %c0_76] : memref<1272x32xf32, #tpu.memory_space<vmem>>, vector<32x32xf32>
    %cst_77 = arith.constant dense<0.000000e+00> : vector<24x32xf32>
    %166 = tpu.matmul %46, %165, %cst_77 {dimension_numbers = #tpu.dot_dimension_numbers<[1], [0], [0], [1], [0, 0, 1, 1], [], []>} : vector<24x32xf32>, vector<32x32xf32>, vector<24x32xf32> -> vector<24x32xf32>
    %c320 = arith.constant 320 : index
    %c0_78 = arith.constant 0 : index
    %167 = vector.load %arg2[%c320, %c0_78] : memref<1272x32xf32, #tpu.memory_space<vmem>>, vector<32x32xf32>
    %cst_79 = arith.constant dense<0.000000e+00> : vector<24x32xf32>
    %168 = tpu.matmul %31, %167, %cst_79 {dimension_numbers = #tpu.dot_dimension_numbers<[1], [0], [0], [1], [0, 0, 1, 1], [], []>} : vector<24x32xf32>, vector<32x32xf32>, vector<24x32xf32> -> vector<24x32xf32>
    %169 = arith.addf %166, %168 : vector<24x32xf32>
    %c1246 = arith.constant 1246 : index
    %c0_80 = arith.constant 0 : index
    %170 = vector.load %arg2[%c1246, %c0_80] : memref<1272x32xf32, #tpu.memory_space<vmem>>, vector<1x32xf32>
    %171 = vector.broadcast %170 : vector<1x32xf32> to vector<24x32xf32>
    %172 = arith.addf %169, %171 : vector<24x32xf32>
    %c352 = arith.constant 352 : index
    %c0_81 = arith.constant 0 : index
    %173 = vector.load %arg2[%c352, %c0_81] : memref<1272x32xf32, #tpu.memory_space<vmem>>, vector<32x32xf32>
    %c1247 = arith.constant 1247 : index
    %c0_82 = arith.constant 0 : index
    %174 = vector.load %arg2[%c1247, %c0_82] : memref<1272x32xf32, #tpu.memory_space<vmem>>, vector<1x32xf32>
    %175 = vector.broadcast %41 : vector<1x32xf32> to vector<8x32xf32>
    %176 = arith.mulf %156, %175 : vector<8x32xf32>
    %cst_83 = arith.constant dense<0.000000e+00> : vector<8x24xf32>
    %177 = tpu.matmul %176, %164, %cst_83 {dimension_numbers = #tpu.dot_dimension_numbers<[1], [1], [0], [0], [0, 0, 1, 0], [], []>} : vector<8x32xf32>, vector<24x32xf32>, vector<8x24xf32> -> vector<8x24xf32>
    %cst_84 = arith.constant 0.176776692 : f32
    %178 = vector.broadcast %cst_84 : f32 to vector<8x24xf32>
    %179 = arith.mulf %177, %178 : vector<8x24xf32>
    %180 = arith.addf %179, %13 : vector<8x24xf32>
    %cst_85 = arith.constant dense<0xFF800000> : vector<8xf32>
    %181 = vector.multi_reduction <maximumf>, %180, %cst_85 [1] : vector<8x24xf32> to vector<8xf32>
    %182 = vector.shape_cast %181 : vector<8xf32> to vector<8x1xf32>
    %183 = vector.broadcast %182 : vector<8x1xf32> to vector<8x24xf32>
    %184 = arith.subf %180, %183 : vector<8x24xf32>
    %185 = math.exp %184 : vector<8x24xf32>
    %cst_86 = arith.constant dense<0.000000e+00> : vector<8xf32>
    %186 = vector.multi_reduction <add>, %185, %cst_86 [1] : vector<8x24xf32> to vector<8xf32>
    %187 = vector.shape_cast %186 : vector<8xf32> to vector<8x1xf32>
    %188 = vector.broadcast %187 : vector<8x1xf32> to vector<8x24xf32>
    %189 = arith.divf %185, %188 : vector<8x24xf32>
    %190 = vector.broadcast %41 : vector<1x32xf32> to vector<24x32xf32>
    %191 = arith.mulf %172, %190 : vector<24x32xf32>
    %cst_87 = arith.constant dense<0.000000e+00> : vector<8x32xf32>
    %192 = tpu.matmul %189, %191, %cst_87 {dimension_numbers = #tpu.dot_dimension_numbers<[1], [0], [0], [1], [0, 0, 1, 1], [], []>} : vector<8x24xf32>, vector<24x32xf32>, vector<8x32xf32> -> vector<8x32xf32>
    %193 = arith.addf %156, %192 : vector<8x32xf32>
    %194 = vector.broadcast %42 : vector<1x32xf32> to vector<8x32xf32>
    %195 = arith.mulf %156, %194 : vector<8x32xf32>
    %cst_88 = arith.constant dense<0.000000e+00> : vector<8x24xf32>
    %196 = tpu.matmul %195, %164, %cst_88 {dimension_numbers = #tpu.dot_dimension_numbers<[1], [1], [0], [0], [0, 0, 1, 0], [], []>} : vector<8x32xf32>, vector<24x32xf32>, vector<8x24xf32> -> vector<8x24xf32>
    %cst_89 = arith.constant 0.176776692 : f32
    %197 = vector.broadcast %cst_89 : f32 to vector<8x24xf32>
    %198 = arith.mulf %196, %197 : vector<8x24xf32>
    %199 = arith.addf %198, %13 : vector<8x24xf32>
    %cst_90 = arith.constant dense<0xFF800000> : vector<8xf32>
    %200 = vector.multi_reduction <maximumf>, %199, %cst_90 [1] : vector<8x24xf32> to vector<8xf32>
    %201 = vector.shape_cast %200 : vector<8xf32> to vector<8x1xf32>
    %202 = vector.broadcast %201 : vector<8x1xf32> to vector<8x24xf32>
    %203 = arith.subf %199, %202 : vector<8x24xf32>
    %204 = math.exp %203 : vector<8x24xf32>
    %cst_91 = arith.constant dense<0.000000e+00> : vector<8xf32>
    %205 = vector.multi_reduction <add>, %204, %cst_91 [1] : vector<8x24xf32> to vector<8xf32>
    %206 = vector.shape_cast %205 : vector<8xf32> to vector<8x1xf32>
    %207 = vector.broadcast %206 : vector<8x1xf32> to vector<8x24xf32>
    %208 = arith.divf %204, %207 : vector<8x24xf32>
    %209 = vector.broadcast %42 : vector<1x32xf32> to vector<24x32xf32>
    %210 = arith.mulf %172, %209 : vector<24x32xf32>
    %cst_92 = arith.constant dense<0.000000e+00> : vector<8x32xf32>
    %211 = tpu.matmul %208, %210, %cst_92 {dimension_numbers = #tpu.dot_dimension_numbers<[1], [0], [0], [1], [0, 0, 1, 1], [], []>} : vector<8x24xf32>, vector<24x32xf32>, vector<8x32xf32> -> vector<8x32xf32>
    %212 = arith.addf %193, %211 : vector<8x32xf32>
    %213 = vector.broadcast %43 : vector<1x32xf32> to vector<8x32xf32>
    %214 = arith.mulf %156, %213 : vector<8x32xf32>
    %cst_93 = arith.constant dense<0.000000e+00> : vector<8x24xf32>
    %215 = tpu.matmul %214, %164, %cst_93 {dimension_numbers = #tpu.dot_dimension_numbers<[1], [1], [0], [0], [0, 0, 1, 0], [], []>} : vector<8x32xf32>, vector<24x32xf32>, vector<8x24xf32> -> vector<8x24xf32>
    %cst_94 = arith.constant 0.176776692 : f32
    %216 = vector.broadcast %cst_94 : f32 to vector<8x24xf32>
    %217 = arith.mulf %215, %216 : vector<8x24xf32>
    %218 = arith.addf %217, %13 : vector<8x24xf32>
    %cst_95 = arith.constant dense<0xFF800000> : vector<8xf32>
    %219 = vector.multi_reduction <maximumf>, %218, %cst_95 [1] : vector<8x24xf32> to vector<8xf32>
    %220 = vector.shape_cast %219 : vector<8xf32> to vector<8x1xf32>
    %221 = vector.broadcast %220 : vector<8x1xf32> to vector<8x24xf32>
    %222 = arith.subf %218, %221 : vector<8x24xf32>
    %223 = math.exp %222 : vector<8x24xf32>
    %cst_96 = arith.constant dense<0.000000e+00> : vector<8xf32>
    %224 = vector.multi_reduction <add>, %223, %cst_96 [1] : vector<8x24xf32> to vector<8xf32>
    %225 = vector.shape_cast %224 : vector<8xf32> to vector<8x1xf32>
    %226 = vector.broadcast %225 : vector<8x1xf32> to vector<8x24xf32>
    %227 = arith.divf %223, %226 : vector<8x24xf32>
    %228 = vector.broadcast %43 : vector<1x32xf32> to vector<24x32xf32>
    %229 = arith.mulf %172, %228 : vector<24x32xf32>
    %cst_97 = arith.constant dense<0.000000e+00> : vector<8x32xf32>
    %230 = tpu.matmul %227, %229, %cst_97 {dimension_numbers = #tpu.dot_dimension_numbers<[1], [0], [0], [1], [0, 0, 1, 1], [], []>} : vector<8x24xf32>, vector<24x32xf32>, vector<8x32xf32> -> vector<8x32xf32>
    %231 = arith.addf %212, %230 : vector<8x32xf32>
    %232 = vector.broadcast %44 : vector<1x32xf32> to vector<8x32xf32>
    %233 = arith.mulf %156, %232 : vector<8x32xf32>
    %cst_98 = arith.constant dense<0.000000e+00> : vector<8x24xf32>
    %234 = tpu.matmul %233, %164, %cst_98 {dimension_numbers = #tpu.dot_dimension_numbers<[1], [1], [0], [0], [0, 0, 1, 0], [], []>} : vector<8x32xf32>, vector<24x32xf32>, vector<8x24xf32> -> vector<8x24xf32>
    %cst_99 = arith.constant 0.176776692 : f32
    %235 = vector.broadcast %cst_99 : f32 to vector<8x24xf32>
    %236 = arith.mulf %234, %235 : vector<8x24xf32>
    %237 = arith.addf %236, %13 : vector<8x24xf32>
    %cst_100 = arith.constant dense<0xFF800000> : vector<8xf32>
    %238 = vector.multi_reduction <maximumf>, %237, %cst_100 [1] : vector<8x24xf32> to vector<8xf32>
    %239 = vector.shape_cast %238 : vector<8xf32> to vector<8x1xf32>
    %240 = vector.broadcast %239 : vector<8x1xf32> to vector<8x24xf32>
    %241 = arith.subf %237, %240 : vector<8x24xf32>
    %242 = math.exp %241 : vector<8x24xf32>
    %cst_101 = arith.constant dense<0.000000e+00> : vector<8xf32>
    %243 = vector.multi_reduction <add>, %242, %cst_101 [1] : vector<8x24xf32> to vector<8xf32>
    %244 = vector.shape_cast %243 : vector<8xf32> to vector<8x1xf32>
    %245 = vector.broadcast %244 : vector<8x1xf32> to vector<8x24xf32>
    %246 = arith.divf %242, %245 : vector<8x24xf32>
    %247 = vector.broadcast %44 : vector<1x32xf32> to vector<24x32xf32>
    %248 = arith.mulf %172, %247 : vector<24x32xf32>
    %cst_102 = arith.constant dense<0.000000e+00> : vector<8x32xf32>
    %249 = tpu.matmul %246, %248, %cst_102 {dimension_numbers = #tpu.dot_dimension_numbers<[1], [0], [0], [1], [0, 0, 1, 1], [], []>} : vector<8x24xf32>, vector<24x32xf32>, vector<8x32xf32> -> vector<8x32xf32>
    %250 = arith.addf %231, %249 : vector<8x32xf32>
    %cst_103 = arith.constant dense<0.000000e+00> : vector<8x32xf32>
    %251 = tpu.matmul %250, %173, %cst_103 {dimension_numbers = #tpu.dot_dimension_numbers<[1], [0], [0], [1], [0, 0, 1, 1], [], []>} : vector<8x32xf32>, vector<32x32xf32>, vector<8x32xf32> -> vector<8x32xf32>
    %252 = vector.broadcast %174 : vector<1x32xf32> to vector<8x32xf32>
    %253 = arith.addf %251, %252 : vector<8x32xf32>
    %cst_104 = arith.constant 0.000000e+00 : f32
    %254 = vector.broadcast %cst_104 : f32 to vector<8x32xf32>
    %255 = arith.maximumf %253, %254 : vector<8x32xf32>
    %256 = arith.addf %250, %255 : vector<8x32xf32>
    %c384 = arith.constant 384 : index
    %c0_105 = arith.constant 0 : index
    %257 = vector.load %arg2[%c384, %c0_105] : memref<1272x32xf32, #tpu.memory_space<vmem>>, vector<32x32xf32>
    %cst_106 = arith.constant dense<0.000000e+00> : vector<24x32xf32>
    %258 = tpu.matmul %31, %257, %cst_106 {dimension_numbers = #tpu.dot_dimension_numbers<[1], [0], [0], [1], [0, 0, 1, 1], [], []>} : vector<24x32xf32>, vector<32x32xf32>, vector<24x32xf32> -> vector<24x32xf32>
    %259 = arith.addf %31, %258 : vector<24x32xf32>
    %c416 = arith.constant 416 : index
    %c0_107 = arith.constant 0 : index
    %260 = vector.load %arg2[%c416, %c0_107] : memref<1272x32xf32, #tpu.memory_space<vmem>>, vector<32x32xf32>
    %cst_108 = arith.constant dense<0.000000e+00> : vector<24x32xf32>
    %261 = tpu.matmul %45, %260, %cst_108 {dimension_numbers = #tpu.dot_dimension_numbers<[1], [0], [0], [1], [0, 0, 1, 1], [], []>} : vector<24x32xf32>, vector<32x32xf32>, vector<24x32xf32> -> vector<24x32xf32>
    %262 = arith.addf %259, %261 : vector<24x32xf32>
    %c448 = arith.constant 448 : index
    %c0_109 = arith.constant 0 : index
    %263 = vector.load %arg2[%c448, %c0_109] : memref<1272x32xf32, #tpu.memory_space<vmem>>, vector<32x32xf32>
    %cst_110 = arith.constant dense<0.000000e+00> : vector<24x32xf32>
    %264 = tpu.matmul %46, %263, %cst_110 {dimension_numbers = #tpu.dot_dimension_numbers<[1], [0], [0], [1], [0, 0, 1, 1], [], []>} : vector<24x32xf32>, vector<32x32xf32>, vector<24x32xf32> -> vector<24x32xf32>
    %265 = arith.addf %262, %264 : vector<24x32xf32>
    %c1248 = arith.constant 1248 : index
    %c0_111 = arith.constant 0 : index
    %266 = vector.load %arg2[%c1248, %c0_111] : memref<1272x32xf32, #tpu.memory_space<vmem>>, vector<1x32xf32>
    %267 = vector.broadcast %266 : vector<1x32xf32> to vector<24x32xf32>
    %268 = arith.addf %265, %267 : vector<24x32xf32>
    %cst_112 = arith.constant 0.000000e+00 : f32
    %269 = vector.broadcast %cst_112 : f32 to vector<24x32xf32>
    %270 = arith.maximumf %268, %269 : vector<24x32xf32>
    %271 = vector.broadcast %5 : vector<24x1xf32> to vector<24x32xf32>
    %272 = arith.mulf %270, %271 : vector<24x32xf32>
    %c480 = arith.constant 480 : index
    %c0_113 = arith.constant 0 : index
    %273 = vector.load %arg2[%c480, %c0_113] : memref<1272x32xf32, #tpu.memory_space<vmem>>, vector<32x32xf32>
    %cst_114 = arith.constant dense<0.000000e+00> : vector<4x32xf32>
    %274 = tpu.matmul %151, %273, %cst_114 {dimension_numbers = #tpu.dot_dimension_numbers<[1], [0], [0], [1], [0, 0, 1, 1], [], []>} : vector<4x32xf32>, vector<32x32xf32>, vector<4x32xf32> -> vector<4x32xf32>
    %c1249 = arith.constant 1249 : index
    %c0_115 = arith.constant 0 : index
    %275 = vector.load %arg2[%c1249, %c0_115] : memref<1272x32xf32, #tpu.memory_space<vmem>>, vector<1x32xf32>
    %276 = vector.broadcast %275 : vector<1x32xf32> to vector<4x32xf32>
    %277 = arith.addf %274, %276 : vector<4x32xf32>
    %c512 = arith.constant 512 : index
    %c0_116 = arith.constant 0 : index
    %278 = vector.load %arg2[%c512, %c0_116] : memref<1272x32xf32, #tpu.memory_space<vmem>>, vector<32x32xf32>
    %cst_117 = arith.constant dense<0.000000e+00> : vector<4x32xf32>
    %279 = tpu.matmul %151, %278, %cst_117 {dimension_numbers = #tpu.dot_dimension_numbers<[1], [0], [0], [1], [0, 0, 1, 1], [], []>} : vector<4x32xf32>, vector<32x32xf32>, vector<4x32xf32> -> vector<4x32xf32>
    %c1250 = arith.constant 1250 : index
    %c0_118 = arith.constant 0 : index
    %280 = vector.load %arg2[%c1250, %c0_118] : memref<1272x32xf32, #tpu.memory_space<vmem>>, vector<1x32xf32>
    %281 = vector.broadcast %280 : vector<1x32xf32> to vector<4x32xf32>
    %282 = arith.addf %279, %281 : vector<4x32xf32>
    %c544 = arith.constant 544 : index
    %c0_119 = arith.constant 0 : index
    %283 = vector.load %arg2[%c544, %c0_119] : memref<1272x32xf32, #tpu.memory_space<vmem>>, vector<32x32xf32>
    %cst_120 = arith.constant dense<0.000000e+00> : vector<4x32xf32>
    %284 = tpu.matmul %151, %283, %cst_120 {dimension_numbers = #tpu.dot_dimension_numbers<[1], [0], [0], [1], [0, 0, 1, 1], [], []>} : vector<4x32xf32>, vector<32x32xf32>, vector<4x32xf32> -> vector<4x32xf32>
    %c1251 = arith.constant 1251 : index
    %c0_121 = arith.constant 0 : index
    %285 = vector.load %arg2[%c1251, %c0_121] : memref<1272x32xf32, #tpu.memory_space<vmem>>, vector<1x32xf32>
    %286 = vector.broadcast %285 : vector<1x32xf32> to vector<4x32xf32>
    %287 = arith.addf %284, %286 : vector<4x32xf32>
    %c576 = arith.constant 576 : index
    %c0_122 = arith.constant 0 : index
    %288 = vector.load %arg2[%c576, %c0_122] : memref<1272x32xf32, #tpu.memory_space<vmem>>, vector<32x32xf32>
    %c1252 = arith.constant 1252 : index
    %c0_123 = arith.constant 0 : index
    %289 = vector.load %arg2[%c1252, %c0_123] : memref<1272x32xf32, #tpu.memory_space<vmem>>, vector<1x32xf32>
    %290 = vector.broadcast %41 : vector<1x32xf32> to vector<4x32xf32>
    %291 = arith.mulf %277, %290 : vector<4x32xf32>
    %cst_124 = arith.constant dense<0.000000e+00> : vector<4x4xf32>
    %292 = tpu.matmul %291, %282, %cst_124 {dimension_numbers = #tpu.dot_dimension_numbers<[1], [1], [0], [0], [0, 0, 1, 0], [], []>} : vector<4x32xf32>, vector<4x32xf32>, vector<4x4xf32> -> vector<4x4xf32>
    %cst_125 = arith.constant 0.176776692 : f32
    %293 = vector.broadcast %cst_125 : f32 to vector<4x4xf32>
    %294 = arith.mulf %292, %293 : vector<4x4xf32>
    %cst_126 = arith.constant dense<0xFF800000> : vector<4xf32>
    %295 = vector.multi_reduction <maximumf>, %294, %cst_126 [1] : vector<4x4xf32> to vector<4xf32>
    %296 = vector.shape_cast %295 : vector<4xf32> to vector<4x1xf32>
    %297 = vector.broadcast %296 : vector<4x1xf32> to vector<4x4xf32>
    %298 = arith.subf %294, %297 : vector<4x4xf32>
    %299 = math.exp %298 : vector<4x4xf32>
    %cst_127 = arith.constant dense<0.000000e+00> : vector<4xf32>
    %300 = vector.multi_reduction <add>, %299, %cst_127 [1] : vector<4x4xf32> to vector<4xf32>
    %301 = vector.shape_cast %300 : vector<4xf32> to vector<4x1xf32>
    %302 = vector.broadcast %301 : vector<4x1xf32> to vector<4x4xf32>
    %303 = arith.divf %299, %302 : vector<4x4xf32>
    %304 = vector.broadcast %41 : vector<1x32xf32> to vector<4x32xf32>
    %305 = arith.mulf %287, %304 : vector<4x32xf32>
    %cst_128 = arith.constant dense<0.000000e+00> : vector<4x32xf32>
    %306 = tpu.matmul %303, %305, %cst_128 {dimension_numbers = #tpu.dot_dimension_numbers<[1], [0], [0], [1], [0, 0, 1, 1], [], []>} : vector<4x4xf32>, vector<4x32xf32>, vector<4x32xf32> -> vector<4x32xf32>
    %307 = arith.addf %277, %306 : vector<4x32xf32>
    %308 = vector.broadcast %42 : vector<1x32xf32> to vector<4x32xf32>
    %309 = arith.mulf %277, %308 : vector<4x32xf32>
    %cst_129 = arith.constant dense<0.000000e+00> : vector<4x4xf32>
    %310 = tpu.matmul %309, %282, %cst_129 {dimension_numbers = #tpu.dot_dimension_numbers<[1], [1], [0], [0], [0, 0, 1, 0], [], []>} : vector<4x32xf32>, vector<4x32xf32>, vector<4x4xf32> -> vector<4x4xf32>
    %cst_130 = arith.constant 0.176776692 : f32
    %311 = vector.broadcast %cst_130 : f32 to vector<4x4xf32>
    %312 = arith.mulf %310, %311 : vector<4x4xf32>
    %cst_131 = arith.constant dense<0xFF800000> : vector<4xf32>
    %313 = vector.multi_reduction <maximumf>, %312, %cst_131 [1] : vector<4x4xf32> to vector<4xf32>
    %314 = vector.shape_cast %313 : vector<4xf32> to vector<4x1xf32>
    %315 = vector.broadcast %314 : vector<4x1xf32> to vector<4x4xf32>
    %316 = arith.subf %312, %315 : vector<4x4xf32>
    %317 = math.exp %316 : vector<4x4xf32>
    %cst_132 = arith.constant dense<0.000000e+00> : vector<4xf32>
    %318 = vector.multi_reduction <add>, %317, %cst_132 [1] : vector<4x4xf32> to vector<4xf32>
    %319 = vector.shape_cast %318 : vector<4xf32> to vector<4x1xf32>
    %320 = vector.broadcast %319 : vector<4x1xf32> to vector<4x4xf32>
    %321 = arith.divf %317, %320 : vector<4x4xf32>
    %322 = vector.broadcast %42 : vector<1x32xf32> to vector<4x32xf32>
    %323 = arith.mulf %287, %322 : vector<4x32xf32>
    %cst_133 = arith.constant dense<0.000000e+00> : vector<4x32xf32>
    %324 = tpu.matmul %321, %323, %cst_133 {dimension_numbers = #tpu.dot_dimension_numbers<[1], [0], [0], [1], [0, 0, 1, 1], [], []>} : vector<4x4xf32>, vector<4x32xf32>, vector<4x32xf32> -> vector<4x32xf32>
    %325 = arith.addf %307, %324 : vector<4x32xf32>
    %326 = vector.broadcast %43 : vector<1x32xf32> to vector<4x32xf32>
    %327 = arith.mulf %277, %326 : vector<4x32xf32>
    %cst_134 = arith.constant dense<0.000000e+00> : vector<4x4xf32>
    %328 = tpu.matmul %327, %282, %cst_134 {dimension_numbers = #tpu.dot_dimension_numbers<[1], [1], [0], [0], [0, 0, 1, 0], [], []>} : vector<4x32xf32>, vector<4x32xf32>, vector<4x4xf32> -> vector<4x4xf32>
    %cst_135 = arith.constant 0.176776692 : f32
    %329 = vector.broadcast %cst_135 : f32 to vector<4x4xf32>
    %330 = arith.mulf %328, %329 : vector<4x4xf32>
    %cst_136 = arith.constant dense<0xFF800000> : vector<4xf32>
    %331 = vector.multi_reduction <maximumf>, %330, %cst_136 [1] : vector<4x4xf32> to vector<4xf32>
    %332 = vector.shape_cast %331 : vector<4xf32> to vector<4x1xf32>
    %333 = vector.broadcast %332 : vector<4x1xf32> to vector<4x4xf32>
    %334 = arith.subf %330, %333 : vector<4x4xf32>
    %335 = math.exp %334 : vector<4x4xf32>
    %cst_137 = arith.constant dense<0.000000e+00> : vector<4xf32>
    %336 = vector.multi_reduction <add>, %335, %cst_137 [1] : vector<4x4xf32> to vector<4xf32>
    %337 = vector.shape_cast %336 : vector<4xf32> to vector<4x1xf32>
    %338 = vector.broadcast %337 : vector<4x1xf32> to vector<4x4xf32>
    %339 = arith.divf %335, %338 : vector<4x4xf32>
    %340 = vector.broadcast %43 : vector<1x32xf32> to vector<4x32xf32>
    %341 = arith.mulf %287, %340 : vector<4x32xf32>
    %cst_138 = arith.constant dense<0.000000e+00> : vector<4x32xf32>
    %342 = tpu.matmul %339, %341, %cst_138 {dimension_numbers = #tpu.dot_dimension_numbers<[1], [0], [0], [1], [0, 0, 1, 1], [], []>} : vector<4x4xf32>, vector<4x32xf32>, vector<4x32xf32> -> vector<4x32xf32>
    %343 = arith.addf %325, %342 : vector<4x32xf32>
    %344 = vector.broadcast %44 : vector<1x32xf32> to vector<4x32xf32>
    %345 = arith.mulf %277, %344 : vector<4x32xf32>
    %cst_139 = arith.constant dense<0.000000e+00> : vector<4x4xf32>
    %346 = tpu.matmul %345, %282, %cst_139 {dimension_numbers = #tpu.dot_dimension_numbers<[1], [1], [0], [0], [0, 0, 1, 0], [], []>} : vector<4x32xf32>, vector<4x32xf32>, vector<4x4xf32> -> vector<4x4xf32>
    %cst_140 = arith.constant 0.176776692 : f32
    %347 = vector.broadcast %cst_140 : f32 to vector<4x4xf32>
    %348 = arith.mulf %346, %347 : vector<4x4xf32>
    %cst_141 = arith.constant dense<0xFF800000> : vector<4xf32>
    %349 = vector.multi_reduction <maximumf>, %348, %cst_141 [1] : vector<4x4xf32> to vector<4xf32>
    %350 = vector.shape_cast %349 : vector<4xf32> to vector<4x1xf32>
    %351 = vector.broadcast %350 : vector<4x1xf32> to vector<4x4xf32>
    %352 = arith.subf %348, %351 : vector<4x4xf32>
    %353 = math.exp %352 : vector<4x4xf32>
    %cst_142 = arith.constant dense<0.000000e+00> : vector<4xf32>
    %354 = vector.multi_reduction <add>, %353, %cst_142 [1] : vector<4x4xf32> to vector<4xf32>
    %355 = vector.shape_cast %354 : vector<4xf32> to vector<4x1xf32>
    %356 = vector.broadcast %355 : vector<4x1xf32> to vector<4x4xf32>
    %357 = arith.divf %353, %356 : vector<4x4xf32>
    %358 = vector.broadcast %44 : vector<1x32xf32> to vector<4x32xf32>
    %359 = arith.mulf %287, %358 : vector<4x32xf32>
    %cst_143 = arith.constant dense<0.000000e+00> : vector<4x32xf32>
    %360 = tpu.matmul %357, %359, %cst_143 {dimension_numbers = #tpu.dot_dimension_numbers<[1], [0], [0], [1], [0, 0, 1, 1], [], []>} : vector<4x4xf32>, vector<4x32xf32>, vector<4x32xf32> -> vector<4x32xf32>
    %361 = arith.addf %343, %360 : vector<4x32xf32>
    %cst_144 = arith.constant dense<0.000000e+00> : vector<4x32xf32>
    %362 = tpu.matmul %361, %288, %cst_144 {dimension_numbers = #tpu.dot_dimension_numbers<[1], [0], [0], [1], [0, 0, 1, 1], [], []>} : vector<4x32xf32>, vector<32x32xf32>, vector<4x32xf32> -> vector<4x32xf32>
    %363 = vector.broadcast %289 : vector<1x32xf32> to vector<4x32xf32>
    %364 = arith.addf %362, %363 : vector<4x32xf32>
    %cst_145 = arith.constant 0.000000e+00 : f32
    %365 = vector.broadcast %cst_145 : f32 to vector<4x32xf32>
    %366 = arith.maximumf %364, %365 : vector<4x32xf32>
    %367 = arith.addf %361, %366 : vector<4x32xf32>
    %cst_146 = arith.constant dense<0.000000e+00> : vector<24x32xf32>
    %368 = tpu.matmul %7, %256, %cst_146 {dimension_numbers = #tpu.dot_dimension_numbers<[1], [0], [0], [1], [0, 0, 1, 1], [], []>} : vector<24x8xf32>, vector<8x32xf32>, vector<24x32xf32> -> vector<24x32xf32>
    %cst_147 = arith.constant dense<0.000000e+00> : vector<24x32xf32>
    %369 = tpu.matmul %9, %367, %cst_147 {dimension_numbers = #tpu.dot_dimension_numbers<[1], [0], [0], [1], [0, 0, 1, 1], [], []>} : vector<24x4xf32>, vector<4x32xf32>, vector<24x32xf32> -> vector<24x32xf32>
    %c608 = arith.constant 608 : index
    %c0_148 = arith.constant 0 : index
    %370 = vector.load %arg2[%c608, %c0_148] : memref<1272x32xf32, #tpu.memory_space<vmem>>, vector<32x32xf32>
    %cst_149 = arith.constant dense<0.000000e+00> : vector<4x32xf32>
    %371 = tpu.matmul %367, %370, %cst_149 {dimension_numbers = #tpu.dot_dimension_numbers<[1], [0], [0], [1], [0, 0, 1, 1], [], []>} : vector<4x32xf32>, vector<32x32xf32>, vector<4x32xf32> -> vector<4x32xf32>
    %c1256 = arith.constant 1256 : index
    %c0_150 = arith.constant 0 : index
    %372 = vector.load %arg2[%c1256, %c0_150] : memref<1272x32xf32, #tpu.memory_space<vmem>>, vector<1x32xf32>
    %373 = vector.broadcast %372 : vector<1x32xf32> to vector<4x32xf32>
    %374 = arith.addf %371, %373 : vector<4x32xf32>
    %c640 = arith.constant 640 : index
    %c0_151 = arith.constant 0 : index
    %375 = vector.load %arg2[%c640, %c0_151] : memref<1272x32xf32, #tpu.memory_space<vmem>>, vector<32x32xf32>
    %cst_152 = arith.constant dense<0.000000e+00> : vector<24x32xf32>
    %376 = tpu.matmul %368, %375, %cst_152 {dimension_numbers = #tpu.dot_dimension_numbers<[1], [0], [0], [1], [0, 0, 1, 1], [], []>} : vector<24x32xf32>, vector<32x32xf32>, vector<24x32xf32> -> vector<24x32xf32>
    %c672 = arith.constant 672 : index
    %c0_153 = arith.constant 0 : index
    %377 = vector.load %arg2[%c672, %c0_153] : memref<1272x32xf32, #tpu.memory_space<vmem>>, vector<32x32xf32>
    %cst_154 = arith.constant dense<0.000000e+00> : vector<24x32xf32>
    %378 = tpu.matmul %272, %377, %cst_154 {dimension_numbers = #tpu.dot_dimension_numbers<[1], [0], [0], [1], [0, 0, 1, 1], [], []>} : vector<24x32xf32>, vector<32x32xf32>, vector<24x32xf32> -> vector<24x32xf32>
    %379 = arith.addf %376, %378 : vector<24x32xf32>
    %c1257 = arith.constant 1257 : index
    %c0_155 = arith.constant 0 : index
    %380 = vector.load %arg2[%c1257, %c0_155] : memref<1272x32xf32, #tpu.memory_space<vmem>>, vector<1x32xf32>
    %381 = vector.broadcast %380 : vector<1x32xf32> to vector<24x32xf32>
    %382 = arith.addf %379, %381 : vector<24x32xf32>
    %c704 = arith.constant 704 : index
    %c0_156 = arith.constant 0 : index
    %383 = vector.load %arg2[%c704, %c0_156] : memref<1272x32xf32, #tpu.memory_space<vmem>>, vector<32x32xf32>
    %cst_157 = arith.constant dense<0.000000e+00> : vector<24x32xf32>
    %384 = tpu.matmul %368, %383, %cst_157 {dimension_numbers = #tpu.dot_dimension_numbers<[1], [0], [0], [1], [0, 0, 1, 1], [], []>} : vector<24x32xf32>, vector<32x32xf32>, vector<24x32xf32> -> vector<24x32xf32>
    %c736 = arith.constant 736 : index
    %c0_158 = arith.constant 0 : index
    %385 = vector.load %arg2[%c736, %c0_158] : memref<1272x32xf32, #tpu.memory_space<vmem>>, vector<32x32xf32>
    %cst_159 = arith.constant dense<0.000000e+00> : vector<24x32xf32>
    %386 = tpu.matmul %272, %385, %cst_159 {dimension_numbers = #tpu.dot_dimension_numbers<[1], [0], [0], [1], [0, 0, 1, 1], [], []>} : vector<24x32xf32>, vector<32x32xf32>, vector<24x32xf32> -> vector<24x32xf32>
    %387 = arith.addf %384, %386 : vector<24x32xf32>
    %c1258 = arith.constant 1258 : index
    %c0_160 = arith.constant 0 : index
    %388 = vector.load %arg2[%c1258, %c0_160] : memref<1272x32xf32, #tpu.memory_space<vmem>>, vector<1x32xf32>
    %389 = vector.broadcast %388 : vector<1x32xf32> to vector<24x32xf32>
    %390 = arith.addf %387, %389 : vector<24x32xf32>
    %c768 = arith.constant 768 : index
    %c0_161 = arith.constant 0 : index
    %391 = vector.load %arg2[%c768, %c0_161] : memref<1272x32xf32, #tpu.memory_space<vmem>>, vector<32x32xf32>
    %c1259 = arith.constant 1259 : index
    %c0_162 = arith.constant 0 : index
    %392 = vector.load %arg2[%c1259, %c0_162] : memref<1272x32xf32, #tpu.memory_space<vmem>>, vector<1x32xf32>
    %393 = vector.broadcast %41 : vector<1x32xf32> to vector<4x32xf32>
    %394 = arith.mulf %374, %393 : vector<4x32xf32>
    %cst_163 = arith.constant dense<0.000000e+00> : vector<4x24xf32>
    %395 = tpu.matmul %394, %382, %cst_163 {dimension_numbers = #tpu.dot_dimension_numbers<[1], [1], [0], [0], [0, 0, 1, 0], [], []>} : vector<4x32xf32>, vector<24x32xf32>, vector<4x24xf32> -> vector<4x24xf32>
    %cst_164 = arith.constant 0.176776692 : f32
    %396 = vector.broadcast %cst_164 : f32 to vector<4x24xf32>
    %397 = arith.mulf %395, %396 : vector<4x24xf32>
    %398 = arith.addf %397, %15 : vector<4x24xf32>
    %cst_165 = arith.constant dense<0xFF800000> : vector<4xf32>
    %399 = vector.multi_reduction <maximumf>, %398, %cst_165 [1] : vector<4x24xf32> to vector<4xf32>
    %400 = vector.shape_cast %399 : vector<4xf32> to vector<4x1xf32>
    %401 = vector.broadcast %400 : vector<4x1xf32> to vector<4x24xf32>
    %402 = arith.subf %398, %401 : vector<4x24xf32>
    %403 = math.exp %402 : vector<4x24xf32>
    %cst_166 = arith.constant dense<0.000000e+00> : vector<4xf32>
    %404 = vector.multi_reduction <add>, %403, %cst_166 [1] : vector<4x24xf32> to vector<4xf32>
    %405 = vector.shape_cast %404 : vector<4xf32> to vector<4x1xf32>
    %406 = vector.broadcast %405 : vector<4x1xf32> to vector<4x24xf32>
    %407 = arith.divf %403, %406 : vector<4x24xf32>
    %408 = vector.broadcast %41 : vector<1x32xf32> to vector<24x32xf32>
    %409 = arith.mulf %390, %408 : vector<24x32xf32>
    %cst_167 = arith.constant dense<0.000000e+00> : vector<4x32xf32>
    %410 = tpu.matmul %407, %409, %cst_167 {dimension_numbers = #tpu.dot_dimension_numbers<[1], [0], [0], [1], [0, 0, 1, 1], [], []>} : vector<4x24xf32>, vector<24x32xf32>, vector<4x32xf32> -> vector<4x32xf32>
    %411 = arith.addf %374, %410 : vector<4x32xf32>
    %412 = vector.broadcast %42 : vector<1x32xf32> to vector<4x32xf32>
    %413 = arith.mulf %374, %412 : vector<4x32xf32>
    %cst_168 = arith.constant dense<0.000000e+00> : vector<4x24xf32>
    %414 = tpu.matmul %413, %382, %cst_168 {dimension_numbers = #tpu.dot_dimension_numbers<[1], [1], [0], [0], [0, 0, 1, 0], [], []>} : vector<4x32xf32>, vector<24x32xf32>, vector<4x24xf32> -> vector<4x24xf32>
    %cst_169 = arith.constant 0.176776692 : f32
    %415 = vector.broadcast %cst_169 : f32 to vector<4x24xf32>
    %416 = arith.mulf %414, %415 : vector<4x24xf32>
    %417 = arith.addf %416, %15 : vector<4x24xf32>
    %cst_170 = arith.constant dense<0xFF800000> : vector<4xf32>
    %418 = vector.multi_reduction <maximumf>, %417, %cst_170 [1] : vector<4x24xf32> to vector<4xf32>
    %419 = vector.shape_cast %418 : vector<4xf32> to vector<4x1xf32>
    %420 = vector.broadcast %419 : vector<4x1xf32> to vector<4x24xf32>
    %421 = arith.subf %417, %420 : vector<4x24xf32>
    %422 = math.exp %421 : vector<4x24xf32>
    %cst_171 = arith.constant dense<0.000000e+00> : vector<4xf32>
    %423 = vector.multi_reduction <add>, %422, %cst_171 [1] : vector<4x24xf32> to vector<4xf32>
    %424 = vector.shape_cast %423 : vector<4xf32> to vector<4x1xf32>
    %425 = vector.broadcast %424 : vector<4x1xf32> to vector<4x24xf32>
    %426 = arith.divf %422, %425 : vector<4x24xf32>
    %427 = vector.broadcast %42 : vector<1x32xf32> to vector<24x32xf32>
    %428 = arith.mulf %390, %427 : vector<24x32xf32>
    %cst_172 = arith.constant dense<0.000000e+00> : vector<4x32xf32>
    %429 = tpu.matmul %426, %428, %cst_172 {dimension_numbers = #tpu.dot_dimension_numbers<[1], [0], [0], [1], [0, 0, 1, 1], [], []>} : vector<4x24xf32>, vector<24x32xf32>, vector<4x32xf32> -> vector<4x32xf32>
    %430 = arith.addf %411, %429 : vector<4x32xf32>
    %431 = vector.broadcast %43 : vector<1x32xf32> to vector<4x32xf32>
    %432 = arith.mulf %374, %431 : vector<4x32xf32>
    %cst_173 = arith.constant dense<0.000000e+00> : vector<4x24xf32>
    %433 = tpu.matmul %432, %382, %cst_173 {dimension_numbers = #tpu.dot_dimension_numbers<[1], [1], [0], [0], [0, 0, 1, 0], [], []>} : vector<4x32xf32>, vector<24x32xf32>, vector<4x24xf32> -> vector<4x24xf32>
    %cst_174 = arith.constant 0.176776692 : f32
    %434 = vector.broadcast %cst_174 : f32 to vector<4x24xf32>
    %435 = arith.mulf %433, %434 : vector<4x24xf32>
    %436 = arith.addf %435, %15 : vector<4x24xf32>
    %cst_175 = arith.constant dense<0xFF800000> : vector<4xf32>
    %437 = vector.multi_reduction <maximumf>, %436, %cst_175 [1] : vector<4x24xf32> to vector<4xf32>
    %438 = vector.shape_cast %437 : vector<4xf32> to vector<4x1xf32>
    %439 = vector.broadcast %438 : vector<4x1xf32> to vector<4x24xf32>
    %440 = arith.subf %436, %439 : vector<4x24xf32>
    %441 = math.exp %440 : vector<4x24xf32>
    %cst_176 = arith.constant dense<0.000000e+00> : vector<4xf32>
    %442 = vector.multi_reduction <add>, %441, %cst_176 [1] : vector<4x24xf32> to vector<4xf32>
    %443 = vector.shape_cast %442 : vector<4xf32> to vector<4x1xf32>
    %444 = vector.broadcast %443 : vector<4x1xf32> to vector<4x24xf32>
    %445 = arith.divf %441, %444 : vector<4x24xf32>
    %446 = vector.broadcast %43 : vector<1x32xf32> to vector<24x32xf32>
    %447 = arith.mulf %390, %446 : vector<24x32xf32>
    %cst_177 = arith.constant dense<0.000000e+00> : vector<4x32xf32>
    %448 = tpu.matmul %445, %447, %cst_177 {dimension_numbers = #tpu.dot_dimension_numbers<[1], [0], [0], [1], [0, 0, 1, 1], [], []>} : vector<4x24xf32>, vector<24x32xf32>, vector<4x32xf32> -> vector<4x32xf32>
    %449 = arith.addf %430, %448 : vector<4x32xf32>
    %450 = vector.broadcast %44 : vector<1x32xf32> to vector<4x32xf32>
    %451 = arith.mulf %374, %450 : vector<4x32xf32>
    %cst_178 = arith.constant dense<0.000000e+00> : vector<4x24xf32>
    %452 = tpu.matmul %451, %382, %cst_178 {dimension_numbers = #tpu.dot_dimension_numbers<[1], [1], [0], [0], [0, 0, 1, 0], [], []>} : vector<4x32xf32>, vector<24x32xf32>, vector<4x24xf32> -> vector<4x24xf32>
    %cst_179 = arith.constant 0.176776692 : f32
    %453 = vector.broadcast %cst_179 : f32 to vector<4x24xf32>
    %454 = arith.mulf %452, %453 : vector<4x24xf32>
    %455 = arith.addf %454, %15 : vector<4x24xf32>
    %cst_180 = arith.constant dense<0xFF800000> : vector<4xf32>
    %456 = vector.multi_reduction <maximumf>, %455, %cst_180 [1] : vector<4x24xf32> to vector<4xf32>
    %457 = vector.shape_cast %456 : vector<4xf32> to vector<4x1xf32>
    %458 = vector.broadcast %457 : vector<4x1xf32> to vector<4x24xf32>
    %459 = arith.subf %455, %458 : vector<4x24xf32>
    %460 = math.exp %459 : vector<4x24xf32>
    %cst_181 = arith.constant dense<0.000000e+00> : vector<4xf32>
    %461 = vector.multi_reduction <add>, %460, %cst_181 [1] : vector<4x24xf32> to vector<4xf32>
    %462 = vector.shape_cast %461 : vector<4xf32> to vector<4x1xf32>
    %463 = vector.broadcast %462 : vector<4x1xf32> to vector<4x24xf32>
    %464 = arith.divf %460, %463 : vector<4x24xf32>
    %465 = vector.broadcast %44 : vector<1x32xf32> to vector<24x32xf32>
    %466 = arith.mulf %390, %465 : vector<24x32xf32>
    %cst_182 = arith.constant dense<0.000000e+00> : vector<4x32xf32>
    %467 = tpu.matmul %464, %466, %cst_182 {dimension_numbers = #tpu.dot_dimension_numbers<[1], [0], [0], [1], [0, 0, 1, 1], [], []>} : vector<4x24xf32>, vector<24x32xf32>, vector<4x32xf32> -> vector<4x32xf32>
    %468 = arith.addf %449, %467 : vector<4x32xf32>
    %cst_183 = arith.constant dense<0.000000e+00> : vector<4x32xf32>
    %469 = tpu.matmul %468, %391, %cst_183 {dimension_numbers = #tpu.dot_dimension_numbers<[1], [0], [0], [1], [0, 0, 1, 1], [], []>} : vector<4x32xf32>, vector<32x32xf32>, vector<4x32xf32> -> vector<4x32xf32>
    %470 = vector.broadcast %392 : vector<1x32xf32> to vector<4x32xf32>
    %471 = arith.addf %469, %470 : vector<4x32xf32>
    %cst_184 = arith.constant 0.000000e+00 : f32
    %472 = vector.broadcast %cst_184 : f32 to vector<4x32xf32>
    %473 = arith.maximumf %471, %472 : vector<4x32xf32>
    %474 = arith.addf %468, %473 : vector<4x32xf32>
    %c800 = arith.constant 800 : index
    %c0_185 = arith.constant 0 : index
    %475 = vector.load %arg2[%c800, %c0_185] : memref<1272x32xf32, #tpu.memory_space<vmem>>, vector<32x32xf32>
    %cst_186 = arith.constant dense<0.000000e+00> : vector<8x32xf32>
    %476 = tpu.matmul %256, %475, %cst_186 {dimension_numbers = #tpu.dot_dimension_numbers<[1], [0], [0], [1], [0, 0, 1, 1], [], []>} : vector<8x32xf32>, vector<32x32xf32>, vector<8x32xf32> -> vector<8x32xf32>
    %c1260 = arith.constant 1260 : index
    %c0_187 = arith.constant 0 : index
    %477 = vector.load %arg2[%c1260, %c0_187] : memref<1272x32xf32, #tpu.memory_space<vmem>>, vector<1x32xf32>
    %478 = vector.broadcast %477 : vector<1x32xf32> to vector<8x32xf32>
    %479 = arith.addf %476, %478 : vector<8x32xf32>
    %c832 = arith.constant 832 : index
    %c0_188 = arith.constant 0 : index
    %480 = vector.load %arg2[%c832, %c0_188] : memref<1272x32xf32, #tpu.memory_space<vmem>>, vector<32x32xf32>
    %cst_189 = arith.constant dense<0.000000e+00> : vector<24x32xf32>
    %481 = tpu.matmul %369, %480, %cst_189 {dimension_numbers = #tpu.dot_dimension_numbers<[1], [0], [0], [1], [0, 0, 1, 1], [], []>} : vector<24x32xf32>, vector<32x32xf32>, vector<24x32xf32> -> vector<24x32xf32>
    %c864 = arith.constant 864 : index
    %c0_190 = arith.constant 0 : index
    %482 = vector.load %arg2[%c864, %c0_190] : memref<1272x32xf32, #tpu.memory_space<vmem>>, vector<32x32xf32>
    %cst_191 = arith.constant dense<0.000000e+00> : vector<24x32xf32>
    %483 = tpu.matmul %272, %482, %cst_191 {dimension_numbers = #tpu.dot_dimension_numbers<[1], [0], [0], [1], [0, 0, 1, 1], [], []>} : vector<24x32xf32>, vector<32x32xf32>, vector<24x32xf32> -> vector<24x32xf32>
    %484 = arith.addf %481, %483 : vector<24x32xf32>
    %c1261 = arith.constant 1261 : index
    %c0_192 = arith.constant 0 : index
    %485 = vector.load %arg2[%c1261, %c0_192] : memref<1272x32xf32, #tpu.memory_space<vmem>>, vector<1x32xf32>
    %486 = vector.broadcast %485 : vector<1x32xf32> to vector<24x32xf32>
    %487 = arith.addf %484, %486 : vector<24x32xf32>
    %c896 = arith.constant 896 : index
    %c0_193 = arith.constant 0 : index
    %488 = vector.load %arg2[%c896, %c0_193] : memref<1272x32xf32, #tpu.memory_space<vmem>>, vector<32x32xf32>
    %cst_194 = arith.constant dense<0.000000e+00> : vector<24x32xf32>
    %489 = tpu.matmul %369, %488, %cst_194 {dimension_numbers = #tpu.dot_dimension_numbers<[1], [0], [0], [1], [0, 0, 1, 1], [], []>} : vector<24x32xf32>, vector<32x32xf32>, vector<24x32xf32> -> vector<24x32xf32>
    %c928 = arith.constant 928 : index
    %c0_195 = arith.constant 0 : index
    %490 = vector.load %arg2[%c928, %c0_195] : memref<1272x32xf32, #tpu.memory_space<vmem>>, vector<32x32xf32>
    %cst_196 = arith.constant dense<0.000000e+00> : vector<24x32xf32>
    %491 = tpu.matmul %272, %490, %cst_196 {dimension_numbers = #tpu.dot_dimension_numbers<[1], [0], [0], [1], [0, 0, 1, 1], [], []>} : vector<24x32xf32>, vector<32x32xf32>, vector<24x32xf32> -> vector<24x32xf32>
    %492 = arith.addf %489, %491 : vector<24x32xf32>
    %c1262 = arith.constant 1262 : index
    %c0_197 = arith.constant 0 : index
    %493 = vector.load %arg2[%c1262, %c0_197] : memref<1272x32xf32, #tpu.memory_space<vmem>>, vector<1x32xf32>
    %494 = vector.broadcast %493 : vector<1x32xf32> to vector<24x32xf32>
    %495 = arith.addf %492, %494 : vector<24x32xf32>
    %c960 = arith.constant 960 : index
    %c0_198 = arith.constant 0 : index
    %496 = vector.load %arg2[%c960, %c0_198] : memref<1272x32xf32, #tpu.memory_space<vmem>>, vector<32x32xf32>
    %c1263 = arith.constant 1263 : index
    %c0_199 = arith.constant 0 : index
    %497 = vector.load %arg2[%c1263, %c0_199] : memref<1272x32xf32, #tpu.memory_space<vmem>>, vector<1x32xf32>
    %498 = vector.broadcast %41 : vector<1x32xf32> to vector<8x32xf32>
    %499 = arith.mulf %479, %498 : vector<8x32xf32>
    %cst_200 = arith.constant dense<0.000000e+00> : vector<8x24xf32>
    %500 = tpu.matmul %499, %487, %cst_200 {dimension_numbers = #tpu.dot_dimension_numbers<[1], [1], [0], [0], [0, 0, 1, 0], [], []>} : vector<8x32xf32>, vector<24x32xf32>, vector<8x24xf32> -> vector<8x24xf32>
    %cst_201 = arith.constant 0.176776692 : f32
    %501 = vector.broadcast %cst_201 : f32 to vector<8x24xf32>
    %502 = arith.mulf %500, %501 : vector<8x24xf32>
    %503 = arith.addf %502, %13 : vector<8x24xf32>
    %cst_202 = arith.constant dense<0xFF800000> : vector<8xf32>
    %504 = vector.multi_reduction <maximumf>, %503, %cst_202 [1] : vector<8x24xf32> to vector<8xf32>
    %505 = vector.shape_cast %504 : vector<8xf32> to vector<8x1xf32>
    %506 = vector.broadcast %505 : vector<8x1xf32> to vector<8x24xf32>
    %507 = arith.subf %503, %506 : vector<8x24xf32>
    %508 = math.exp %507 : vector<8x24xf32>
    %cst_203 = arith.constant dense<0.000000e+00> : vector<8xf32>
    %509 = vector.multi_reduction <add>, %508, %cst_203 [1] : vector<8x24xf32> to vector<8xf32>
    %510 = vector.shape_cast %509 : vector<8xf32> to vector<8x1xf32>
    %511 = vector.broadcast %510 : vector<8x1xf32> to vector<8x24xf32>
    %512 = arith.divf %508, %511 : vector<8x24xf32>
    %513 = vector.broadcast %41 : vector<1x32xf32> to vector<24x32xf32>
    %514 = arith.mulf %495, %513 : vector<24x32xf32>
    %cst_204 = arith.constant dense<0.000000e+00> : vector<8x32xf32>
    %515 = tpu.matmul %512, %514, %cst_204 {dimension_numbers = #tpu.dot_dimension_numbers<[1], [0], [0], [1], [0, 0, 1, 1], [], []>} : vector<8x24xf32>, vector<24x32xf32>, vector<8x32xf32> -> vector<8x32xf32>
    %516 = arith.addf %479, %515 : vector<8x32xf32>
    %517 = vector.broadcast %42 : vector<1x32xf32> to vector<8x32xf32>
    %518 = arith.mulf %479, %517 : vector<8x32xf32>
    %cst_205 = arith.constant dense<0.000000e+00> : vector<8x24xf32>
    %519 = tpu.matmul %518, %487, %cst_205 {dimension_numbers = #tpu.dot_dimension_numbers<[1], [1], [0], [0], [0, 0, 1, 0], [], []>} : vector<8x32xf32>, vector<24x32xf32>, vector<8x24xf32> -> vector<8x24xf32>
    %cst_206 = arith.constant 0.176776692 : f32
    %520 = vector.broadcast %cst_206 : f32 to vector<8x24xf32>
    %521 = arith.mulf %519, %520 : vector<8x24xf32>
    %522 = arith.addf %521, %13 : vector<8x24xf32>
    %cst_207 = arith.constant dense<0xFF800000> : vector<8xf32>
    %523 = vector.multi_reduction <maximumf>, %522, %cst_207 [1] : vector<8x24xf32> to vector<8xf32>
    %524 = vector.shape_cast %523 : vector<8xf32> to vector<8x1xf32>
    %525 = vector.broadcast %524 : vector<8x1xf32> to vector<8x24xf32>
    %526 = arith.subf %522, %525 : vector<8x24xf32>
    %527 = math.exp %526 : vector<8x24xf32>
    %cst_208 = arith.constant dense<0.000000e+00> : vector<8xf32>
    %528 = vector.multi_reduction <add>, %527, %cst_208 [1] : vector<8x24xf32> to vector<8xf32>
    %529 = vector.shape_cast %528 : vector<8xf32> to vector<8x1xf32>
    %530 = vector.broadcast %529 : vector<8x1xf32> to vector<8x24xf32>
    %531 = arith.divf %527, %530 : vector<8x24xf32>
    %532 = vector.broadcast %42 : vector<1x32xf32> to vector<24x32xf32>
    %533 = arith.mulf %495, %532 : vector<24x32xf32>
    %cst_209 = arith.constant dense<0.000000e+00> : vector<8x32xf32>
    %534 = tpu.matmul %531, %533, %cst_209 {dimension_numbers = #tpu.dot_dimension_numbers<[1], [0], [0], [1], [0, 0, 1, 1], [], []>} : vector<8x24xf32>, vector<24x32xf32>, vector<8x32xf32> -> vector<8x32xf32>
    %535 = arith.addf %516, %534 : vector<8x32xf32>
    %536 = vector.broadcast %43 : vector<1x32xf32> to vector<8x32xf32>
    %537 = arith.mulf %479, %536 : vector<8x32xf32>
    %cst_210 = arith.constant dense<0.000000e+00> : vector<8x24xf32>
    %538 = tpu.matmul %537, %487, %cst_210 {dimension_numbers = #tpu.dot_dimension_numbers<[1], [1], [0], [0], [0, 0, 1, 0], [], []>} : vector<8x32xf32>, vector<24x32xf32>, vector<8x24xf32> -> vector<8x24xf32>
    %cst_211 = arith.constant 0.176776692 : f32
    %539 = vector.broadcast %cst_211 : f32 to vector<8x24xf32>
    %540 = arith.mulf %538, %539 : vector<8x24xf32>
    %541 = arith.addf %540, %13 : vector<8x24xf32>
    %cst_212 = arith.constant dense<0xFF800000> : vector<8xf32>
    %542 = vector.multi_reduction <maximumf>, %541, %cst_212 [1] : vector<8x24xf32> to vector<8xf32>
    %543 = vector.shape_cast %542 : vector<8xf32> to vector<8x1xf32>
    %544 = vector.broadcast %543 : vector<8x1xf32> to vector<8x24xf32>
    %545 = arith.subf %541, %544 : vector<8x24xf32>
    %546 = math.exp %545 : vector<8x24xf32>
    %cst_213 = arith.constant dense<0.000000e+00> : vector<8xf32>
    %547 = vector.multi_reduction <add>, %546, %cst_213 [1] : vector<8x24xf32> to vector<8xf32>
    %548 = vector.shape_cast %547 : vector<8xf32> to vector<8x1xf32>
    %549 = vector.broadcast %548 : vector<8x1xf32> to vector<8x24xf32>
    %550 = arith.divf %546, %549 : vector<8x24xf32>
    %551 = vector.broadcast %43 : vector<1x32xf32> to vector<24x32xf32>
    %552 = arith.mulf %495, %551 : vector<24x32xf32>
    %cst_214 = arith.constant dense<0.000000e+00> : vector<8x32xf32>
    %553 = tpu.matmul %550, %552, %cst_214 {dimension_numbers = #tpu.dot_dimension_numbers<[1], [0], [0], [1], [0, 0, 1, 1], [], []>} : vector<8x24xf32>, vector<24x32xf32>, vector<8x32xf32> -> vector<8x32xf32>
    %554 = arith.addf %535, %553 : vector<8x32xf32>
    %555 = vector.broadcast %44 : vector<1x32xf32> to vector<8x32xf32>
    %556 = arith.mulf %479, %555 : vector<8x32xf32>
    %cst_215 = arith.constant dense<0.000000e+00> : vector<8x24xf32>
    %557 = tpu.matmul %556, %487, %cst_215 {dimension_numbers = #tpu.dot_dimension_numbers<[1], [1], [0], [0], [0, 0, 1, 0], [], []>} : vector<8x32xf32>, vector<24x32xf32>, vector<8x24xf32> -> vector<8x24xf32>
    %cst_216 = arith.constant 0.176776692 : f32
    %558 = vector.broadcast %cst_216 : f32 to vector<8x24xf32>
    %559 = arith.mulf %557, %558 : vector<8x24xf32>
    %560 = arith.addf %559, %13 : vector<8x24xf32>
    %cst_217 = arith.constant dense<0xFF800000> : vector<8xf32>
    %561 = vector.multi_reduction <maximumf>, %560, %cst_217 [1] : vector<8x24xf32> to vector<8xf32>
    %562 = vector.shape_cast %561 : vector<8xf32> to vector<8x1xf32>
    %563 = vector.broadcast %562 : vector<8x1xf32> to vector<8x24xf32>
    %564 = arith.subf %560, %563 : vector<8x24xf32>
    %565 = math.exp %564 : vector<8x24xf32>
    %cst_218 = arith.constant dense<0.000000e+00> : vector<8xf32>
    %566 = vector.multi_reduction <add>, %565, %cst_218 [1] : vector<8x24xf32> to vector<8xf32>
    %567 = vector.shape_cast %566 : vector<8xf32> to vector<8x1xf32>
    %568 = vector.broadcast %567 : vector<8x1xf32> to vector<8x24xf32>
    %569 = arith.divf %565, %568 : vector<8x24xf32>
    %570 = vector.broadcast %44 : vector<1x32xf32> to vector<24x32xf32>
    %571 = arith.mulf %495, %570 : vector<24x32xf32>
    %cst_219 = arith.constant dense<0.000000e+00> : vector<8x32xf32>
    %572 = tpu.matmul %569, %571, %cst_219 {dimension_numbers = #tpu.dot_dimension_numbers<[1], [0], [0], [1], [0, 0, 1, 1], [], []>} : vector<8x24xf32>, vector<24x32xf32>, vector<8x32xf32> -> vector<8x32xf32>
    %573 = arith.addf %554, %572 : vector<8x32xf32>
    %cst_220 = arith.constant dense<0.000000e+00> : vector<8x32xf32>
    %574 = tpu.matmul %573, %496, %cst_220 {dimension_numbers = #tpu.dot_dimension_numbers<[1], [0], [0], [1], [0, 0, 1, 1], [], []>} : vector<8x32xf32>, vector<32x32xf32>, vector<8x32xf32> -> vector<8x32xf32>
    %575 = vector.broadcast %497 : vector<1x32xf32> to vector<8x32xf32>
    %576 = arith.addf %574, %575 : vector<8x32xf32>
    %cst_221 = arith.constant 0.000000e+00 : f32
    %577 = vector.broadcast %cst_221 : f32 to vector<8x32xf32>
    %578 = arith.maximumf %576, %577 : vector<8x32xf32>
    %579 = arith.addf %573, %578 : vector<8x32xf32>
    %c992 = arith.constant 992 : index
    %c0_222 = arith.constant 0 : index
    %580 = vector.load %arg2[%c992, %c0_222] : memref<1272x32xf32, #tpu.memory_space<vmem>>, vector<32x32xf32>
    %cst_223 = arith.constant dense<0.000000e+00> : vector<24x32xf32>
    %581 = tpu.matmul %272, %580, %cst_223 {dimension_numbers = #tpu.dot_dimension_numbers<[1], [0], [0], [1], [0, 0, 1, 1], [], []>} : vector<24x32xf32>, vector<32x32xf32>, vector<24x32xf32> -> vector<24x32xf32>
    %582 = arith.addf %272, %581 : vector<24x32xf32>
    %c1024 = arith.constant 1024 : index
    %c0_224 = arith.constant 0 : index
    %583 = vector.load %arg2[%c1024, %c0_224] : memref<1272x32xf32, #tpu.memory_space<vmem>>, vector<32x32xf32>
    %cst_225 = arith.constant dense<0.000000e+00> : vector<24x32xf32>
    %584 = tpu.matmul %368, %583, %cst_225 {dimension_numbers = #tpu.dot_dimension_numbers<[1], [0], [0], [1], [0, 0, 1, 1], [], []>} : vector<24x32xf32>, vector<32x32xf32>, vector<24x32xf32> -> vector<24x32xf32>
    %585 = arith.addf %582, %584 : vector<24x32xf32>
    %c1056 = arith.constant 1056 : index
    %c0_226 = arith.constant 0 : index
    %586 = vector.load %arg2[%c1056, %c0_226] : memref<1272x32xf32, #tpu.memory_space<vmem>>, vector<32x32xf32>
    %cst_227 = arith.constant dense<0.000000e+00> : vector<24x32xf32>
    %587 = tpu.matmul %369, %586, %cst_227 {dimension_numbers = #tpu.dot_dimension_numbers<[1], [0], [0], [1], [0, 0, 1, 1], [], []>} : vector<24x32xf32>, vector<32x32xf32>, vector<24x32xf32> -> vector<24x32xf32>
    %588 = arith.addf %585, %587 : vector<24x32xf32>
    %c1264 = arith.constant 1264 : index
    %c0_228 = arith.constant 0 : index
    %589 = vector.load %arg2[%c1264, %c0_228] : memref<1272x32xf32, #tpu.memory_space<vmem>>, vector<1x32xf32>
    %590 = vector.broadcast %589 : vector<1x32xf32> to vector<24x32xf32>
    %591 = arith.addf %588, %590 : vector<24x32xf32>
    %cst_229 = arith.constant 0.000000e+00 : f32
    %592 = vector.broadcast %cst_229 : f32 to vector<24x32xf32>
    %593 = arith.maximumf %591, %592 : vector<24x32xf32>
    %594 = vector.broadcast %5 : vector<24x1xf32> to vector<24x32xf32>
    %595 = arith.mulf %593, %594 : vector<24x32xf32>
    %c1088 = arith.constant 1088 : index
    %c0_230 = arith.constant 0 : index
    %596 = vector.load %arg2[%c1088, %c0_230] : memref<1272x32xf32, #tpu.memory_space<vmem>>, vector<32x32xf32>
    %cst_231 = arith.constant dense<0.000000e+00> : vector<4x32xf32>
    %597 = tpu.matmul %474, %596, %cst_231 {dimension_numbers = #tpu.dot_dimension_numbers<[1], [0], [0], [1], [0, 0, 1, 1], [], []>} : vector<4x32xf32>, vector<32x32xf32>, vector<4x32xf32> -> vector<4x32xf32>
    %c1265 = arith.constant 1265 : index
    %c0_232 = arith.constant 0 : index
    %598 = vector.load %arg2[%c1265, %c0_232] : memref<1272x32xf32, #tpu.memory_space<vmem>>, vector<1x32xf32>
    %599 = vector.broadcast %598 : vector<1x32xf32> to vector<4x32xf32>
    %600 = arith.addf %597, %599 : vector<4x32xf32>
    %c1120 = arith.constant 1120 : index
    %c0_233 = arith.constant 0 : index
    %601 = vector.load %arg2[%c1120, %c0_233] : memref<1272x32xf32, #tpu.memory_space<vmem>>, vector<32x32xf32>
    %cst_234 = arith.constant dense<0.000000e+00> : vector<4x32xf32>
    %602 = tpu.matmul %474, %601, %cst_234 {dimension_numbers = #tpu.dot_dimension_numbers<[1], [0], [0], [1], [0, 0, 1, 1], [], []>} : vector<4x32xf32>, vector<32x32xf32>, vector<4x32xf32> -> vector<4x32xf32>
    %c1266 = arith.constant 1266 : index
    %c0_235 = arith.constant 0 : index
    %603 = vector.load %arg2[%c1266, %c0_235] : memref<1272x32xf32, #tpu.memory_space<vmem>>, vector<1x32xf32>
    %604 = vector.broadcast %603 : vector<1x32xf32> to vector<4x32xf32>
    %605 = arith.addf %602, %604 : vector<4x32xf32>
    %c1152 = arith.constant 1152 : index
    %c0_236 = arith.constant 0 : index
    %606 = vector.load %arg2[%c1152, %c0_236] : memref<1272x32xf32, #tpu.memory_space<vmem>>, vector<32x32xf32>
    %cst_237 = arith.constant dense<0.000000e+00> : vector<4x32xf32>
    %607 = tpu.matmul %474, %606, %cst_237 {dimension_numbers = #tpu.dot_dimension_numbers<[1], [0], [0], [1], [0, 0, 1, 1], [], []>} : vector<4x32xf32>, vector<32x32xf32>, vector<4x32xf32> -> vector<4x32xf32>
    %c1267 = arith.constant 1267 : index
    %c0_238 = arith.constant 0 : index
    %608 = vector.load %arg2[%c1267, %c0_238] : memref<1272x32xf32, #tpu.memory_space<vmem>>, vector<1x32xf32>
    %609 = vector.broadcast %608 : vector<1x32xf32> to vector<4x32xf32>
    %610 = arith.addf %607, %609 : vector<4x32xf32>
    %c1184 = arith.constant 1184 : index
    %c0_239 = arith.constant 0 : index
    %611 = vector.load %arg2[%c1184, %c0_239] : memref<1272x32xf32, #tpu.memory_space<vmem>>, vector<32x32xf32>
    %c1268 = arith.constant 1268 : index
    %c0_240 = arith.constant 0 : index
    %612 = vector.load %arg2[%c1268, %c0_240] : memref<1272x32xf32, #tpu.memory_space<vmem>>, vector<1x32xf32>
    %613 = vector.broadcast %41 : vector<1x32xf32> to vector<4x32xf32>
    %614 = arith.mulf %600, %613 : vector<4x32xf32>
    %cst_241 = arith.constant dense<0.000000e+00> : vector<4x4xf32>
    %615 = tpu.matmul %614, %605, %cst_241 {dimension_numbers = #tpu.dot_dimension_numbers<[1], [1], [0], [0], [0, 0, 1, 0], [], []>} : vector<4x32xf32>, vector<4x32xf32>, vector<4x4xf32> -> vector<4x4xf32>
    %cst_242 = arith.constant 0.176776692 : f32
    %616 = vector.broadcast %cst_242 : f32 to vector<4x4xf32>
    %617 = arith.mulf %615, %616 : vector<4x4xf32>
    %cst_243 = arith.constant dense<0xFF800000> : vector<4xf32>
    %618 = vector.multi_reduction <maximumf>, %617, %cst_243 [1] : vector<4x4xf32> to vector<4xf32>
    %619 = vector.shape_cast %618 : vector<4xf32> to vector<4x1xf32>
    %620 = vector.broadcast %619 : vector<4x1xf32> to vector<4x4xf32>
    %621 = arith.subf %617, %620 : vector<4x4xf32>
    %622 = math.exp %621 : vector<4x4xf32>
    %cst_244 = arith.constant dense<0.000000e+00> : vector<4xf32>
    %623 = vector.multi_reduction <add>, %622, %cst_244 [1] : vector<4x4xf32> to vector<4xf32>
    %624 = vector.shape_cast %623 : vector<4xf32> to vector<4x1xf32>
    %625 = vector.broadcast %624 : vector<4x1xf32> to vector<4x4xf32>
    %626 = arith.divf %622, %625 : vector<4x4xf32>
    %627 = vector.broadcast %41 : vector<1x32xf32> to vector<4x32xf32>
    %628 = arith.mulf %610, %627 : vector<4x32xf32>
    %cst_245 = arith.constant dense<0.000000e+00> : vector<4x32xf32>
    %629 = tpu.matmul %626, %628, %cst_245 {dimension_numbers = #tpu.dot_dimension_numbers<[1], [0], [0], [1], [0, 0, 1, 1], [], []>} : vector<4x4xf32>, vector<4x32xf32>, vector<4x32xf32> -> vector<4x32xf32>
    %630 = arith.addf %600, %629 : vector<4x32xf32>
    %631 = vector.broadcast %42 : vector<1x32xf32> to vector<4x32xf32>
    %632 = arith.mulf %600, %631 : vector<4x32xf32>
    %cst_246 = arith.constant dense<0.000000e+00> : vector<4x4xf32>
    %633 = tpu.matmul %632, %605, %cst_246 {dimension_numbers = #tpu.dot_dimension_numbers<[1], [1], [0], [0], [0, 0, 1, 0], [], []>} : vector<4x32xf32>, vector<4x32xf32>, vector<4x4xf32> -> vector<4x4xf32>
    %cst_247 = arith.constant 0.176776692 : f32
    %634 = vector.broadcast %cst_247 : f32 to vector<4x4xf32>
    %635 = arith.mulf %633, %634 : vector<4x4xf32>
    %cst_248 = arith.constant dense<0xFF800000> : vector<4xf32>
    %636 = vector.multi_reduction <maximumf>, %635, %cst_248 [1] : vector<4x4xf32> to vector<4xf32>
    %637 = vector.shape_cast %636 : vector<4xf32> to vector<4x1xf32>
    %638 = vector.broadcast %637 : vector<4x1xf32> to vector<4x4xf32>
    %639 = arith.subf %635, %638 : vector<4x4xf32>
    %640 = math.exp %639 : vector<4x4xf32>
    %cst_249 = arith.constant dense<0.000000e+00> : vector<4xf32>
    %641 = vector.multi_reduction <add>, %640, %cst_249 [1] : vector<4x4xf32> to vector<4xf32>
    %642 = vector.shape_cast %641 : vector<4xf32> to vector<4x1xf32>
    %643 = vector.broadcast %642 : vector<4x1xf32> to vector<4x4xf32>
    %644 = arith.divf %640, %643 : vector<4x4xf32>
    %645 = vector.broadcast %42 : vector<1x32xf32> to vector<4x32xf32>
    %646 = arith.mulf %610, %645 : vector<4x32xf32>
    %cst_250 = arith.constant dense<0.000000e+00> : vector<4x32xf32>
    %647 = tpu.matmul %644, %646, %cst_250 {dimension_numbers = #tpu.dot_dimension_numbers<[1], [0], [0], [1], [0, 0, 1, 1], [], []>} : vector<4x4xf32>, vector<4x32xf32>, vector<4x32xf32> -> vector<4x32xf32>
    %648 = arith.addf %630, %647 : vector<4x32xf32>
    %649 = vector.broadcast %43 : vector<1x32xf32> to vector<4x32xf32>
    %650 = arith.mulf %600, %649 : vector<4x32xf32>
    %cst_251 = arith.constant dense<0.000000e+00> : vector<4x4xf32>
    %651 = tpu.matmul %650, %605, %cst_251 {dimension_numbers = #tpu.dot_dimension_numbers<[1], [1], [0], [0], [0, 0, 1, 0], [], []>} : vector<4x32xf32>, vector<4x32xf32>, vector<4x4xf32> -> vector<4x4xf32>
    %cst_252 = arith.constant 0.176776692 : f32
    %652 = vector.broadcast %cst_252 : f32 to vector<4x4xf32>
    %653 = arith.mulf %651, %652 : vector<4x4xf32>
    %cst_253 = arith.constant dense<0xFF800000> : vector<4xf32>
    %654 = vector.multi_reduction <maximumf>, %653, %cst_253 [1] : vector<4x4xf32> to vector<4xf32>
    %655 = vector.shape_cast %654 : vector<4xf32> to vector<4x1xf32>
    %656 = vector.broadcast %655 : vector<4x1xf32> to vector<4x4xf32>
    %657 = arith.subf %653, %656 : vector<4x4xf32>
    %658 = math.exp %657 : vector<4x4xf32>
    %cst_254 = arith.constant dense<0.000000e+00> : vector<4xf32>
    %659 = vector.multi_reduction <add>, %658, %cst_254 [1] : vector<4x4xf32> to vector<4xf32>
    %660 = vector.shape_cast %659 : vector<4xf32> to vector<4x1xf32>
    %661 = vector.broadcast %660 : vector<4x1xf32> to vector<4x4xf32>
    %662 = arith.divf %658, %661 : vector<4x4xf32>
    %663 = vector.broadcast %43 : vector<1x32xf32> to vector<4x32xf32>
    %664 = arith.mulf %610, %663 : vector<4x32xf32>
    %cst_255 = arith.constant dense<0.000000e+00> : vector<4x32xf32>
    %665 = tpu.matmul %662, %664, %cst_255 {dimension_numbers = #tpu.dot_dimension_numbers<[1], [0], [0], [1], [0, 0, 1, 1], [], []>} : vector<4x4xf32>, vector<4x32xf32>, vector<4x32xf32> -> vector<4x32xf32>
    %666 = arith.addf %648, %665 : vector<4x32xf32>
    %667 = vector.broadcast %44 : vector<1x32xf32> to vector<4x32xf32>
    %668 = arith.mulf %600, %667 : vector<4x32xf32>
    %cst_256 = arith.constant dense<0.000000e+00> : vector<4x4xf32>
    %669 = tpu.matmul %668, %605, %cst_256 {dimension_numbers = #tpu.dot_dimension_numbers<[1], [1], [0], [0], [0, 0, 1, 0], [], []>} : vector<4x32xf32>, vector<4x32xf32>, vector<4x4xf32> -> vector<4x4xf32>
    %cst_257 = arith.constant 0.176776692 : f32
    %670 = vector.broadcast %cst_257 : f32 to vector<4x4xf32>
    %671 = arith.mulf %669, %670 : vector<4x4xf32>
    %cst_258 = arith.constant dense<0xFF800000> : vector<4xf32>
    %672 = vector.multi_reduction <maximumf>, %671, %cst_258 [1] : vector<4x4xf32> to vector<4xf32>
    %673 = vector.shape_cast %672 : vector<4xf32> to vector<4x1xf32>
    %674 = vector.broadcast %673 : vector<4x1xf32> to vector<4x4xf32>
    %675 = arith.subf %671, %674 : vector<4x4xf32>
    %676 = math.exp %675 : vector<4x4xf32>
    %cst_259 = arith.constant dense<0.000000e+00> : vector<4xf32>
    %677 = vector.multi_reduction <add>, %676, %cst_259 [1] : vector<4x4xf32> to vector<4xf32>
    %678 = vector.shape_cast %677 : vector<4xf32> to vector<4x1xf32>
    %679 = vector.broadcast %678 : vector<4x1xf32> to vector<4x4xf32>
    %680 = arith.divf %676, %679 : vector<4x4xf32>
    %681 = vector.broadcast %44 : vector<1x32xf32> to vector<4x32xf32>
    %682 = arith.mulf %610, %681 : vector<4x32xf32>
    %cst_260 = arith.constant dense<0.000000e+00> : vector<4x32xf32>
    %683 = tpu.matmul %680, %682, %cst_260 {dimension_numbers = #tpu.dot_dimension_numbers<[1], [0], [0], [1], [0, 0, 1, 1], [], []>} : vector<4x4xf32>, vector<4x32xf32>, vector<4x32xf32> -> vector<4x32xf32>
    %684 = arith.addf %666, %683 : vector<4x32xf32>
    %cst_261 = arith.constant dense<0.000000e+00> : vector<4x32xf32>
    %685 = tpu.matmul %684, %611, %cst_261 {dimension_numbers = #tpu.dot_dimension_numbers<[1], [0], [0], [1], [0, 0, 1, 1], [], []>} : vector<4x32xf32>, vector<32x32xf32>, vector<4x32xf32> -> vector<4x32xf32>
    %686 = vector.broadcast %612 : vector<1x32xf32> to vector<4x32xf32>
    %687 = arith.addf %685, %686 : vector<4x32xf32>
    %cst_262 = arith.constant 0.000000e+00 : f32
    %688 = vector.broadcast %cst_262 : f32 to vector<4x32xf32>
    %689 = arith.maximumf %687, %688 : vector<4x32xf32>
    %690 = arith.addf %684, %689 : vector<4x32xf32>
    %cst_263 = arith.constant dense<0.000000e+00> : vector<24x32xf32>
    %691 = tpu.matmul %7, %579, %cst_263 {dimension_numbers = #tpu.dot_dimension_numbers<[1], [0], [0], [1], [0, 0, 1, 1], [], []>} : vector<24x8xf32>, vector<8x32xf32>, vector<24x32xf32> -> vector<24x32xf32>
    %cst_264 = arith.constant dense<0.000000e+00> : vector<24x32xf32>
    %692 = tpu.matmul %9, %690, %cst_264 {dimension_numbers = #tpu.dot_dimension_numbers<[1], [0], [0], [1], [0, 0, 1, 1], [], []>} : vector<24x4xf32>, vector<4x32xf32>, vector<24x32xf32> -> vector<24x32xf32>
    %c1221 = arith.constant 1221 : index
    %c0_265 = arith.constant 0 : index
    %693 = vector.load %arg2[%c1221, %c0_265] : memref<1272x32xf32, #tpu.memory_space<vmem>>, vector<1x32xf32>
    %cst_266 = arith.constant dense<0.000000e+00> : vector<1x24xf32>
    %694 = tpu.matmul %693, %595, %cst_266 {dimension_numbers = #tpu.dot_dimension_numbers<[1], [1], [0], [0], [0, 0, 1, 0], [], []>} : vector<1x32xf32>, vector<24x32xf32>, vector<1x24xf32> -> vector<1x24xf32>
    %c1222 = arith.constant 1222 : index
    %c0_267 = arith.constant 0 : index
    %695 = vector.load %arg2[%c1222, %c0_267] : memref<1272x32xf32, #tpu.memory_space<vmem>>, vector<1x32xf32>
    %cst_268 = arith.constant dense<0.000000e+00> : vector<1x24xf32>
    %696 = tpu.matmul %695, %691, %cst_268 {dimension_numbers = #tpu.dot_dimension_numbers<[1], [1], [0], [0], [0, 0, 1, 0], [], []>} : vector<1x32xf32>, vector<24x32xf32>, vector<1x24xf32> -> vector<1x24xf32>
    %697 = arith.addf %694, %696 : vector<1x24xf32>
    %c1223 = arith.constant 1223 : index
    %c0_269 = arith.constant 0 : index
    %698 = vector.load %arg2[%c1223, %c0_269] : memref<1272x32xf32, #tpu.memory_space<vmem>>, vector<1x32xf32>
    %cst_270 = arith.constant dense<0.000000e+00> : vector<1x24xf32>
    %699 = tpu.matmul %698, %692, %cst_270 {dimension_numbers = #tpu.dot_dimension_numbers<[1], [1], [0], [0], [0, 0, 1, 0], [], []>} : vector<1x32xf32>, vector<24x32xf32>, vector<1x24xf32> -> vector<1x24xf32>
    %700 = arith.addf %697, %699 : vector<1x24xf32>
    %c1224 = arith.constant 1224 : index
    %c0_271 = arith.constant 0 : index
    %701 = vector.load %arg2[%c1224, %c0_271] : memref<1272x32xf32, #tpu.memory_space<vmem>>, vector<1x1xf32>
    %702 = vector.broadcast %701 : vector<1x1xf32> to vector<1x24xf32>
    %703 = arith.addf %700, %702 : vector<1x24xf32>
    %c0_272 = arith.constant 0 : index
    %c0_273 = arith.constant 0 : index
    %c0_274 = arith.constant 0 : index
    %704 = vector.load %arg3[%c0_272, %c0_273, %c0_274] : memref<1x1x24xf32, #tpu.memory_space<vmem>>, vector<1x1x24xf32>
    %705 = vector.shape_cast %704 : vector<1x1x24xf32> to vector<1x24xf32>
    %706 = vector.shape_cast %703 : vector<1x24xf32> to vector<1x1x24xf32>
    tpu.vector_store %arg3[%c0_272, %c0_273, %c0_274], %706 {strides = array<i32>} : memref<1x1x24xf32, #tpu.memory_space<vmem>>, vector<1x1x24xf32>,
    return
  }
  func.func @transform_0(%arg0: i32) -> (i32, i32, i32) {
    %c0_i32 = arith.constant 0 : i32
    %c0_i32_0 = arith.constant 0 : i32
    %c0_i32_1 = arith.constant 0 : i32
    return %arg0, %c0_i32, %c0_i32_0 : i32, i32, i32
  }
  func.func @transform_1(%arg0: i32) -> (i32, i32) {
    %c0_i32 = arith.constant 0 : i32
    %c0_i32_0 = arith.constant 0 : i32
    %c0_i32_1 = arith.constant 0 : i32
    return %c0_i32, %c0_i32_0 : i32, i32
  }
  func.func @transform_2(%arg0: i32) -> (i32, i32, i32) {
    %c0_i32 = arith.constant 0 : i32
    %c0_i32_0 = arith.constant 0 : i32
    %c0_i32_1 = arith.constant 0 : i32
    return %arg0, %c0_i32, %c0_i32_0 : i32, i32, i32
  }
}

</mosaic_0001>

<llo_original>
// kernel: tpu_custom_call.1
$region0: #{tpu_custom_call.1}
  #allocation0 [shape = 'u32[]', space=smem, size = 0x4, offset = 0x4, fixed_abs, tag = 'smem constant byte address 0x4 - core index']
  #allocation1 [shape = 'u32[72,128]{1,0:T(1,128)}', space=vmem, size = 0x9000, scoped, tag = 'internal scratch']
  %s0 = inlined_call_operand.vmem [shape: f32[2,144,128], index: 0, kind: input, shape index: {}]
  %s1 = inlined_call_operand.vmem [shape: f32[1272,32], index: 1, kind: input, shape index: {}]
  %s2 = inlined_call_operand.hbm [shape: f32[2,1,24], index: 2, kind: output, shape index: {}]
  %s3 = sld [smem:[#allocation0]]
  $region41: #{tpu_custom_call.1} parent=0
    _
  %s5 = ssub.s32 1, %s3
  %s6 = scalar_select 0, %s5, %s3
  $region1: #{tpu_custom_call.1} parent=0
    #allocation2 [shape = 'u8[1024]{0}', space=vmem, size = 0x400, scoped, tag = 'output window, operand 0']
    #allocation3 [shape = 's32[2]{0}', space=sflag, size = 0x8, scoped, tag = 'scoped memory for tpu_custom_call.1']
    %7 = vsyncpa [#allocation3], 0
    %s8 = scalar_lea.sflag [#allocation3], 1
    %9 = vsyncpa %s8, 0
    loop: start=0, step=1, limit=4
    $region2: #{tpu_custom_call.1} parent=1 // loop_pre_header
      _
    $region3: #{tpu_custom_call.1} parent=1 // loop_header
      %s11 = sphi 0, %s15
      %p12 = scmp.ge.s32.totalorder %s11, 4
      %s21 = sphi 0, %s23
      %s24 = sphi 0, %s21
      %s25 = sphi 0, %s24
      %s41 = sphi 0, %s25
      %s45 = sphi 0, %s45
      %s47 = sphi 0, %s45
      %s48 = sphi 0, %s47
      %s62 = sphi 0, %s48
      %s68 = sphi 0, %s70
      %s71 = sphi 0, %s68
      %s72 = sphi 0, %s71
      %s88 = sphi 0, %s72
    $region4: #{tpu_custom_call.1} parent=1 // loop_header_branch
      %14 = sbr.rel (%p12) target = $region8
    $region5: #{tpu_custom_call.1} parent=1 // loop_body
      %s16 = ssub.s32 %s11, 1
      %s17 = ssub.s32 %s11, 2
      %s18 = sadd.s32 %s11, 1
      %s19 = ssub.s32 %s11, %s18
      %p20 = scmp.eq.s32.totalorder %s19, 0
      %s22 = sadd.s32 %s21, 1
      %s23 = scalar_select %p20, %s21, %s22
      %p26 = pneg %p20
      %p27 = scmp.eq.s32.totalorder %s11, 1
      %p28 = por %p26, %p27
      %p29 = scmp.ne.s32.totalorder %s21, %s24
      %p30 = scmp.eq.s32.totalorder %s11, 0
      %p31 = por %p29, %p30
      %p32 = scmp.ne.s32.totalorder %s21, %s24
      %p33 = scmp.eq.s32.totalorder %s16, 1
      %p34 = por %p32, %p33
      %p35 = scmp.ne.s32.totalorder %s24, %s25
      %p36 = scmp.eq.s32.totalorder %s16, 0
      %p37 = por %p35, %p36
      %p38 = scmp.ne.s32.totalorder %s24, %s25
      %p39 = scmp.eq.s32.totalorder %s17, 1
      %p40 = por %p38, %p39
      %p42 = scmp.ne.s32.totalorder %s25, %s41
      %p43 = scmp.eq.s32.totalorder %s17, 0
      %p44 = por %p42, %p43
      %s46 = sadd.s32 %s45, 1
      %p49 = scmp.eq.s32.totalorder %s11, 1
      %p50 = scmp.ne.s32.totalorder %s45, %s47
      %p51 = scmp.eq.s32.totalorder %s11, 0
      %p52 = por %p50, %p51
      %p53 = scmp.ne.s32.totalorder %s45, %s47
      %p54 = scmp.eq.s32.totalorder %s16, 1
      %p55 = por %p53, %p54
      %p56 = scmp.ne.s32.totalorder %s47, %s48
      %p57 = scmp.eq.s32.totalorder %s16, 0
      %p58 = por %p56, %p57
      %p59 = scmp.ne.s32.totalorder %s47, %s48
      %p60 = scmp.eq.s32.totalorder %s17, 1
      %p61 = por %p59, %p60
      %p63 = scmp.ne.s32.totalorder %s48, %s62
      %p64 = scmp.eq.s32.totalorder %s17, 0
      %p65 = por %p63, %p64
      %s66 = ssub.s32 %s11, %s18
      %p67 = scmp.eq.s32.totalorder %s66, 0
      %s69 = sadd.s32 %s68, 1
      %s70 = scalar_select %p67, %s68, %s69
      %p73 = pneg %p67
      %p74 = scmp.eq.s32.totalorder %s11, 1
      %p75 = por %p73, %p74
      %p76 = scmp.ne.s32.totalorder %s68, %s71
      %p77 = scmp.eq.s32.totalorder %s11, 0
      %p78 = por %p76, %p77
      %p79 = scmp.ne.s32.totalorder %s68, %s71
      %p80 = scmp.eq.s32.totalorder %s16, 1
      %p81 = por %p79, %p80
      %p82 = scmp.ne.s32.totalorder %s71, %s72
      %p83 = scmp.eq.s32.totalorder %s16, 0
      %p84 = por %p82, %p83
      %p85 = scmp.ne.s32.totalorder %s71, %s72
      %p86 = scmp.eq.s32.totalorder %s17, 1
      %p87 = por %p85, %p86
      %p89 = scmp.ne.s32.totalorder %s72, %s88
      %p90 = scmp.eq.s32.totalorder %s17, 0
      %p91 = por %p89, %p90
      %p92 = scmp.le.s32.totalorder 1, %s11
      %p93 = scmp.lt.s32.totalorder %s11, 3
      %p94 = pnand %p92, %p93
      %p95 = pneg %p94
      // Predicated region
      $region9: #{tpu_custom_call.1} parent=5 // pred_check
        _
      $region10: #{tpu_custom_call.1} parent=5 // pred_check_branch
        %97 = sbr.rel (%p94) target = $region12
      $region11: #{tpu_custom_call.1} parent=5 // pred_region
        %s98 = ssub.s32 %s11, 1
        // Predicated region
        $region13: #{tpu_custom_call.1} parent=11 // pred_check
          %p99 = pneg %p58
        $region14: #{tpu_custom_call.1} parent=11 // pred_check_branch
          %101 = sbr.rel (%p99) target = $region16
        $region15: #{tpu_custom_call.1} parent=11 // pred_region
          _
        $region16: #{tpu_custom_call.1} parent=11 // pred_fallthru
          _
      $region12: #{tpu_custom_call.1} parent=5 // pred_fallthru
        _
      %p102 = scmp.lt.s32.totalorder %s11, 2
      // Predicated region
      $region17: #{tpu_custom_call.1} parent=5 // pred_check
        %p103 = pneg %p102
      $region18: #{tpu_custom_call.1} parent=5 // pred_check_branch
        %105 = sbr.rel (%p103) target = $region20
      $region19: #{tpu_custom_call.1} parent=5 // pred_region
        // Predicated region
        $region21: #{tpu_custom_call.1} parent=19 // pred_check
          %p106 = pneg %p31
        $region22: #{tpu_custom_call.1} parent=19 // pred_check_branch
          %108 = sbr.rel (%p106) target = $region24
        $region23: #{tpu_custom_call.1} parent=19 // pred_region
          %p109 = scmp.lt.s32.totalorder %s11, 1
          %s110 = scalar_select %p109, %s11, 1
          %s111 = smul.addr %s110, 18
          %s112 = smul.addr %s111, 8
          %s113 = scalar_lea.vmem %s0, %s112
        $region24: #{tpu_custom_call.1} parent=19 // pred_fallthru
          _
      $region20: #{tpu_custom_call.1} parent=5 // pred_fallthru
        _
      %p114 = scmp.le.s32.totalorder 1, %s11
      %p115 = scmp.lt.s32.totalorder %s11, 3
      %p116 = pnand %p114, %p115
      %p117 = pneg %p116
      // Predicated region
      $region25: #{tpu_custom_call.1} parent=5 // pred_check
        _
      $region26: #{tpu_custom_call.1} parent=5 // pred_check_branch
        %119 = sbr.rel (%p116) target = $region28
      $region27: #{tpu_custom_call.1} parent=5 // pred_region
        %s120 = ssub.s32 %s11, 1
        %p121 = scmp.lt.s32.totalorder %s16, 1
        %s122 = scalar_select %p121, %s16, 1
        %s123 = smul.addr %s122, 18
        %s124 = smul.addr %s123, 8
        %s125 = scalar_lea.vmem %s0, %s124
        %p126 = pneg %p37
        %p127 = pneg %p34
        %p128 = pneg %p58
        %p129 = pneg %p55
        %p130 = pneg %p84
        %p131 = pneg %p81
        %s132 = sand.u32 %s71, 1
        %s133 = scalar_lea.sflag [#allocation3], %s132
        %s134 = sand.u32 %s71, 1
        %s135 = scalar_lea.vmem [#allocation2], %s134
        %p136 = scmp.lt.s32.totalorder %s16, 1
        %s137 = scalar_select %p136, %s16, 1
        %s138 = smul.addr %s137, 18
        %s139 = smul.addr %s138, 8
        %s140 = scalar_lea.vmem %s0, %s139
        %v141 = vld [vmem:[%s140] sm:$0xff]
        %v142 = vld [vmem:[%s140 + $0x8] sm:$0xff]
        %v143 = vld [vmem:[%s140 + $0x10] sm:$0xff]
        %v144 = vld [vmem:[%s140 + $0x18] sm:$0xff]
        %v145 = vld [vmem:[%s140 + $0x20] sm:$0xff]
        %v146 = vld [vmem:[%s140 + $0x28] sm:$0xff]
        %v147 = vld [vmem:[%s140 + $0x30] sm:$0xff]
        %v148 = vld [vmem:[%s140 + $0x38] sm:$0xff]
        %v149 = vld [vmem:[%s140 + $0x40] sm:$0xff]
        %v150 = vld [vmem:[%s140 + $0x48] sm:$0xff]
        %v151 = vld [vmem:[%s140 + $0x50] sm:$0xff]
        %v152 = vld [vmem:[%s140 + $0x58] sm:$0xff]
        %v153 = vld [vmem:[%s140 + $0x60] sm:$0xff]
        %v154 = vld [vmem:[%s140 + $0x68] sm:$0xff]
        %v155 = vld [vmem:[%s140 + $0x70] sm:$0xff]
        %v156 = vld [vmem:[%s140 + $0x78] sm:$0xff]
        %v157 = vld [vmem:[%s140 + $0x80] sm:$0xff]
        %v158 = vld [vmem:[%s140 + $0x88] sm:$0xf]
        %v159 = vld [vmem:[%s1 + $0x4c0] sm:$0x1]
        %161 = vset.pattern.permute.xlu0 0
        %162 = vperm.xlu0 %161, %v141
        %v163 = vpop.permute.xlu0 %162
        %166 = vset.pattern.permute.xlu0 0
        %167 = vperm.xlu0 %166, %v142
        %v168 = vpop.permute.xlu0 %167
        %171 = vset.pattern.permute.xlu0 0
        %172 = vperm.xlu0 %171, %v143
        %v173 = vpop.permute.xlu0 %172
        %v175 = vperm.slane %v159, 0
        %v176 = vmul.f32 %v163, %v175
        %v177 = vmul.f32 %v168, %v175
        %v178 = vmul.f32 %v173, %v175
        %v179 = vld [vmem:[%s1 + $0x4c1] sm:$0x1]
        %181 = vset.pattern.permute.xlu0 0
        %182 = vperm.xlu0 %181, %v144
        %v183 = vpop.permute.xlu0 %182
        %186 = vset.pattern.permute.xlu0 0
        %187 = vperm.xlu0 %186, %v145
        %v188 = vpop.permute.xlu0 %187
        %191 = vset.pattern.permute.xlu0 0
        %192 = vperm.xlu0 %191, %v146
        %v193 = vpop.permute.xlu0 %192
        %v195 = vperm.slane %v179, 0
        %v196 = vmul.f32 %v183, %v195
        %v197 = vmul.f32 %v188, %v195
        %v198 = vmul.f32 %v193, %v195
        %v199 = vadd.f32 %v176, %v196
        %v200 = vadd.f32 %v177, %v197
        %v201 = vadd.f32 %v178, %v198
        %v202 = vld [vmem:[%s1 + $0x4c2] sm:$0x1]
        %v203 = vperm.slane %v202, 0
        %v204 = vadd.f32 %v199, %v203
        %v205 = vadd.f32 %v200, %v203
        %v206 = vadd.f32 %v201, %v203
        %v207 = vmax.f32 %v204, 0.0
        %v208 = vmax.f32 %v205, 0.0
        %v209 = vmax.f32 %v206, 0.0
        %211 = vset.pattern.permute.xlu0 0
        %212 = vperm.xlu0 %211, %v147
        %v213 = vpop.permute.xlu0 %212
        %216 = vset.pattern.permute.xlu0 0
        %217 = vperm.xlu0 %216, %v148
        %v218 = vpop.permute.xlu0 %217
        %221 = vset.pattern.permute.xlu0 0
        %222 = vperm.xlu0 %221, %v149
        %v223 = vpop.permute.xlu0 %222
        %v225 = vmul.f32 %v207, %v213
        %v226 = vmul.f32 %v208, %v218
        %v227 = vmul.f32 %v209, %v223
        %v228 = vld [vmem:[%s1 + $0x4c3] sm:$0x1]
        %230 = vset.pattern.permute.xlu0 0
        %231 = vperm.xlu0 %230, %v156
        %v232 = vpop.permute.xlu0 %231
        %v234 = vperm.slane %v228, 0
        %v235 = vmul.f32 %v232, %v234
        %v236 = vld [vmem:[%s1 + $0x4c4] sm:$0x1]
        %v237 = vperm.slane %v236, 0
        %v238 = vadd.f32 %v235, %v237
        %v239 = vand.u32 2147483647, %v238
        %vm240 = vcmp.le.f32.partialorder %v239, 0.7853982
        %vm241 = vcmp.lt.s32.totalorder %v238, 0
        %v242 = vand.u32 %v238, 2139095040
        %v243 = vshrl.u32 %v242, 23
        %v244 = vsub.s32 %v243, 127
        %v245 = vand.u32 2147483647, %v238
        %v246 = vand.u32 %v245, 8388607
        %v247 = vor.u32 %v246, 8388608
        %v248 = vsub.s32 0, %v247
        %v249 = vadd.s32 %v244, 1
        %vm250 = vcmp.gt.s32.totalorder %v249, 0
        %v251 = vsel %vm250, %v249, 0
        %v252 = vshrl.u32 %v251, 5
        %v253 = vand.u32 %v251, 31
        %v254 = vsub.s32 32, %v253
        %v255 = vshrl.u32 683565275, %v254
        %v256 = vshll.u32 683565275, %v253
        %v257 = vshrl.u32 2475754826, %v254
        %v258 = vor.u32 %v256, %v257
        %v259 = vshll.u32 2475754826, %v253
        %v260 = vshrl.u32 2131351028, %v254
        %v261 = vor.u32 %v259, %v260
        %v262 = vshll.u32 2131351028, %v253
        %v263 = vshrl.u32 2102212464, %v254
        %v264 = vor.u32 %v262, %v263
        %v265 = vshll.u32 2102212464, %v253
        %v266 = vshrl.u32 920167782, %v254
        %v267 = vor.u32 %v265, %v266
        %v268 = vshll.u32 920167782, %v253
        %v269 = vshrl.u32 1326507024, %v254
        %v270 = vor.u32 %v268, %v269
        %vm271 = vcmp.lt.s32.totalorder %v252, 1
        %vm272 = vcmp.lt.s32.totalorder %v252, 2
        %vm273 = vcmp.lt.s32.totalorder %v252, 3
        %vm274 = vcmp.lt.s32.totalorder %v252, 4
        %v275 = vsel %vm271, %v255, %v258
        %v276 = vsel %vm274, %v264, 2102212464
        %v277 = vsel %vm273, %v261, %v276
        %v278 = vsel %vm272, %v275, %v277
        %v279 = vsel %vm271, %v258, %v261
        %v280 = vsel %vm274, %v267, 920167782
        %v281 = vsel %vm273, %v264, %v280
        %v282 = vsel %vm272, %v279, %v281
        %v283 = vsel %vm271, %v261, %v264
        %v284 = vsel %vm274, %v270, 1326507024
        %v285 = vsel %vm273, %v267, %v284
        %v286 = vsel %vm272, %v283, %v285
        %v287 = vshll.u32 %v247, 8
        %v288 = vand.u32 %v287, 65535
        %v289 = vshrl.u32 %v287, 16
        %v290 = vand.u32 %v286, 65535
        %v291 = vshrl.u32 %v286, 16
        %v292 = vmul.u32 %v288, %v290
        %v293 = vmul.u32 %v288, %v291
        %v294 = vmul.u32 %v289, %v290
        %v295 = vmul.u32 %v289, %v291
        %v296 = vshll.u32 %v293, 16
        %v297 = vshrl.u32 %v293, 16
        %v298 = vshll.u32 %v294, 16
        %v299 = vshrl.u32 %v294, 16
        %vm300 = vc.u32 %v292, %v296
        %v301 = vsel %vm300, 1, 0
        %v302 = vadd.s32 %v292, %v296
        %v303 = vadd.s32 %v295, %v301
        %vm304 = vc.u32 %v302, %v298
        %v305 = vsel %vm304, 1, 0
        %v306 = vadd.s32 %v302, %v298
        %v307 = vadd.s32 %v303, %v305
        %v308 = vadd.s32 %v307, %v297
        %v309 = vadd.s32 %v308, %v299
        %v310 = vand.u32 %v287, 65535
        %v311 = vshrl.u32 %v287, 16
        %v312 = vand.u32 %v282, 65535
        %v313 = vshrl.u32 %v282, 16
        %v314 = vmul.u32 %v310, %v312
        %v315 = vmul.u32 %v310, %v313
        %v316 = vmul.u32 %v311, %v312
        %v317 = vmul.u32 %v311, %v313
        %v318 = vshll.u32 %v315, 16
        %v319 = vshrl.u32 %v315, 16
        %v320 = vshll.u32 %v316, 16
        %v321 = vshrl.u32 %v316, 16
        %vm322 = vc.u32 %v314, %v318
        %v323 = vsel %vm322, 1, 0
        %v324 = vadd.s32 %v314, %v318
        %v325 = vadd.s32 %v317, %v323
        %vm326 = vc.u32 %v324, %v320
        %v327 = vsel %vm326, 1, 0
        %v328 = vadd.s32 %v324, %v320
        %v329 = vadd.s32 %v325, %v327
        %v330 = vadd.s32 %v329, %v319
        %v331 = vadd.s32 %v330, %v321
        %v332 = vmul.u32 %v287, %v278
        %v333 = vadd.s32 %v309, %v328
        %vm334 = vc.u32 %v309, %v328
        %v335 = vadd.s32 %v331, 1
        %v336 = vsel %vm334, %v335, %v331
        %v337 = vadd.s32 %v332, %v336
        %v338 = vadd.s32 %v337, 536870912
        %v339 = vshrl.u32 %v338, 30
        %v340 = vshll.u32 %v339, 30
        %v341 = vsub.s32 %v337, %v340
        %vm342 = vcmp.lt.s32.totalorder %v341, 0
        %v343 = vsub.s32 0, %v341
        %v344 = vsel %vm342, %v343, %v341
        %v345 = vclz %v344
        %v346 = vsub.s32 %v345, 2
        %vm347 = vcmp.gt.s32.totalorder 0, %v346
        %v348 = vsel %vm347, 0, %v346
        %v349 = vsub.s32 32, %v348
        %v350 = vshll.u32 %v341, %v348
        %v351 = vshrl.u32 %v333, %v349
        %v352 = vor.u32 %v350, %v351
        %v353 = vsub.s32 4294967266, %v348
        %v354 = vadd.s32 %v353, 127
        %v355 = vshll.u32 %v354, 23
        %v356 = vor.u32 4788187, %v355
        %v357 = vand.u32 2147483647, %v356
        %v359 = vcvt.s32.f32 %v352
        %v360 = vmul.f32 %v359, %v357
        %v361 = vxor.u32 %v360, 2147483648
        %v362 = vsel %vm241, %v361, %v360
        %v363 = vsub.s32 4, %v339
        %v364 = vsel %vm241, %v363, %v339
        %v365 = vsel %vm240, %v238, %v362
        %v366 = vsel %vm240, 0, %v364
        %v367 = vmul.f32 %v365, %v365
        %v368 = vmul.f32 %v367, -0.001358992
        %v369 = vadd.f32 %v368, 0.041655596
        %v370 = vmul.f32 %v367, %v369
        %v371 = vadd.f32 %v370, -0.4999988
        %v372 = vmul.f32 %v367, %v371
        %v373 = vadd.f32 1.0, %v372
        %v374 = vmul.f32 %v365, %v365
        %v375 = vmul.f32 %v374, -0.00019511016
        %v376 = vadd.f32 %v375, 0.008332121
        %v377 = vmul.f32 %v374, %v376
        %v378 = vadd.f32 %v377, -0.16666654
        %v379 = vmul.f32 %v374, %v378
        %v380 = vadd.f32 %v379, 1.0
        %v381 = vmul.f32 %v380, %v365
        %vm382 = vweird.f32 %v238
        %v383 = vadd.s32 %v366, 3
        %v384 = vand.u32 %v383, 3
        %vm385 = vcmp.lt.s32.totalorder %v384, 2
        %vm386 = vcmp.eq.s32.totalorder %v384, 0
        %v387 = vxor.u32 %v381, 2147483648
        %v388 = vsel %vm386, %v373, %v387
        %vm389 = vcmp.eq.s32.totalorder %v384, 2
        %v390 = vxor.u32 %v373, 2147483648
        %v391 = vsel %vm389, %v390, %v381
        %v392 = vsel %vm385, %v388, %v391
        %v393 = vsel %vm382, nan, %v392
        %v394 = vld [vmem:[%s1 + $0x4d0] sm:$0xf]
        %v395 = vld [vmem:[%s1 + $0x4c9] sm:$0x1]
        %v396 = vld [vmem:[%s1 + $0x4ca] sm:$0x1]
        %v397 = vld [vmem:[%s1 + $0x4cb] sm:$0x1]
        %v398 = vld [vmem:[%s1 + $0x4cc] sm:$0x1]
        %vm399 = vcmask 64512
        %v401 = vsel %vm399, %v150, 0
        %v404 = vsel %vm399, %v151, 0
        %v407 = vsel %vm399, %v152, 0
        %409 = vmatpush.msra.mxu0 0.0
        %410 = vmatpush.msra.mxu0 0.0
        %411 = vmatpush.msra.mxu0 0.0
        %412 = vmatpush.msra.mxu0 0.0
        %413 = vmatpush.msra.mxu0 0.0
        %414 = vmatpush.msra.mxu0 0.0
        %415 = vmatpush.msra.mxu0 0.0
        %416 = vmatpush.msra.mxu0 0.0
        %417 = vmatpush.msra.mxu0 0.0
        %418 = vmatpush.msra.mxu0 0.0
        %419 = vmatpush.msra.mxu0 0.0
        %420 = vmatpush.msra.mxu0 0.0
        %421 = vmatpush.msra.mxu0 0.0
        %422 = vmatpush.msra.mxu0 0.0
        %423 = vmatpush.msra.mxu0 0.0
        %424 = vmatpush.msra.mxu0 %v393
        %425 = vmatmul.f32.gmra.mxu0 %v401
        %v426 = vpop.f32.mrf.mxu0
        %v427 = vadd.f32 0.0, %v426
        %428 = vmatmul.f32.gmra.mxu0 %v404
        %v429 = vpop.f32.mrf.mxu0
        %v430 = vadd.f32 0.0, %v429
        %431 = vmatmul.f32.gmra.mxu0 %v407
        %v432 = vpop.f32.mrf.mxu0
        %v433 = vadd.f32 0.0, %v432
        %434 = vdwg.mxu0
        %vm435 = vcmask 31744
        %v437 = vsel %vm435, %v153, 0
        %v440 = vsel %vm435, %v154, 0
        %v443 = vsel %vm435, %v155, 0
        %vm445 = vcmask 1043456
        %v447 = vsel %vm445, %v394, 0
        %449 = vmatpush.msra.mxu0 0.0
        %450 = vmatpush.msra.mxu0 0.0
        %451 = vmatpush.msra.mxu0 0.0
        %452 = vmatpush.msra.mxu0 0.0
        %453 = vmatpush.msra.mxu0 0.0
        %454 = vmatpush.msra.mxu0 0.0
        %455 = vmatpush.msra.mxu0 0.0
        %456 = vmatpush.msra.mxu0 0.0
        %457 = vmatpush.msra.mxu0 0.0
        %458 = vmatpush.msra.mxu0 0.0
        %459 = vmatpush.msra.mxu0 0.0
        %460 = vmatpush.msra.mxu0 0.0
        %461 = vmatpush.msra.mxu0 0.0
        %462 = vmatpush.msra.mxu0 0.0
        %463 = vmatpush.msra.mxu0 0.0
        %464 = vmatpush.msra.mxu0 %v447
        %465 = vmatmul.f32.gmra.mxu0 %v437
        %v466 = vpop.f32.mrf.mxu0
        %v467 = vadd.f32 0.0, %v466
        %468 = vmatmul.f32.gmra.mxu0 %v440
        %v469 = vpop.f32.mrf.mxu0
        %v470 = vadd.f32 0.0, %v469
        %471 = vmatmul.f32.gmra.mxu0 %v443
        %v472 = vpop.f32.mrf.mxu0
        %v473 = vadd.f32 0.0, %v472
        %474 = vdwg.mxu0
        %v475 = vld [vmem:[%s1] sm:$0xff]
        %v476 = vld [vmem:[%s1 + $0x8] sm:$0xff]
        %v477 = vld [vmem:[%s1 + $0x10] sm:$0xff]
        %v478 = vld [vmem:[%s1 + $0x18] sm:$0xff]
        %v479 = vld [vmem:[%s1 + $0x4d8] sm:$0x1]
        %v480 = vperm.slane %v479, 0
        %vm481 = vcmask 261120
        %v482 = vsel %vm481, %v394, 0
        %484 = vmatpush.msra.mxu0 0.0
        %485 = vmatpush.msra.mxu0 0.0
        %486 = vmatpush.msra.mxu0 0.0
        %487 = vmatpush.msra.mxu0 0.0
        %488 = vmatpush.msra.mxu0 0.0
        %489 = vmatpush.msra.mxu0 0.0
        %490 = vmatpush.msra.mxu0 0.0
        %491 = vmatpush.msra.mxu0 0.0
        %492 = vmatpush.msra.mxu0 0.0
        %493 = vmatpush.msra.mxu0 0.0
        %494 = vmatpush.msra.mxu0 0.0
        %495 = vmatpush.msra.mxu0 0.0
        %496 = vmatpush.msra.mxu0 %v478
        %497 = vmatpush.msra.mxu0 %v477
        %498 = vmatpush.msra.mxu0 %v476
        %499 = vmatpush.msra.mxu0 %v475
        %500 = vmatmul.f32.gmra.mxu0 %v482
        %v501 = vpop.f32.mrf.mxu0
        %v502 = vadd.f32 %v480, %v501
        %503 = vdwg.mxu0
        %v504 = vld [vmem:[%s1 + $0x20] sm:$0xff]
        %v505 = vld [vmem:[%s1 + $0x28] sm:$0xff]
        %v506 = vld [vmem:[%s1 + $0x30] sm:$0xff]
        %v507 = vld [vmem:[%s1 + $0x38] sm:$0xff]
        %v508 = vld [vmem:[%s1 + $0x40] sm:$0xff]
        %v509 = vld [vmem:[%s1 + $0x48] sm:$0xff]
        %v510 = vld [vmem:[%s1 + $0x50] sm:$0xff]
        %v511 = vld [vmem:[%s1 + $0x58] sm:$0xff]
        %v513 = vsel %vm481, %v225, 0
        %v516 = vsel %vm481, %v226, 0
        %v519 = vsel %vm481, %v227, 0
        %521 = vmatpush.msra.mxu0 0.0
        %522 = vmatpush.msra.mxu0 0.0
        %523 = vmatpush.msra.mxu0 0.0
        %524 = vmatpush.msra.mxu0 0.0
        %525 = vmatpush.msra.mxu0 0.0
        %526 = vmatpush.msra.mxu0 0.0
        %527 = vmatpush.msra.mxu0 0.0
        %528 = vmatpush.msra.mxu0 0.0
        %529 = vmatpush.msra.mxu0 0.0
        %530 = vmatpush.msra.mxu0 0.0
        %531 = vmatpush.msra.mxu0 0.0
        %532 = vmatpush.msra.mxu0 0.0
        %533 = vmatpush.msra.mxu0 %v511
        %534 = vmatpush.msra.mxu0 %v510
        %535 = vmatpush.msra.mxu0 %v509
        %536 = vmatpush.msra.mxu0 %v508
        %537 = vmatmul.f32.gmra.mxu0 %v513
        %v538 = vpop.f32.mrf.mxu0
        %v539 = vadd.f32 0.0, %v538
        %540 = vmatmul.f32.gmra.mxu0 %v516
        %v541 = vpop.f32.mrf.mxu0
        %v542 = vadd.f32 0.0, %v541
        %543 = vmatmul.f32.gmra.mxu0 %v519
        %v544 = vpop.f32.mrf.mxu0
        %v545 = vadd.f32 0.0, %v544
        %546 = vdwg.mxu0
        %v548 = vsel %vm481, %v427, 0
        %v551 = vsel %vm481, %v430, 0
        %v554 = vsel %vm481, %v433, 0
        %556 = vmatpush.msra.mxu0 0.0
        %557 = vmatpush.msra.mxu0 0.0
        %558 = vmatpush.msra.mxu0 0.0
        %559 = vmatpush.msra.mxu0 0.0
        %560 = vmatpush.msra.mxu0 0.0
        %561 = vmatpush.msra.mxu0 0.0
        %562 = vmatpush.msra.mxu0 0.0
        %563 = vmatpush.msra.mxu0 0.0
        %564 = vmatpush.msra.mxu0 0.0
        %565 = vmatpush.msra.mxu0 0.0
        %566 = vmatpush.msra.mxu0 0.0
        %567 = vmatpush.msra.mxu0 0.0
        %568 = vmatpush.msra.mxu0 %v507
        %569 = vmatpush.msra.mxu0 %v506
        %570 = vmatpush.msra.mxu0 %v505
        %571 = vmatpush.msra.mxu0 %v504
        %572 = vmatmul.f32.gmra.mxu0 %v548
        %v573 = vpop.f32.mrf.mxu0
        %v574 = vadd.f32 %v539, %v573
        %575 = vmatmul.f32.gmra.mxu0 %v551
        %v576 = vpop.f32.mrf.mxu0
        %v577 = vadd.f32 %v542, %v576
        %578 = vmatmul.f32.gmra.mxu0 %v554
        %v579 = vpop.f32.mrf.mxu0
        %v580 = vadd.f32 %v545, %v579
        %581 = vdwg.mxu0
        %v582 = vld [vmem:[%s1 + $0x4d9] sm:$0x1]
        %v583 = vperm.slane %v582, 0
        %v584 = vadd.f32 %v574, %v583
        %v585 = vadd.f32 %v577, %v583
        %v586 = vadd.f32 %v580, %v583
        %v587 = vld [vmem:[%s1 + $0x60] sm:$0xff]
        %v588 = vld [vmem:[%s1 + $0x68] sm:$0xff]
        %v589 = vld [vmem:[%s1 + $0x70] sm:$0xff]
        %v590 = vld [vmem:[%s1 + $0x78] sm:$0xff]
        %v591 = vld [vmem:[%s1 + $0x80] sm:$0xff]
        %v592 = vld [vmem:[%s1 + $0x88] sm:$0xff]
        %v593 = vld [vmem:[%s1 + $0x90] sm:$0xff]
        %v594 = vld [vmem:[%s1 + $0x98] sm:$0xff]
        %595 = vmatpush.msra.mxu0 0.0
        %596 = vmatpush.msra.mxu0 0.0
        %597 = vmatpush.msra.mxu0 0.0
        %598 = vmatpush.msra.mxu0 0.0
        %599 = vmatpush.msra.mxu0 0.0
        %600 = vmatpush.msra.mxu0 0.0
        %601 = vmatpush.msra.mxu0 0.0
        %602 = vmatpush.msra.mxu0 0.0
        %603 = vmatpush.msra.mxu0 0.0
        %604 = vmatpush.msra.mxu0 0.0
        %605 = vmatpush.msra.mxu0 0.0
        %606 = vmatpush.msra.mxu0 0.0
        %607 = vmatpush.msra.mxu0 %v594
        %608 = vmatpush.msra.mxu0 %v593
        %609 = vmatpush.msra.mxu0 %v592
        %610 = vmatpush.msra.mxu0 %v591
        %611 = vmatmul.f32.gmra.mxu0 %v513
        %v612 = vpop.f32.mrf.mxu0
        %v613 = vadd.f32 0.0, %v612
        %614 = vmatmul.f32.gmra.mxu0 %v516
        %v615 = vpop.f32.mrf.mxu0
        %v616 = vadd.f32 0.0, %v615
        %617 = vmatmul.f32.gmra.mxu0 %v519
        %v618 = vpop.f32.mrf.mxu0
        %v619 = vadd.f32 0.0, %v618
        %620 = vdwg.mxu0
        %621 = vmatpush.msra.mxu0 0.0
        %622 = vmatpush.msra.mxu0 0.0
        %623 = vmatpush.msra.mxu0 0.0
        %624 = vmatpush.msra.mxu0 0.0
        %625 = vmatpush.msra.mxu0 0.0
        %626 = vmatpush.msra.mxu0 0.0
        %627 = vmatpush.msra.mxu0 0.0
        %628 = vmatpush.msra.mxu0 0.0
        %629 = vmatpush.msra.mxu0 0.0
        %630 = vmatpush.msra.mxu0 0.0
        %631 = vmatpush.msra.mxu0 0.0
        %632 = vmatpush.msra.mxu0 0.0
        %633 = vmatpush.msra.mxu0 %v590
        %634 = vmatpush.msra.mxu0 %v589
        %635 = vmatpush.msra.mxu0 %v588
        %636 = vmatpush.msra.mxu0 %v587
        %637 = vmatmul.f32.gmra.mxu0 %v548
        %v638 = vpop.f32.mrf.mxu0
        %v639 = vadd.f32 %v613, %v638
        %640 = vmatmul.f32.gmra.mxu0 %v551
        %v641 = vpop.f32.mrf.mxu0
        %v642 = vadd.f32 %v616, %v641
        %643 = vmatmul.f32.gmra.mxu0 %v554
        %v644 = vpop.f32.mrf.mxu0
        %v645 = vadd.f32 %v619, %v644
        %646 = vdwg.mxu0
        %v647 = vld [vmem:[%s1 + $0x4da] sm:$0x1]
        %v648 = vperm.slane %v647, 0
        %v649 = vadd.f32 %v639, %v648
        %v650 = vadd.f32 %v642, %v648
        %v651 = vadd.f32 %v645, %v648
        %v652 = vld [vmem:[%s1 + $0xa0] sm:$0xff]
        %v653 = vld [vmem:[%s1 + $0xa8] sm:$0xff]
        %v654 = vld [vmem:[%s1 + $0xb0] sm:$0xff]
        %v655 = vld [vmem:[%s1 + $0xb8] sm:$0xff]
        %v656 = vld [vmem:[%s1 + $0x4db] sm:$0x1]
        %v657 = vperm.slane %v395, 0
        %v658 = vmul.f32 %v502, %v657
        %v660 = vsel %vm481, %v658, 0
        %v663 = vsel %vm481, %v584, 0
        %v666 = vsel %vm481, %v585, 0
        %v669 = vsel %vm481, %v586, 0
        %671 = vmatpush.xpose.msra.mxu0 0.0
        %672 = vmatpush.xpose.msra.mxu0 0.0
        %673 = vmatpush.xpose.msra.mxu0 0.0
        %674 = vmatpush.xpose.msra.mxu0 0.0
        %675 = vmatpush.xpose.msra.mxu0 0.0
        %676 = vmatpush.xpose.msra.mxu0 0.0
        %677 = vmatpush.xpose.msra.mxu0 0.0
        %678 = vmatpush.xpose.msra.mxu0 0.0
        %679 = vmatpush.xpose.msra.mxu0 0.0
        %680 = vmatpush.xpose.msra.mxu0 0.0
        %681 = vmatpush.xpose.msra.mxu0 0.0
        %682 = vmatpush.xpose.msra.mxu0 0.0
        %683 = vmatpush.xpose.msra.mxu0 0.0
        %684 = vmatpush.xpose.msra.mxu0 %v669
        %685 = vmatpush.xpose.msra.mxu0 %v666
        %686 = vmatpush.xpose.msra.mxu0 %v663
        %687 = vmatmul.f32.gmra.mxu0 %v660
        %v688 = vpop.f32.mrf.mxu0
        %v689 = vadd.f32 0.0, %v688
        %690 = vdwg.mxu0
        %v691 = vmul.f32 %v689, 0.17677669
        %v692 = vadd.f32 %v691, %v158
        %vm693 = vcmask 191488
        %v694 = vsel %vm693, %v692, -inf
        %695 = vmax.xlane.f32.xlu0 %v694
        %v696 = vpop.xlane.xlu0 %695
        %v697 = vsub.f32 %v692, %v696
        %v698 = vmul.f32 %v697, 1.442695
        %v699 = vpow.pop %v698
        %v700 = vsel %vm693, %v699, 0.0
        %701 = vadd.xlane.f32.xlu0 %v700
        %v702 = vpop.xlane.xlu0 %701
        %v703 = vrcp.pop %v702
        %v704 = vmul.f32 %v702, %v703
        %v705 = vsub.f32 1.0, %v704
        %v706 = vmul.f32 %v703, %v705
        %v707 = vadd.f32 %v703, %v706
        %vm708 = vweird.f32 %v702
        %vm709 = vweird.f32 %v703
        %vm710 = vmor %vm708, %vm709
        %v711 = vsel %vm710, %v703, %v707
        %v712 = vand.u32 2147483647, %v702
        %vm713 = vcmp.eq.f32.partialorder %v712, 8.507059e+37
        %v714 = vand.u32 %v702, 2147483648
        %v715 = vor.u32 1.1754944e-38, %v714
        %v716 = vsel %vm713, %v715, %v711
        %v717 = vmul.f32 %v699, %v716
        %v718 = vmul.f32 %v649, %v657
        %v719 = vmul.f32 %v650, %v657
        %v720 = vmul.f32 %v651, %v657
        %vm721 = vcmask 195584
        %v723 = vsel %vm721, %v717, 0
        %725 = vmatpush.msra.mxu0 0.0
        %726 = vmatpush.msra.mxu0 0.0
        %727 = vmatpush.msra.mxu0 0.0
        %728 = vmatpush.msra.mxu0 0.0
        %729 = vmatpush.msra.mxu0 0.0
        %730 = vmatpush.msra.mxu0 0.0
        %731 = vmatpush.msra.mxu0 0.0
        %732 = vmatpush.msra.mxu0 0.0
        %733 = vmatpush.msra.mxu0 0.0
        %734 = vmatpush.msra.mxu0 0.0
        %735 = vmatpush.msra.mxu0 0.0
        %736 = vmatpush.msra.mxu0 0.0
        %737 = vmatpush.msra.mxu0 0.0
        %738 = vmatpush.msra.mxu0 %v720
        %739 = vmatpush.msra.mxu0 %v719
        %740 = vmatpush.msra.mxu0 %v718
        %741 = vmatmul.f32.gmra.mxu0 %v723
        %v742 = vpop.f32.mrf.mxu0
        %v743 = vadd.f32 0.0, %v742
        %744 = vdwg.mxu0
        %v745 = vadd.f32 %v502, %v743
        %v746 = vperm.slane %v396, 0
        %v747 = vmul.f32 %v502, %v746
        %v749 = vsel %vm481, %v747, 0
        %751 = vmatpush.xpose.msra.mxu0 0.0
        %752 = vmatpush.xpose.msra.mxu0 0.0
        %753 = vmatpush.xpose.msra.mxu0 0.0
        %754 = vmatpush.xpose.msra.mxu0 0.0
        %755 = vmatpush.xpose.msra.mxu0 0.0
        %756 = vmatpush.xpose.msra.mxu0 0.0
        %757 = vmatpush.xpose.msra.mxu0 0.0
        %758 = vmatpush.xpose.msra.mxu0 0.0
        %759 = vmatpush.xpose.msra.mxu0 0.0
        %760 = vmatpush.xpose.msra.mxu0 0.0
        %761 = vmatpush.xpose.msra.mxu0 0.0
        %762 = vmatpush.xpose.msra.mxu0 0.0
        %763 = vmatpush.xpose.msra.mxu0 0.0
        %764 = vmatpush.xpose.msra.mxu0 %v669
        %765 = vmatpush.xpose.msra.mxu0 %v666
        %766 = vmatpush.xpose.msra.mxu0 %v663
        %767 = vmatmul.f32.gmra.mxu0 %v749
        %v768 = vpop.f32.mrf.mxu0
        %v769 = vadd.f32 0.0, %v768
        %770 = vdwg.mxu0
        %v771 = vmul.f32 %v769, 0.17677669
        %v772 = vadd.f32 %v771, %v158
        %v773 = vsel %vm693, %v772, -inf
        %774 = vmax.xlane.f32.xlu0 %v773
        %v775 = vpop.xlane.xlu0 %774
        %v776 = vsub.f32 %v772, %v775
        %v777 = vmul.f32 %v776, 1.442695
        %v778 = vpow.pop %v777
        %v779 = vsel %vm693, %v778, 0.0
        %780 = vadd.xlane.f32.xlu0 %v779
        %v781 = vpop.xlane.xlu0 %780
        %v782 = vrcp.pop %v781
        %v783 = vmul.f32 %v781, %v782
        %v784 = vsub.f32 1.0, %v783
        %v785 = vmul.f32 %v782, %v784
        %v786 = vadd.f32 %v782, %v785
        %vm787 = vweird.f32 %v781
        %vm788 = vweird.f32 %v782
        %vm789 = vmor %vm787, %vm788
        %v790 = vsel %vm789, %v782, %v786
        %v791 = vand.u32 2147483647, %v781
        %vm792 = vcmp.eq.f32.partialorder %v791, 8.507059e+37
        %v793 = vand.u32 %v781, 2147483648
        %v794 = vor.u32 1.1754944e-38, %v793
        %v795 = vsel %vm792, %v794, %v790
        %v796 = vmul.f32 %v778, %v795
        %v797 = vmul.f32 %v649, %v746
        %v798 = vmul.f32 %v650, %v746
        %v799 = vmul.f32 %v651, %v746
        %v801 = vsel %vm721, %v796, 0
        %803 = vmatpush.msra.mxu0 0.0
        %804 = vmatpush.msra.mxu0 0.0
        %805 = vmatpush.msra.mxu0 0.0
        %806 = vmatpush.msra.mxu0 0.0
        %807 = vmatpush.msra.mxu0 0.0
        %808 = vmatpush.msra.mxu0 0.0
        %809 = vmatpush.msra.mxu0 0.0
        %810 = vmatpush.msra.mxu0 0.0
        %811 = vmatpush.msra.mxu0 0.0
        %812 = vmatpush.msra.mxu0 0.0
        %813 = vmatpush.msra.mxu0 0.0
        %814 = vmatpush.msra.mxu0 0.0
        %815 = vmatpush.msra.mxu0 0.0
        %816 = vmatpush.msra.mxu0 %v799
        %817 = vmatpush.msra.mxu0 %v798
        %818 = vmatpush.msra.mxu0 %v797
        %819 = vmatmul.f32.gmra.mxu0 %v801
        %v820 = vpop.f32.mrf.mxu0
        %v821 = vadd.f32 0.0, %v820
        %822 = vdwg.mxu0
        %v823 = vadd.f32 %v745, %v821
        %v824 = vperm.slane %v397, 0
        %v825 = vmul.f32 %v502, %v824
        %v827 = vsel %vm481, %v825, 0
        %829 = vmatpush.xpose.msra.mxu0 0.0
        %830 = vmatpush.xpose.msra.mxu0 0.0
        %831 = vmatpush.xpose.msra.mxu0 0.0
        %832 = vmatpush.xpose.msra.mxu0 0.0
        %833 = vmatpush.xpose.msra.mxu0 0.0
        %834 = vmatpush.xpose.msra.mxu0 0.0
        %835 = vmatpush.xpose.msra.mxu0 0.0
        %836 = vmatpush.xpose.msra.mxu0 0.0
        %837 = vmatpush.xpose.msra.mxu0 0.0
        %838 = vmatpush.xpose.msra.mxu0 0.0
        %839 = vmatpush.xpose.msra.mxu0 0.0
        %840 = vmatpush.xpose.msra.mxu0 0.0
        %841 = vmatpush.xpose.msra.mxu0 0.0
        %842 = vmatpush.xpose.msra.mxu0 %v669
        %843 = vmatpush.xpose.msra.mxu0 %v666
        %844 = vmatpush.xpose.msra.mxu0 %v663
        %845 = vmatmul.f32.gmra.mxu0 %v827
        %v846 = vpop.f32.mrf.mxu0
        %v847 = vadd.f32 0.0, %v846
        %848 = vdwg.mxu0
        %v849 = vmul.f32 %v847, 0.17677669
        %v850 = vadd.f32 %v849, %v158
        %v851 = vsel %vm693, %v850, -inf
        %852 = vmax.xlane.f32.xlu0 %v851
        %v853 = vpop.xlane.xlu0 %852
        %v854 = vsub.f32 %v850, %v853
        %v855 = vmul.f32 %v854, 1.442695
        %v856 = vpow.pop %v855
        %v857 = vsel %vm693, %v856, 0.0
        %858 = vadd.xlane.f32.xlu0 %v857
        %v859 = vpop.xlane.xlu0 %858
        %v860 = vrcp.pop %v859
        %v861 = vmul.f32 %v859, %v860
        %v862 = vsub.f32 1.0, %v861
        %v863 = vmul.f32 %v860, %v862
        %v864 = vadd.f32 %v860, %v863
        %vm865 = vweird.f32 %v859
        %vm866 = vweird.f32 %v860
        %vm867 = vmor %vm865, %vm866
        %v868 = vsel %vm867, %v860, %v864
        %v869 = vand.u32 2147483647, %v859
        %vm870 = vcmp.eq.f32.partialorder %v869, 8.507059e+37
        %v871 = vand.u32 %v859, 2147483648
        %v872 = vor.u32 1.1754944e-38, %v871
        %v873 = vsel %vm870, %v872, %v868
        %v874 = vmul.f32 %v856, %v873
        %v875 = vmul.f32 %v649, %v824
        %v876 = vmul.f32 %v650, %v824
        %v877 = vmul.f32 %v651, %v824
        %v879 = vsel %vm721, %v874, 0
        %881 = vmatpush.msra.mxu0 0.0
        %882 = vmatpush.msra.mxu0 0.0
        %883 = vmatpush.msra.mxu0 0.0
        %884 = vmatpush.msra.mxu0 0.0
        %885 = vmatpush.msra.mxu0 0.0
        %886 = vmatpush.msra.mxu0 0.0
        %887 = vmatpush.msra.mxu0 0.0
        %888 = vmatpush.msra.mxu0 0.0
        %889 = vmatpush.msra.mxu0 0.0
        %890 = vmatpush.msra.mxu0 0.0
        %891 = vmatpush.msra.mxu0 0.0
        %892 = vmatpush.msra.mxu0 0.0
        %893 = vmatpush.msra.mxu0 0.0
        %894 = vmatpush.msra.mxu0 %v877
        %895 = vmatpush.msra.mxu0 %v876
        %896 = vmatpush.msra.mxu0 %v875
        %897 = vmatmul.f32.gmra.mxu0 %v879
        %v898 = vpop.f32.mrf.mxu0
        %v899 = vadd.f32 0.0, %v898
        %900 = vdwg.mxu0
        %v901 = vadd.f32 %v823, %v899
        %v902 = vperm.slane %v398, 0
        %v903 = vmul.f32 %v502, %v902
        %v905 = vsel %vm481, %v903, 0
        %907 = vmatpush.xpose.msra.mxu0 0.0
        %908 = vmatpush.xpose.msra.mxu0 0.0
        %909 = vmatpush.xpose.msra.mxu0 0.0
        %910 = vmatpush.xpose.msra.mxu0 0.0
        %911 = vmatpush.xpose.msra.mxu0 0.0
        %912 = vmatpush.xpose.msra.mxu0 0.0
        %913 = vmatpush.xpose.msra.mxu0 0.0
        %914 = vmatpush.xpose.msra.mxu0 0.0
        %915 = vmatpush.xpose.msra.mxu0 0.0
        %916 = vmatpush.xpose.msra.mxu0 0.0
        %917 = vmatpush.xpose.msra.mxu0 0.0
        %918 = vmatpush.xpose.msra.mxu0 0.0
        %919 = vmatpush.xpose.msra.mxu0 0.0
        %920 = vmatpush.xpose.msra.mxu0 %v669
        %921 = vmatpush.xpose.msra.mxu0 %v666
        %922 = vmatpush.xpose.msra.mxu0 %v663
        %923 = vmatmul.f32.gmra.mxu0 %v905
        %v924 = vpop.f32.mrf.mxu0
        %v925 = vadd.f32 0.0, %v924
        %926 = vdwg.mxu0
        %v927 = vmul.f32 %v925, 0.17677669
        %v928 = vadd.f32 %v927, %v158
        %v929 = vsel %vm693, %v928, -inf
        %930 = vmax.xlane.f32.xlu0 %v929
        %v931 = vpop.xlane.xlu0 %930
        %v932 = vsub.f32 %v928, %v931
        %v933 = vmul.f32 %v932, 1.442695
        %v934 = vpow.pop %v933
        %v935 = vsel %vm693, %v934, 0.0
        %936 = vadd.xlane.f32.xlu0 %v935
        %v937 = vpop.xlane.xlu0 %936
        %v938 = vrcp.pop %v937
        %v939 = vmul.f32 %v937, %v938
        %v940 = vsub.f32 1.0, %v939
        %v941 = vmul.f32 %v938, %v940
        %v942 = vadd.f32 %v938, %v941
        %vm943 = vweird.f32 %v937
        %vm944 = vweird.f32 %v938
        %vm945 = vmor %vm943, %vm944
        %v946 = vsel %vm945, %v938, %v942
        %v947 = vand.u32 2147483647, %v937
        %vm948 = vcmp.eq.f32.partialorder %v947, 8.507059e+37
        %v949 = vand.u32 %v937, 2147483648
        %v950 = vor.u32 1.1754944e-38, %v949
        %v951 = vsel %vm948, %v950, %v946
        %v952 = vmul.f32 %v934, %v951
        %v953 = vmul.f32 %v649, %v902
        %v954 = vmul.f32 %v650, %v902
        %v955 = vmul.f32 %v651, %v902
        %v957 = vsel %vm721, %v952, 0
        %959 = vmatpush.msra.mxu0 0.0
        %960 = vmatpush.msra.mxu0 0.0
        %961 = vmatpush.msra.mxu0 0.0
        %962 = vmatpush.msra.mxu0 0.0
        %963 = vmatpush.msra.mxu0 0.0
        %964 = vmatpush.msra.mxu0 0.0
        %965 = vmatpush.msra.mxu0 0.0
        %966 = vmatpush.msra.mxu0 0.0
        %967 = vmatpush.msra.mxu0 0.0
        %968 = vmatpush.msra.mxu0 0.0
        %969 = vmatpush.msra.mxu0 0.0
        %970 = vmatpush.msra.mxu0 0.0
        %971 = vmatpush.msra.mxu0 0.0
        %972 = vmatpush.msra.mxu0 %v955
        %973 = vmatpush.msra.mxu0 %v954
        %974 = vmatpush.msra.mxu0 %v953
        %975 = vmatmul.f32.gmra.mxu0 %v957
        %v976 = vpop.f32.mrf.mxu0
        %v977 = vadd.f32 0.0, %v976
        %978 = vdwg.mxu0
        %v979 = vadd.f32 %v901, %v977
        %v980 = vperm.slane %v656, 0
        %v982 = vsel %vm481, %v979, 0
        %984 = vmatpush.msra.mxu0 0.0
        %985 = vmatpush.msra.mxu0 0.0
        %986 = vmatpush.msra.mxu0 0.0
        %987 = vmatpush.msra.mxu0 0.0
        %988 = vmatpush.msra.mxu0 0.0
        %989 = vmatpush.msra.mxu0 0.0
        %990 = vmatpush.msra.mxu0 0.0
        %991 = vmatpush.msra.mxu0 0.0
        %992 = vmatpush.msra.mxu0 0.0
        %993 = vmatpush.msra.mxu0 0.0
        %994 = vmatpush.msra.mxu0 0.0
        %995 = vmatpush.msra.mxu0 0.0
        %996 = vmatpush.msra.mxu0 %v655
        %997 = vmatpush.msra.mxu0 %v654
        %998 = vmatpush.msra.mxu0 %v653
        %999 = vmatpush.msra.mxu0 %v652
        %1000 = vmatmul.f32.gmra.mxu0 %v982
        %v1001 = vpop.f32.mrf.mxu0
        %v1002 = vadd.f32 %v980, %v1001
        %1003 = vdwg.mxu0
        %v1004 = vmax.f32 %v1002, 0.0
        %v1005 = vadd.f32 %v979, %v1004
        %v1006 = vld [vmem:[%s1 + $0xc0] sm:$0xff]
        %v1007 = vld [vmem:[%s1 + $0xc8] sm:$0xff]
        %v1008 = vld [vmem:[%s1 + $0xd0] sm:$0xff]
        %v1009 = vld [vmem:[%s1 + $0xd8] sm:$0xff]
        %v1010 = vld [vmem:[%s1 + $0x4dc] sm:$0x1]
        %v1011 = vperm.slane %v1010, 0
        %v1013 = vsel %vm481, %v393, 0
        %1015 = vmatpush.msra.mxu0 0.0
        %1016 = vmatpush.msra.mxu0 0.0
        %1017 = vmatpush.msra.mxu0 0.0
        %1018 = vmatpush.msra.mxu0 0.0
        %1019 = vmatpush.msra.mxu0 0.0
        %1020 = vmatpush.msra.mxu0 0.0
        %1021 = vmatpush.msra.mxu0 0.0
        %1022 = vmatpush.msra.mxu0 0.0
        %1023 = vmatpush.msra.mxu0 0.0
        %1024 = vmatpush.msra.mxu0 0.0
        %1025 = vmatpush.msra.mxu0 0.0
        %1026 = vmatpush.msra.mxu0 0.0
        %1027 = vmatpush.msra.mxu0 %v1009
        %1028 = vmatpush.msra.mxu0 %v1008
        %1029 = vmatpush.msra.mxu0 %v1007
        %1030 = vmatpush.msra.mxu0 %v1006
        %1031 = vmatmul.f32.gmra.mxu0 %v1013
        %v1032 = vpop.f32.mrf.mxu0
        %v1033 = vadd.f32 %v1011, %v1032
        %1034 = vdwg.mxu0
        %v1035 = vld [vmem:[%s1 + $0xe0] sm:$0xff]
        %v1036 = vld [vmem:[%s1 + $0xe8] sm:$0xff]
        %v1037 = vld [vmem:[%s1 + $0xf0] sm:$0xff]
        %v1038 = vld [vmem:[%s1 + $0xf8] sm:$0xff]
        %v1039 = vld [vmem:[%s1 + $0x100] sm:$0xff]
        %v1040 = vld [vmem:[%s1 + $0x108] sm:$0xff]
        %v1041 = vld [vmem:[%s1 + $0x110] sm:$0xff]
        %v1042 = vld [vmem:[%s1 + $0x118] sm:$0xff]
        %1043 = vmatpush.msra.mxu0 0.0
        %1044 = vmatpush.msra.mxu0 0.0
        %1045 = vmatpush.msra.mxu0 0.0
        %1046 = vmatpush.msra.mxu0 0.0
        %1047 = vmatpush.msra.mxu0 0.0
        %1048 = vmatpush.msra.mxu0 0.0
        %1049 = vmatpush.msra.mxu0 0.0
        %1050 = vmatpush.msra.mxu0 0.0
        %1051 = vmatpush.msra.mxu0 0.0
        %1052 = vmatpush.msra.mxu0 0.0
        %1053 = vmatpush.msra.mxu0 0.0
        %1054 = vmatpush.msra.mxu0 0.0
        %1055 = vmatpush.msra.mxu0 %v1042
        %1056 = vmatpush.msra.mxu0 %v1041
        %1057 = vmatpush.msra.mxu0 %v1040
        %1058 = vmatpush.msra.mxu0 %v1039
        %1059 = vmatmul.f32.gmra.mxu0 %v513
        %v1060 = vpop.f32.mrf.mxu0
        %v1061 = vadd.f32 0.0, %v1060
        %1062 = vmatmul.f32.gmra.mxu0 %v516
        %v1063 = vpop.f32.mrf.mxu0
        %v1064 = vadd.f32 0.0, %v1063
        %1065 = vmatmul.f32.gmra.mxu0 %v519
        %v1066 = vpop.f32.mrf.mxu0
        %v1067 = vadd.f32 0.0, %v1066
        %1068 = vdwg.mxu0
        %v1070 = vsel %vm481, %v467, 0
        %v1073 = vsel %vm481, %v470, 0
        %v1076 = vsel %vm481, %v473, 0
        %1078 = vmatpush.msra.mxu0 0.0
        %1079 = vmatpush.msra.mxu0 0.0
        %1080 = vmatpush.msra.mxu0 0.0
        %1081 = vmatpush.msra.mxu0 0.0
        %1082 = vmatpush.msra.mxu0 0.0
        %1083 = vmatpush.msra.mxu0 0.0
        %1084 = vmatpush.msra.mxu0 0.0
        %1085 = vmatpush.msra.mxu0 0.0
        %1086 = vmatpush.msra.mxu0 0.0
        %1087 = vmatpush.msra.mxu0 0.0
        %1088 = vmatpush.msra.mxu0 0.0
        %1089 = vmatpush.msra.mxu0 0.0
        %1090 = vmatpush.msra.mxu0 %v1038
        %1091 = vmatpush.msra.mxu0 %v1037
        %1092 = vmatpush.msra.mxu0 %v1036
        %1093 = vmatpush.msra.mxu0 %v1035
        %1094 = vmatmul.f32.gmra.mxu0 %v1070
        %v1095 = vpop.f32.mrf.mxu0
        %v1096 = vadd.f32 %v1061, %v1095
        %1097 = vmatmul.f32.gmra.mxu0 %v1073
        %v1098 = vpop.f32.mrf.mxu0
        %v1099 = vadd.f32 %v1064, %v1098
        %1100 = vmatmul.f32.gmra.mxu0 %v1076
        %v1101 = vpop.f32.mrf.mxu0
        %v1102 = vadd.f32 %v1067, %v1101
        %1103 = vdwg.mxu0
        %v1104 = vld [vmem:[%s1 + $0x4dd] sm:$0x1]
        %v1105 = vperm.slane %v1104, 0
        %v1106 = vadd.f32 %v1096, %v1105
        %v1107 = vadd.f32 %v1099, %v1105
        %v1108 = vadd.f32 %v1102, %v1105
        %v1109 = vld [vmem:[%s1 + $0x120] sm:$0xff]
        %v1110 = vld [vmem:[%s1 + $0x128] sm:$0xff]
        %v1111 = vld [vmem:[%s1 + $0x130] sm:$0xff]
        %v1112 = vld [vmem:[%s1 + $0x138] sm:$0xff]
        %v1113 = vld [vmem:[%s1 + $0x140] sm:$0xff]
        %v1114 = vld [vmem:[%s1 + $0x148] sm:$0xff]
        %v1115 = vld [vmem:[%s1 + $0x150] sm:$0xff]
        %v1116 = vld [vmem:[%s1 + $0x158] sm:$0xff]
        %1117 = vmatpush.msra.mxu0 0.0
        %1118 = vmatpush.msra.mxu0 0.0
        %1119 = vmatpush.msra.mxu0 0.0
        %1120 = vmatpush.msra.mxu0 0.0
        %1121 = vmatpush.msra.mxu0 0.0
        %1122 = vmatpush.msra.mxu0 0.0
        %1123 = vmatpush.msra.mxu0 0.0
        %1124 = vmatpush.msra.mxu0 0.0
        %1125 = vmatpush.msra.mxu0 0.0
        %1126 = vmatpush.msra.mxu0 0.0
        %1127 = vmatpush.msra.mxu0 0.0
        %1128 = vmatpush.msra.mxu0 0.0
        %1129 = vmatpush.msra.mxu0 %v1116
        %1130 = vmatpush.msra.mxu0 %v1115
        %1131 = vmatpush.msra.mxu0 %v1114
        %1132 = vmatpush.msra.mxu0 %v1113
        %1133 = vmatmul.f32.gmra.mxu0 %v513
        %v1134 = vpop.f32.mrf.mxu0
        %v1135 = vadd.f32 0.0, %v1134
        %1136 = vmatmul.f32.gmra.mxu0 %v516
        %v1137 = vpop.f32.mrf.mxu0
        %v1138 = vadd.f32 0.0, %v1137
        %1139 = vmatmul.f32.gmra.mxu0 %v519
        %v1140 = vpop.f32.mrf.mxu0
        %v1141 = vadd.f32 0.0, %v1140
        %1142 = vdwg.mxu0
        %1143 = vmatpush.msra.mxu0 0.0
        %1144 = vmatpush.msra.mxu0 0.0
        %1145 = vmatpush.msra.mxu0 0.0
        %1146 = vmatpush.msra.mxu0 0.0
        %1147 = vmatpush.msra.mxu0 0.0
        %1148 = vmatpush.msra.mxu0 0.0
        %1149 = vmatpush.msra.mxu0 0.0
        %1150 = vmatpush.msra.mxu0 0.0
        %1151 = vmatpush.msra.mxu0 0.0
        %1152 = vmatpush.msra.mxu0 0.0
        %1153 = vmatpush.msra.mxu0 0.0
        %1154 = vmatpush.msra.mxu0 0.0
        %1155 = vmatpush.msra.mxu0 %v1112
        %1156 = vmatpush.msra.mxu0 %v1111
        %1157 = vmatpush.msra.mxu0 %v1110
        %1158 = vmatpush.msra.mxu0 %v1109
        %1159 = vmatmul.f32.gmra.mxu0 %v1070
        %v1160 = vpop.f32.mrf.mxu0
        %v1161 = vadd.f32 %v1135, %v1160
        %1162 = vmatmul.f32.gmra.mxu0 %v1073
        %v1163 = vpop.f32.mrf.mxu0
        %v1164 = vadd.f32 %v1138, %v1163
        %1165 = vmatmul.f32.gmra.mxu0 %v1076
        %v1166 = vpop.f32.mrf.mxu0
        %v1167 = vadd.f32 %v1141, %v1166
        %1168 = vdwg.mxu0
        %v1169 = vld [vmem:[%s1 + $0x4de] sm:$0x1]
        %v1170 = vperm.slane %v1169, 0
        %v1171 = vadd.f32 %v1161, %v1170
        %v1172 = vadd.f32 %v1164, %v1170
        %v1173 = vadd.f32 %v1167, %v1170
        %v1174 = vld [vmem:[%s1 + $0x160] sm:$0xff]
        %v1175 = vld [vmem:[%s1 + $0x168] sm:$0xff]
        %v1176 = vld [vmem:[%s1 + $0x170] sm:$0xff]
        %v1177 = vld [vmem:[%s1 + $0x178] sm:$0xff]
        %v1178 = vld [vmem:[%s1 + $0x4df] sm:$0x1]
        %v1179 = vmul.f32 %v1033, %v657
        %v1181 = vsel %vm481, %v1179, 0
        %v1184 = vsel %vm481, %v1106, 0
        %v1187 = vsel %vm481, %v1107, 0
        %v1190 = vsel %vm481, %v1108, 0
        %1192 = vmatpush.xpose.msra.mxu0 0.0
        %1193 = vmatpush.xpose.msra.mxu0 0.0
        %1194 = vmatpush.xpose.msra.mxu0 0.0
        %1195 = vmatpush.xpose.msra.mxu0 0.0
        %1196 = vmatpush.xpose.msra.mxu0 0.0
        %1197 = vmatpush.xpose.msra.mxu0 0.0
        %1198 = vmatpush.xpose.msra.mxu0 0.0
        %1199 = vmatpush.xpose.msra.mxu0 0.0
        %1200 = vmatpush.xpose.msra.mxu0 0.0
        %1201 = vmatpush.xpose.msra.mxu0 0.0
        %1202 = vmatpush.xpose.msra.mxu0 0.0
        %1203 = vmatpush.xpose.msra.mxu0 0.0
        %1204 = vmatpush.xpose.msra.mxu0 0.0
        %1205 = vmatpush.xpose.msra.mxu0 %v1190
        %1206 = vmatpush.xpose.msra.mxu0 %v1187
        %1207 = vmatpush.xpose.msra.mxu0 %v1184
        %1208 = vmatmul.f32.gmra.mxu0 %v1181
        %v1209 = vpop.f32.mrf.mxu0
        %v1210 = vadd.f32 0.0, %v1209
        %1211 = vdwg.mxu0
        %v1212 = vmul.f32 %v1210, 0.17677669
        %v1213 = vadd.f32 %v1212, %v157
        %v1214 = vsel %vm721, %v1213, -inf
        %1215 = vmax.xlane.f32.xlu0 %v1214
        %v1216 = vpop.xlane.xlu0 %1215
        %v1217 = vsub.f32 %v1213, %v1216
        %v1218 = vmul.f32 %v1217, 1.442695
        %v1219 = vpow.pop %v1218
        %v1220 = vsel %vm721, %v1219, 0.0
        %1221 = vadd.xlane.f32.xlu0 %v1220
        %v1222 = vpop.xlane.xlu0 %1221
        %v1223 = vrcp.pop %v1222
        %v1224 = vmul.f32 %v1222, %v1223
        %v1225 = vsub.f32 1.0, %v1224
        %v1226 = vmul.f32 %v1223, %v1225
        %v1227 = vadd.f32 %v1223, %v1226
        %vm1228 = vweird.f32 %v1222
        %vm1229 = vweird.f32 %v1223
        %vm1230 = vmor %vm1228, %vm1229
        %v1231 = vsel %vm1230, %v1223, %v1227
        %v1232 = vand.u32 2147483647, %v1222
        %vm1233 = vcmp.eq.f32.partialorder %v1232, 8.507059e+37
        %v1234 = vand.u32 %v1222, 2147483648
        %v1235 = vor.u32 1.1754944e-38, %v1234
        %v1236 = vsel %vm1233, %v1235, %v1231
        %v1237 = vmul.f32 %v1219, %v1236
        %v1238 = vmul.f32 %v1171, %v657
        %v1239 = vmul.f32 %v1172, %v657
        %v1240 = vmul.f32 %v1173, %v657
        %v1242 = vsel %vm721, %v1237, 0
        %1244 = vmatpush.msra.mxu0 0.0
        %1245 = vmatpush.msra.mxu0 0.0
        %1246 = vmatpush.msra.mxu0 0.0
        %1247 = vmatpush.msra.mxu0 0.0
        %1248 = vmatpush.msra.mxu0 0.0
        %1249 = vmatpush.msra.mxu0 0.0
        %1250 = vmatpush.msra.mxu0 0.0
        %1251 = vmatpush.msra.mxu0 0.0
        %1252 = vmatpush.msra.mxu0 0.0
        %1253 = vmatpush.msra.mxu0 0.0
        %1254 = vmatpush.msra.mxu0 0.0
        %1255 = vmatpush.msra.mxu0 0.0
        %1256 = vmatpush.msra.mxu0 0.0
        %1257 = vmatpush.msra.mxu0 %v1240
        %1258 = vmatpush.msra.mxu0 %v1239
        %1259 = vmatpush.msra.mxu0 %v1238
        %1260 = vmatmul.f32.gmra.mxu0 %v1242
        %v1261 = vpop.f32.mrf.mxu0
        %v1262 = vadd.f32 0.0, %v1261
        %1263 = vdwg.mxu0
        %v1264 = vadd.f32 %v1033, %v1262
        %v1265 = vmul.f32 %v1033, %v746
        %v1267 = vsel %vm481, %v1265, 0
        %1269 = vmatpush.xpose.msra.mxu0 0.0
        %1270 = vmatpush.xpose.msra.mxu0 0.0
        %1271 = vmatpush.xpose.msra.mxu0 0.0
        %1272 = vmatpush.xpose.msra.mxu0 0.0
        %1273 = vmatpush.xpose.msra.mxu0 0.0
        %1274 = vmatpush.xpose.msra.mxu0 0.0
        %1275 = vmatpush.xpose.msra.mxu0 0.0
        %1276 = vmatpush.xpose.msra.mxu0 0.0
        %1277 = vmatpush.xpose.msra.mxu0 0.0
        %1278 = vmatpush.xpose.msra.mxu0 0.0
        %1279 = vmatpush.xpose.msra.mxu0 0.0
        %1280 = vmatpush.xpose.msra.mxu0 0.0
        %1281 = vmatpush.xpose.msra.mxu0 0.0
        %1282 = vmatpush.xpose.msra.mxu0 %v1190
        %1283 = vmatpush.xpose.msra.mxu0 %v1187
        %1284 = vmatpush.xpose.msra.mxu0 %v1184
        %1285 = vmatmul.f32.gmra.mxu0 %v1267
        %v1286 = vpop.f32.mrf.mxu0
        %v1287 = vadd.f32 0.0, %v1286
        %1288 = vdwg.mxu0
        %v1289 = vmul.f32 %v1287, 0.17677669
        %v1290 = vadd.f32 %v1289, %v157
        %v1291 = vsel %vm721, %v1290, -inf
        %1292 = vmax.xlane.f32.xlu0 %v1291
        %v1293 = vpop.xlane.xlu0 %1292
        %v1294 = vsub.f32 %v1290, %v1293
        %v1295 = vmul.f32 %v1294, 1.442695
        %v1296 = vpow.pop %v1295
        %v1297 = vsel %vm721, %v1296, 0.0
        %1298 = vadd.xlane.f32.xlu0 %v1297
        %v1299 = vpop.xlane.xlu0 %1298
        %v1300 = vrcp.pop %v1299
        %v1301 = vmul.f32 %v1299, %v1300
        %v1302 = vsub.f32 1.0, %v1301
        %v1303 = vmul.f32 %v1300, %v1302
        %v1304 = vadd.f32 %v1300, %v1303
        %vm1305 = vweird.f32 %v1299
        %vm1306 = vweird.f32 %v1300
        %vm1307 = vmor %vm1305, %vm1306
        %v1308 = vsel %vm1307, %v1300, %v1304
        %v1309 = vand.u32 2147483647, %v1299
        %vm1310 = vcmp.eq.f32.partialorder %v1309, 8.507059e+37
        %v1311 = vand.u32 %v1299, 2147483648
        %v1312 = vor.u32 1.1754944e-38, %v1311
        %v1313 = vsel %vm1310, %v1312, %v1308
        %v1314 = vmul.f32 %v1296, %v1313
        %v1315 = vmul.f32 %v1171, %v746
        %v1316 = vmul.f32 %v1172, %v746
        %v1317 = vmul.f32 %v1173, %v746
        %v1319 = vsel %vm721, %v1314, 0
        %1321 = vmatpush.msra.mxu0 0.0
        %1322 = vmatpush.msra.mxu0 0.0
        %1323 = vmatpush.msra.mxu0 0.0
        %1324 = vmatpush.msra.mxu0 0.0
        %1325 = vmatpush.msra.mxu0 0.0
        %1326 = vmatpush.msra.mxu0 0.0
        %1327 = vmatpush.msra.mxu0 0.0
        %1328 = vmatpush.msra.mxu0 0.0
        %1329 = vmatpush.msra.mxu0 0.0
        %1330 = vmatpush.msra.mxu0 0.0
        %1331 = vmatpush.msra.mxu0 0.0
        %1332 = vmatpush.msra.mxu0 0.0
        %1333 = vmatpush.msra.mxu0 0.0
        %1334 = vmatpush.msra.mxu0 %v1317
        %1335 = vmatpush.msra.mxu0 %v1316
        %1336 = vmatpush.msra.mxu0 %v1315
        %1337 = vmatmul.f32.gmra.mxu0 %v1319
        %v1338 = vpop.f32.mrf.mxu0
        %v1339 = vadd.f32 0.0, %v1338
        %1340 = vdwg.mxu0
        %v1341 = vadd.f32 %v1264, %v1339
        %v1342 = vmul.f32 %v1033, %v824
        %v1344 = vsel %vm481, %v1342, 0
        %1346 = vmatpush.xpose.msra.mxu0 0.0
        %1347 = vmatpush.xpose.msra.mxu0 0.0
        %1348 = vmatpush.xpose.msra.mxu0 0.0
        %1349 = vmatpush.xpose.msra.mxu0 0.0
        %1350 = vmatpush.xpose.msra.mxu0 0.0
        %1351 = vmatpush.xpose.msra.mxu0 0.0
        %1352 = vmatpush.xpose.msra.mxu0 0.0
        %1353 = vmatpush.xpose.msra.mxu0 0.0
        %1354 = vmatpush.xpose.msra.mxu0 0.0
        %1355 = vmatpush.xpose.msra.mxu0 0.0
        %1356 = vmatpush.xpose.msra.mxu0 0.0
        %1357 = vmatpush.xpose.msra.mxu0 0.0
        %1358 = vmatpush.xpose.msra.mxu0 0.0
        %1359 = vmatpush.xpose.msra.mxu0 %v1190
        %1360 = vmatpush.xpose.msra.mxu0 %v1187
        %1361 = vmatpush.xpose.msra.mxu0 %v1184
        %1362 = vmatmul.f32.gmra.mxu0 %v1344
        %v1363 = vpop.f32.mrf.mxu0
        %v1364 = vadd.f32 0.0, %v1363
        %1365 = vdwg.mxu0
        %v1366 = vmul.f32 %v1364, 0.17677669
        %v1367 = vadd.f32 %v1366, %v157
        %v1368 = vsel %vm721, %v1367, -inf
        %1369 = vmax.xlane.f32.xlu0 %v1368
        %v1370 = vpop.xlane.xlu0 %1369
        %v1371 = vsub.f32 %v1367, %v1370
        %v1372 = vmul.f32 %v1371, 1.442695
        %v1373 = vpow.pop %v1372
        %v1374 = vsel %vm721, %v1373, 0.0
        %1375 = vadd.xlane.f32.xlu0 %v1374
        %v1376 = vpop.xlane.xlu0 %1375
        %v1377 = vrcp.pop %v1376
        %v1378 = vmul.f32 %v1376, %v1377
        %v1379 = vsub.f32 1.0, %v1378
        %v1380 = vmul.f32 %v1377, %v1379
        %v1381 = vadd.f32 %v1377, %v1380
        %vm1382 = vweird.f32 %v1376
        %vm1383 = vweird.f32 %v1377
        %vm1384 = vmor %vm1382, %vm1383
        %v1385 = vsel %vm1384, %v1377, %v1381
        %v1386 = vand.u32 2147483647, %v1376
        %vm1387 = vcmp.eq.f32.partialorder %v1386, 8.507059e+37
        %v1388 = vand.u32 %v1376, 2147483648
        %v1389 = vor.u32 1.1754944e-38, %v1388
        %v1390 = vsel %vm1387, %v1389, %v1385
        %v1391 = vmul.f32 %v1373, %v1390
        %v1392 = vmul.f32 %v1171, %v824
        %v1393 = vmul.f32 %v1172, %v824
        %v1394 = vmul.f32 %v1173, %v824
        %v1396 = vsel %vm721, %v1391, 0
        %1398 = vmatpush.msra.mxu0 0.0
        %1399 = vmatpush.msra.mxu0 0.0
        %1400 = vmatpush.msra.mxu0 0.0
        %1401 = vmatpush.msra.mxu0 0.0
        %1402 = vmatpush.msra.mxu0 0.0
        %1403 = vmatpush.msra.mxu0 0.0
        %1404 = vmatpush.msra.mxu0 0.0
        %1405 = vmatpush.msra.mxu0 0.0
        %1406 = vmatpush.msra.mxu0 0.0
        %1407 = vmatpush.msra.mxu0 0.0
        %1408 = vmatpush.msra.mxu0 0.0
        %1409 = vmatpush.msra.mxu0 0.0
        %1410 = vmatpush.msra.mxu0 0.0
        %1411 = vmatpush.msra.mxu0 %v1394
        %1412 = vmatpush.msra.mxu0 %v1393
        %1413 = vmatpush.msra.mxu0 %v1392
        %1414 = vmatmul.f32.gmra.mxu0 %v1396
        %v1415 = vpop.f32.mrf.mxu0
        %v1416 = vadd.f32 0.0, %v1415
        %1417 = vdwg.mxu0
        %v1418 = vadd.f32 %v1341, %v1416
        %v1419 = vmul.f32 %v1033, %v902
        %v1421 = vsel %vm481, %v1419, 0
        %1423 = vmatpush.xpose.msra.mxu0 0.0
        %1424 = vmatpush.xpose.msra.mxu0 0.0
        %1425 = vmatpush.xpose.msra.mxu0 0.0
        %1426 = vmatpush.xpose.msra.mxu0 0.0
        %1427 = vmatpush.xpose.msra.mxu0 0.0
        %1428 = vmatpush.xpose.msra.mxu0 0.0
        %1429 = vmatpush.xpose.msra.mxu0 0.0
        %1430 = vmatpush.xpose.msra.mxu0 0.0
        %1431 = vmatpush.xpose.msra.mxu0 0.0
        %1432 = vmatpush.xpose.msra.mxu0 0.0
        %1433 = vmatpush.xpose.msra.mxu0 0.0
        %1434 = vmatpush.xpose.msra.mxu0 0.0
        %1435 = vmatpush.xpose.msra.mxu0 0.0
        %1436 = vmatpush.xpose.msra.mxu0 %v1190
        %1437 = vmatpush.xpose.msra.mxu0 %v1187
        %1438 = vmatpush.xpose.msra.mxu0 %v1184
        %1439 = vmatmul.f32.gmra.mxu0 %v1421
        %v1440 = vpop.f32.mrf.mxu0
        %v1441 = vadd.f32 0.0, %v1440
        %1442 = vdwg.mxu0
        %v1443 = vmul.f32 %v1441, 0.17677669
        %v1444 = vadd.f32 %v1443, %v157
        %v1445 = vsel %vm721, %v1444, -inf
        %1446 = vmax.xlane.f32.xlu0 %v1445
        %v1447 = vpop.xlane.xlu0 %1446
        %v1448 = vsub.f32 %v1444, %v1447
        %v1449 = vmul.f32 %v1448, 1.442695
        %v1450 = vpow.pop %v1449
        %v1451 = vsel %vm721, %v1450, 0.0
        %1452 = vadd.xlane.f32.xlu0 %v1451
        %v1453 = vpop.xlane.xlu0 %1452
        %v1454 = vrcp.pop %v1453
        %v1455 = vmul.f32 %v1453, %v1454
        %v1456 = vsub.f32 1.0, %v1455
        %v1457 = vmul.f32 %v1454, %v1456
        %v1458 = vadd.f32 %v1454, %v1457
        %vm1459 = vweird.f32 %v1453
        %vm1460 = vweird.f32 %v1454
        %vm1461 = vmor %vm1459, %vm1460
        %v1462 = vsel %vm1461, %v1454, %v1458
        %v1463 = vand.u32 2147483647, %v1453
        %vm1464 = vcmp.eq.f32.partialorder %v1463, 8.507059e+37
        %v1465 = vand.u32 %v1453, 2147483648
        %v1466 = vor.u32 1.1754944e-38, %v1465
        %v1467 = vsel %vm1464, %v1466, %v1462
        %v1468 = vmul.f32 %v1450, %v1467
        %v1469 = vmul.f32 %v1171, %v902
        %v1470 = vmul.f32 %v1172, %v902
        %v1471 = vmul.f32 %v1173, %v902
        %v1473 = vsel %vm721, %v1468, 0
        %1475 = vmatpush.msra.mxu0 0.0
        %1476 = vmatpush.msra.mxu0 0.0
        %1477 = vmatpush.msra.mxu0 0.0
        %1478 = vmatpush.msra.mxu0 0.0
        %1479 = vmatpush.msra.mxu0 0.0
        %1480 = vmatpush.msra.mxu0 0.0
        %1481 = vmatpush.msra.mxu0 0.0
        %1482 = vmatpush.msra.mxu0 0.0
        %1483 = vmatpush.msra.mxu0 0.0
        %1484 = vmatpush.msra.mxu0 0.0
        %1485 = vmatpush.msra.mxu0 0.0
        %1486 = vmatpush.msra.mxu0 0.0
        %1487 = vmatpush.msra.mxu0 0.0
        %1488 = vmatpush.msra.mxu0 %v1471
        %1489 = vmatpush.msra.mxu0 %v1470
        %1490 = vmatpush.msra.mxu0 %v1469
        %1491 = vmatmul.f32.gmra.mxu0 %v1473
        %v1492 = vpop.f32.mrf.mxu0
        %v1493 = vadd.f32 0.0, %v1492
        %1494 = vdwg.mxu0
        %v1495 = vadd.f32 %v1418, %v1493
        %v1496 = vperm.slane %v1178, 0
        %v1498 = vsel %vm481, %v1495, 0
        %1500 = vmatpush.msra.mxu0 0.0
        %1501 = vmatpush.msra.mxu0 0.0
        %1502 = vmatpush.msra.mxu0 0.0
        %1503 = vmatpush.msra.mxu0 0.0
        %1504 = vmatpush.msra.mxu0 0.0
        %1505 = vmatpush.msra.mxu0 0.0
        %1506 = vmatpush.msra.mxu0 0.0
        %1507 = vmatpush.msra.mxu0 0.0
        %1508 = vmatpush.msra.mxu0 0.0
        %1509 = vmatpush.msra.mxu0 0.0
        %1510 = vmatpush.msra.mxu0 0.0
        %1511 = vmatpush.msra.mxu0 0.0
        %1512 = vmatpush.msra.mxu0 %v1177
        %1513 = vmatpush.msra.mxu0 %v1176
        %1514 = vmatpush.msra.mxu0 %v1175
        %1515 = vmatpush.msra.mxu0 %v1174
        %1516 = vmatmul.f32.gmra.mxu0 %v1498
        %v1517 = vpop.f32.mrf.mxu0
        %v1518 = vadd.f32 %v1496, %v1517
        %1519 = vdwg.mxu0
        %v1520 = vmax.f32 %v1518, 0.0
        %v1521 = vadd.f32 %v1495, %v1520
        %v1522 = vld [vmem:[%s1 + $0x180] sm:$0xff]
        %v1523 = vld [vmem:[%s1 + $0x188] sm:$0xff]
        %v1524 = vld [vmem:[%s1 + $0x190] sm:$0xff]
        %v1525 = vld [vmem:[%s1 + $0x198] sm:$0xff]
        %1526 = vmatpush.msra.mxu0 0.0
        %1527 = vmatpush.msra.mxu0 0.0
        %1528 = vmatpush.msra.mxu0 0.0
        %1529 = vmatpush.msra.mxu0 0.0
        %1530 = vmatpush.msra.mxu0 0.0
        %1531 = vmatpush.msra.mxu0 0.0
        %1532 = vmatpush.msra.mxu0 0.0
        %1533 = vmatpush.msra.mxu0 0.0
        %1534 = vmatpush.msra.mxu0 0.0
        %1535 = vmatpush.msra.mxu0 0.0
        %1536 = vmatpush.msra.mxu0 0.0
        %1537 = vmatpush.msra.mxu0 0.0
        %1538 = vmatpush.msra.mxu0 %v1525
        %1539 = vmatpush.msra.mxu0 %v1524
        %1540 = vmatpush.msra.mxu0 %v1523
        %1541 = vmatpush.msra.mxu0 %v1522
        %1542 = vmatmul.f32.gmra.mxu0 %v513
        %v1543 = vpop.f32.mrf.mxu0
        %v1544 = vadd.f32 0.0, %v1543
        %1545 = vmatmul.f32.gmra.mxu0 %v516
        %v1546 = vpop.f32.mrf.mxu0
        %v1547 = vadd.f32 0.0, %v1546
        %1548 = vmatmul.f32.gmra.mxu0 %v519
        %v1549 = vpop.f32.mrf.mxu0
        %v1550 = vadd.f32 0.0, %v1549
        %1551 = vdwg.mxu0
        %v1552 = vadd.f32 %v225, %v1544
        %v1553 = vadd.f32 %v226, %v1547
        %v1554 = vadd.f32 %v227, %v1550
        %v1555 = vld [vmem:[%s1 + $0x1a0] sm:$0xff]
        %v1556 = vld [vmem:[%s1 + $0x1a8] sm:$0xff]
        %v1557 = vld [vmem:[%s1 + $0x1b0] sm:$0xff]
        %v1558 = vld [vmem:[%s1 + $0x1b8] sm:$0xff]
        %1559 = vmatpush.msra.mxu0 0.0
        %1560 = vmatpush.msra.mxu0 0.0
        %1561 = vmatpush.msra.mxu0 0.0
        %1562 = vmatpush.msra.mxu0 0.0
        %1563 = vmatpush.msra.mxu0 0.0
        %1564 = vmatpush.msra.mxu0 0.0
        %1565 = vmatpush.msra.mxu0 0.0
        %1566 = vmatpush.msra.mxu0 0.0
        %1567 = vmatpush.msra.mxu0 0.0
        %1568 = vmatpush.msra.mxu0 0.0
        %1569 = vmatpush.msra.mxu0 0.0
        %1570 = vmatpush.msra.mxu0 0.0
        %1571 = vmatpush.msra.mxu0 %v1558
        %1572 = vmatpush.msra.mxu0 %v1557
        %1573 = vmatpush.msra.mxu0 %v1556
        %1574 = vmatpush.msra.mxu0 %v1555
        %1575 = vmatmul.f32.gmra.mxu0 %v548
        %v1576 = vpop.f32.mrf.mxu0
        %v1577 = vadd.f32 0.0, %v1576
        %1578 = vmatmul.f32.gmra.mxu0 %v551
        %v1579 = vpop.f32.mrf.mxu0
        %v1580 = vadd.f32 0.0, %v1579
        %1581 = vmatmul.f32.gmra.mxu0 %v554
        %v1582 = vpop.f32.mrf.mxu0
        %v1583 = vadd.f32 0.0, %v1582
        %1584 = vdwg.mxu0
        %v1585 = vadd.f32 %v1552, %v1577
        %v1586 = vadd.f32 %v1553, %v1580
        %v1587 = vadd.f32 %v1554, %v1583
        %v1588 = vld [vmem:[%s1 + $0x1c0] sm:$0xff]
        %v1589 = vld [vmem:[%s1 + $0x1c8] sm:$0xff]
        %v1590 = vld [vmem:[%s1 + $0x1d0] sm:$0xff]
        %v1591 = vld [vmem:[%s1 + $0x1d8] sm:$0xff]
        %1592 = vmatpush.msra.mxu0 0.0
        %1593 = vmatpush.msra.mxu0 0.0
        %1594 = vmatpush.msra.mxu0 0.0
        %1595 = vmatpush.msra.mxu0 0.0
        %1596 = vmatpush.msra.mxu0 0.0
        %1597 = vmatpush.msra.mxu0 0.0
        %1598 = vmatpush.msra.mxu0 0.0
        %1599 = vmatpush.msra.mxu0 0.0
        %1600 = vmatpush.msra.mxu0 0.0
        %1601 = vmatpush.msra.mxu0 0.0
        %1602 = vmatpush.msra.mxu0 0.0
        %1603 = vmatpush.msra.mxu0 0.0
        %1604 = vmatpush.msra.mxu0 %v1591
        %1605 = vmatpush.msra.mxu0 %v1590
        %1606 = vmatpush.msra.mxu0 %v1589
        %1607 = vmatpush.msra.mxu0 %v1588
        %1608 = vmatmul.f32.gmra.mxu0 %v1070
        %v1609 = vpop.f32.mrf.mxu0
        %v1610 = vadd.f32 0.0, %v1609
        %1611 = vmatmul.f32.gmra.mxu0 %v1073
        %v1612 = vpop.f32.mrf.mxu0
        %v1613 = vadd.f32 0.0, %v1612
        %1614 = vmatmul.f32.gmra.mxu0 %v1076
        %v1615 = vpop.f32.mrf.mxu0
        %v1616 = vadd.f32 0.0, %v1615
        %1617 = vdwg.mxu0
        %v1618 = vadd.f32 %v1585, %v1610
        %v1619 = vadd.f32 %v1586, %v1613
        %v1620 = vadd.f32 %v1587, %v1616
        %v1621 = vld [vmem:[%s1 + $0x4e0] sm:$0x1]
        %v1622 = vperm.slane %v1621, 0
        %v1623 = vadd.f32 %v1618, %v1622
        %v1624 = vadd.f32 %v1619, %v1622
        %v1625 = vadd.f32 %v1620, %v1622
        %v1626 = vmax.f32 %v1623, 0.0
        %v1627 = vmax.f32 %v1624, 0.0
        %v1628 = vmax.f32 %v1625, 0.0
        %v1629 = vmul.f32 %v1626, %v213
        %v1630 = vmul.f32 %v1627, %v218
        %v1631 = vmul.f32 %v1628, %v223
        %v1632 = vld [vmem:[%s1 + $0x1e0] sm:$0xff]
        %v1633 = vld [vmem:[%s1 + $0x1e8] sm:$0xff]
        %v1634 = vld [vmem:[%s1 + $0x1f0] sm:$0xff]
        %v1635 = vld [vmem:[%s1 + $0x1f8] sm:$0xff]
        %v1636 = vld [vmem:[%s1 + $0x4e1] sm:$0x1]
        %v1637 = vperm.slane %v1636, 0
        %v1639 = vsel %vm481, %v1005, 0
        %1641 = vmatpush.msra.mxu0 0.0
        %1642 = vmatpush.msra.mxu0 0.0
        %1643 = vmatpush.msra.mxu0 0.0
        %1644 = vmatpush.msra.mxu0 0.0
        %1645 = vmatpush.msra.mxu0 0.0
        %1646 = vmatpush.msra.mxu0 0.0
        %1647 = vmatpush.msra.mxu0 0.0
        %1648 = vmatpush.msra.mxu0 0.0
        %1649 = vmatpush.msra.mxu0 0.0
        %1650 = vmatpush.msra.mxu0 0.0
        %1651 = vmatpush.msra.mxu0 0.0
        %1652 = vmatpush.msra.mxu0 0.0
        %1653 = vmatpush.msra.mxu0 %v1635
        %1654 = vmatpush.msra.mxu0 %v1634
        %1655 = vmatpush.msra.mxu0 %v1633
        %1656 = vmatpush.msra.mxu0 %v1632
        %1657 = vmatmul.f32.gmra.mxu0 %v1639
        %v1658 = vpop.f32.mrf.mxu0
        %v1659 = vadd.f32 %v1637, %v1658
        %1660 = vdwg.mxu0
        %v1661 = vld [vmem:[%s1 + $0x200] sm:$0xff]
        %v1662 = vld [vmem:[%s1 + $0x208] sm:$0xff]
        %v1663 = vld [vmem:[%s1 + $0x210] sm:$0xff]
        %v1664 = vld [vmem:[%s1 + $0x218] sm:$0xff]
        %v1665 = vld [vmem:[%s1 + $0x4e2] sm:$0x1]
        %v1666 = vperm.slane %v1665, 0
        %1667 = vmatpush.msra.mxu0 0.0
        %1668 = vmatpush.msra.mxu0 0.0
        %1669 = vmatpush.msra.mxu0 0.0
        %1670 = vmatpush.msra.mxu0 0.0
        %1671 = vmatpush.msra.mxu0 0.0
        %1672 = vmatpush.msra.mxu0 0.0
        %1673 = vmatpush.msra.mxu0 0.0
        %1674 = vmatpush.msra.mxu0 0.0
        %1675 = vmatpush.msra.mxu0 0.0
        %1676 = vmatpush.msra.mxu0 0.0
        %1677 = vmatpush.msra.mxu0 0.0
        %1678 = vmatpush.msra.mxu0 0.0
        %1679 = vmatpush.msra.mxu0 %v1664
        %1680 = vmatpush.msra.mxu0 %v1663
        %1681 = vmatpush.msra.mxu0 %v1662
        %1682 = vmatpush.msra.mxu0 %v1661
        %1683 = vmatmul.f32.gmra.mxu0 %v1639
        %v1684 = vpop.f32.mrf.mxu0
        %v1685 = vadd.f32 %v1666, %v1684
        %1686 = vdwg.mxu0
        %v1687 = vld [vmem:[%s1 + $0x220] sm:$0xff]
        %v1688 = vld [vmem:[%s1 + $0x228] sm:$0xff]
        %v1689 = vld [vmem:[%s1 + $0x230] sm:$0xff]
        %v1690 = vld [vmem:[%s1 + $0x238] sm:$0xff]
        %v1691 = vld [vmem:[%s1 + $0x4e3] sm:$0x1]
        %v1692 = vperm.slane %v1691, 0
        %1693 = vmatpush.msra.mxu0 0.0
        %1694 = vmatpush.msra.mxu0 0.0
        %1695 = vmatpush.msra.mxu0 0.0
        %1696 = vmatpush.msra.mxu0 0.0
        %1697 = vmatpush.msra.mxu0 0.0
        %1698 = vmatpush.msra.mxu0 0.0
        %1699 = vmatpush.msra.mxu0 0.0
        %1700 = vmatpush.msra.mxu0 0.0
        %1701 = vmatpush.msra.mxu0 0.0
        %1702 = vmatpush.msra.mxu0 0.0
        %1703 = vmatpush.msra.mxu0 0.0
        %1704 = vmatpush.msra.mxu0 0.0
        %1705 = vmatpush.msra.mxu0 %v1690
        %1706 = vmatpush.msra.mxu0 %v1689
        %1707 = vmatpush.msra.mxu0 %v1688
        %1708 = vmatpush.msra.mxu0 %v1687
        %1709 = vmatmul.f32.gmra.mxu0 %v1639
        %v1710 = vpop.f32.mrf.mxu0
        %v1711 = vadd.f32 %v1692, %v1710
        %1712 = vdwg.mxu0
        %v1713 = vld [vmem:[%s1 + $0x240] sm:$0xff]
        %v1714 = vld [vmem:[%s1 + $0x248] sm:$0xff]
        %v1715 = vld [vmem:[%s1 + $0x250] sm:$0xff]
        %v1716 = vld [vmem:[%s1 + $0x258] sm:$0xff]
        %v1717 = vld [vmem:[%s1 + $0x4e4] sm:$0x1]
        %v1718 = vmul.f32 %v1659, %v657
        %v1720 = vsel %vm481, %v1718, 0
        %v1723 = vsel %vm481, %v1685, 0
        %1725 = vmatpush.xpose.msra.mxu0 0.0
        %1726 = vmatpush.xpose.msra.mxu0 0.0
        %1727 = vmatpush.xpose.msra.mxu0 0.0
        %1728 = vmatpush.xpose.msra.mxu0 0.0
        %1729 = vmatpush.xpose.msra.mxu0 0.0
        %1730 = vmatpush.xpose.msra.mxu0 0.0
        %1731 = vmatpush.xpose.msra.mxu0 0.0
        %1732 = vmatpush.xpose.msra.mxu0 0.0
        %1733 = vmatpush.xpose.msra.mxu0 0.0
        %1734 = vmatpush.xpose.msra.mxu0 0.0
        %1735 = vmatpush.xpose.msra.mxu0 0.0
        %1736 = vmatpush.xpose.msra.mxu0 0.0
        %1737 = vmatpush.xpose.msra.mxu0 0.0
        %1738 = vmatpush.xpose.msra.mxu0 0.0
        %1739 = vmatpush.xpose.msra.mxu0 0.0
        %1740 = vmatpush.xpose.msra.mxu0 %v1723
        %1741 = vmatmul.f32.gmra.mxu0 %v1720
        %v1742 = vpop.f32.mrf.mxu0
        %v1743 = vadd.f32 0.0, %v1742
        %1744 = vdwg.mxu0
        %v1745 = vmul.f32 %v1743, 0.17677669
        %vm1746 = vcmask 27648
        %v1747 = vsel %vm1746, %v1745, -inf
        %1748 = vmax.xlane.f32.xlu0 %v1747
        %v1749 = vpop.xlane.xlu0 %1748
        %v1750 = vsub.f32 %v1745, %v1749
        %v1751 = vmul.f32 %v1750, 1.442695
        %v1752 = vpow.pop %v1751
        %v1753 = vsel %vm1746, %v1752, 0.0
        %1754 = vadd.xlane.f32.xlu0 %v1753
        %v1755 = vpop.xlane.xlu0 %1754
        %v1756 = vrcp.pop %v1755
        %v1757 = vmul.f32 %v1755, %v1756
        %v1758 = vsub.f32 1.0, %v1757
        %v1759 = vmul.f32 %v1756, %v1758
        %v1760 = vadd.f32 %v1756, %v1759
        %vm1761 = vweird.f32 %v1755
        %vm1762 = vweird.f32 %v1756
        %vm1763 = vmor %vm1761, %vm1762
        %v1764 = vsel %vm1763, %v1756, %v1760
        %v1765 = vand.u32 2147483647, %v1755
        %vm1766 = vcmp.eq.f32.partialorder %v1765, 8.507059e+37
        %v1767 = vand.u32 %v1755, 2147483648
        %v1768 = vor.u32 1.1754944e-38, %v1767
        %v1769 = vsel %vm1766, %v1768, %v1764
        %v1770 = vmul.f32 %v1752, %v1769
        %v1771 = vmul.f32 %v1711, %v657
        %v1773 = vsel %vm435, %v1770, 0
        %v1776 = vsel %vm445, %v1771, 0
        %1778 = vmatpush.msra.mxu0 0.0
        %1779 = vmatpush.msra.mxu0 0.0
        %1780 = vmatpush.msra.mxu0 0.0
        %1781 = vmatpush.msra.mxu0 0.0
        %1782 = vmatpush.msra.mxu0 0.0
        %1783 = vmatpush.msra.mxu0 0.0
        %1784 = vmatpush.msra.mxu0 0.0
        %1785 = vmatpush.msra.mxu0 0.0
        %1786 = vmatpush.msra.mxu0 0.0
        %1787 = vmatpush.msra.mxu0 0.0
        %1788 = vmatpush.msra.mxu0 0.0
        %1789 = vmatpush.msra.mxu0 0.0
        %1790 = vmatpush.msra.mxu0 0.0
        %1791 = vmatpush.msra.mxu0 0.0
        %1792 = vmatpush.msra.mxu0 0.0
        %1793 = vmatpush.msra.mxu0 %v1776
        %1794 = vmatmul.f32.gmra.mxu0 %v1773
        %v1795 = vpop.f32.mrf.mxu0
        %v1796 = vadd.f32 0.0, %v1795
        %1797 = vdwg.mxu0
        %v1798 = vadd.f32 %v1659, %v1796
        %v1799 = vmul.f32 %v1659, %v746
        %v1801 = vsel %vm481, %v1799, 0
        %1803 = vmatpush.xpose.msra.mxu0 0.0
        %1804 = vmatpush.xpose.msra.mxu0 0.0
        %1805 = vmatpush.xpose.msra.mxu0 0.0
        %1806 = vmatpush.xpose.msra.mxu0 0.0
        %1807 = vmatpush.xpose.msra.mxu0 0.0
        %1808 = vmatpush.xpose.msra.mxu0 0.0
        %1809 = vmatpush.xpose.msra.mxu0 0.0
        %1810 = vmatpush.xpose.msra.mxu0 0.0
        %1811 = vmatpush.xpose.msra.mxu0 0.0
        %1812 = vmatpush.xpose.msra.mxu0 0.0
        %1813 = vmatpush.xpose.msra.mxu0 0.0
        %1814 = vmatpush.xpose.msra.mxu0 0.0
        %1815 = vmatpush.xpose.msra.mxu0 0.0
        %1816 = vmatpush.xpose.msra.mxu0 0.0
        %1817 = vmatpush.xpose.msra.mxu0 0.0
        %1818 = vmatpush.xpose.msra.mxu0 %v1723
        %1819 = vmatmul.f32.gmra.mxu0 %v1801
        %v1820 = vpop.f32.mrf.mxu0
        %v1821 = vadd.f32 0.0, %v1820
        %1822 = vdwg.mxu0
        %v1823 = vmul.f32 %v1821, 0.17677669
        %v1824 = vsel %vm1746, %v1823, -inf
        %1825 = vmax.xlane.f32.xlu0 %v1824
        %v1826 = vpop.xlane.xlu0 %1825
        %v1827 = vsub.f32 %v1823, %v1826
        %v1828 = vmul.f32 %v1827, 1.442695
        %v1829 = vpow.pop %v1828
        %v1830 = vsel %vm1746, %v1829, 0.0
        %1831 = vadd.xlane.f32.xlu0 %v1830
        %v1832 = vpop.xlane.xlu0 %1831
        %v1833 = vrcp.pop %v1832
        %v1834 = vmul.f32 %v1832, %v1833
        %v1835 = vsub.f32 1.0, %v1834
        %v1836 = vmul.f32 %v1833, %v1835
        %v1837 = vadd.f32 %v1833, %v1836
        %vm1838 = vweird.f32 %v1832
        %vm1839 = vweird.f32 %v1833
        %vm1840 = vmor %vm1838, %vm1839
        %v1841 = vsel %vm1840, %v1833, %v1837
        %v1842 = vand.u32 2147483647, %v1832
        %vm1843 = vcmp.eq.f32.partialorder %v1842, 8.507059e+37
        %v1844 = vand.u32 %v1832, 2147483648
        %v1845 = vor.u32 1.1754944e-38, %v1844
        %v1846 = vsel %vm1843, %v1845, %v1841
        %v1847 = vmul.f32 %v1829, %v1846
        %v1848 = vmul.f32 %v1711, %v746
        %v1850 = vsel %vm435, %v1847, 0
        %v1853 = vsel %vm445, %v1848, 0
        %1855 = vmatpush.msra.mxu0 0.0
        %1856 = vmatpush.msra.mxu0 0.0
        %1857 = vmatpush.msra.mxu0 0.0
        %1858 = vmatpush.msra.mxu0 0.0
        %1859 = vmatpush.msra.mxu0 0.0
        %1860 = vmatpush.msra.mxu0 0.0
        %1861 = vmatpush.msra.mxu0 0.0
        %1862 = vmatpush.msra.mxu0 0.0
        %1863 = vmatpush.msra.mxu0 0.0
        %1864 = vmatpush.msra.mxu0 0.0
        %1865 = vmatpush.msra.mxu0 0.0
        %1866 = vmatpush.msra.mxu0 0.0
        %1867 = vmatpush.msra.mxu0 0.0
        %1868 = vmatpush.msra.mxu0 0.0
        %1869 = vmatpush.msra.mxu0 0.0
        %1870 = vmatpush.msra.mxu0 %v1853
        %1871 = vmatmul.f32.gmra.mxu0 %v1850
        %v1872 = vpop.f32.mrf.mxu0
        %v1873 = vadd.f32 0.0, %v1872
        %1874 = vdwg.mxu0
        %v1875 = vadd.f32 %v1798, %v1873
        %v1876 = vmul.f32 %v1659, %v824
        %v1878 = vsel %vm481, %v1876, 0
        %1880 = vmatpush.xpose.msra.mxu0 0.0
        %1881 = vmatpush.xpose.msra.mxu0 0.0
        %1882 = vmatpush.xpose.msra.mxu0 0.0
        %1883 = vmatpush.xpose.msra.mxu0 0.0
        %1884 = vmatpush.xpose.msra.mxu0 0.0
        %1885 = vmatpush.xpose.msra.mxu0 0.0
        %1886 = vmatpush.xpose.msra.mxu0 0.0
        %1887 = vmatpush.xpose.msra.mxu0 0.0
        %1888 = vmatpush.xpose.msra.mxu0 0.0
        %1889 = vmatpush.xpose.msra.mxu0 0.0
        %1890 = vmatpush.xpose.msra.mxu0 0.0
        %1891 = vmatpush.xpose.msra.mxu0 0.0
        %1892 = vmatpush.xpose.msra.mxu0 0.0
        %1893 = vmatpush.xpose.msra.mxu0 0.0
        %1894 = vmatpush.xpose.msra.mxu0 0.0
        %1895 = vmatpush.xpose.msra.mxu0 %v1723
        %1896 = vmatmul.f32.gmra.mxu0 %v1878
        %v1897 = vpop.f32.mrf.mxu0
        %v1898 = vadd.f32 0.0, %v1897
        %1899 = vdwg.mxu0
        %v1900 = vmul.f32 %v1898, 0.17677669
        %v1901 = vsel %vm1746, %v1900, -inf
        %1902 = vmax.xlane.f32.xlu0 %v1901
        %v1903 = vpop.xlane.xlu0 %1902
        %v1904 = vsub.f32 %v1900, %v1903
        %v1905 = vmul.f32 %v1904, 1.442695
        %v1906 = vpow.pop %v1905
        %v1907 = vsel %vm1746, %v1906, 0.0
        %1908 = vadd.xlane.f32.xlu0 %v1907
        %v1909 = vpop.xlane.xlu0 %1908
        %v1910 = vrcp.pop %v1909
        %v1911 = vmul.f32 %v1909, %v1910
        %v1912 = vsub.f32 1.0, %v1911
        %v1913 = vmul.f32 %v1910, %v1912
        %v1914 = vadd.f32 %v1910, %v1913
        %vm1915 = vweird.f32 %v1909
        %vm1916 = vweird.f32 %v1910
        %vm1917 = vmor %vm1915, %vm1916
        %v1918 = vsel %vm1917, %v1910, %v1914
        %v1919 = vand.u32 2147483647, %v1909
        %vm1920 = vcmp.eq.f32.partialorder %v1919, 8.507059e+37
        %v1921 = vand.u32 %v1909, 2147483648
        %v1922 = vor.u32 1.1754944e-38, %v1921
        %v1923 = vsel %vm1920, %v1922, %v1918
        %v1924 = vmul.f32 %v1906, %v1923
        %v1925 = vmul.f32 %v1711, %v824
        %v1927 = vsel %vm435, %v1924, 0
        %v1930 = vsel %vm445, %v1925, 0
        %1932 = vmatpush.msra.mxu0 0.0
        %1933 = vmatpush.msra.mxu0 0.0
        %1934 = vmatpush.msra.mxu0 0.0
        %1935 = vmatpush.msra.mxu0 0.0
        %1936 = vmatpush.msra.mxu0 0.0
        %1937 = vmatpush.msra.mxu0 0.0
        %1938 = vmatpush.msra.mxu0 0.0
        %1939 = vmatpush.msra.mxu0 0.0
        %1940 = vmatpush.msra.mxu0 0.0
        %1941 = vmatpush.msra.mxu0 0.0
        %1942 = vmatpush.msra.mxu0 0.0
        %1943 = vmatpush.msra.mxu0 0.0
        %1944 = vmatpush.msra.mxu0 0.0
        %1945 = vmatpush.msra.mxu0 0.0
        %1946 = vmatpush.msra.mxu0 0.0
        %1947 = vmatpush.msra.mxu0 %v1930
        %1948 = vmatmul.f32.gmra.mxu0 %v1927
        %v1949 = vpop.f32.mrf.mxu0
        %v1950 = vadd.f32 0.0, %v1949
        %1951 = vdwg.mxu0
        %v1952 = vadd.f32 %v1875, %v1950
        %v1953 = vmul.f32 %v1659, %v902
        %v1955 = vsel %vm481, %v1953, 0
        %1957 = vmatpush.xpose.msra.mxu0 0.0
        %1958 = vmatpush.xpose.msra.mxu0 0.0
        %1959 = vmatpush.xpose.msra.mxu0 0.0
        %1960 = vmatpush.xpose.msra.mxu0 0.0
        %1961 = vmatpush.xpose.msra.mxu0 0.0
        %1962 = vmatpush.xpose.msra.mxu0 0.0
        %1963 = vmatpush.xpose.msra.mxu0 0.0
        %1964 = vmatpush.xpose.msra.mxu0 0.0
        %1965 = vmatpush.xpose.msra.mxu0 0.0
        %1966 = vmatpush.xpose.msra.mxu0 0.0
        %1967 = vmatpush.xpose.msra.mxu0 0.0
        %1968 = vmatpush.xpose.msra.mxu0 0.0
        %1969 = vmatpush.xpose.msra.mxu0 0.0
        %1970 = vmatpush.xpose.msra.mxu0 0.0
        %1971 = vmatpush.xpose.msra.mxu0 0.0
        %1972 = vmatpush.xpose.msra.mxu0 %v1723
        %1973 = vmatmul.f32.gmra.mxu0 %v1955
        %v1974 = vpop.f32.mrf.mxu0
        %v1975 = vadd.f32 0.0, %v1974
        %1976 = vdwg.mxu0
        %v1977 = vmul.f32 %v1975, 0.17677669
        %v1978 = vsel %vm1746, %v1977, -inf
        %1979 = vmax.xlane.f32.xlu0 %v1978
        %v1980 = vpop.xlane.xlu0 %1979
        %v1981 = vsub.f32 %v1977, %v1980
        %v1982 = vmul.f32 %v1981, 1.442695
        %v1983 = vpow.pop %v1982
        %v1984 = vsel %vm1746, %v1983, 0.0
        %1985 = vadd.xlane.f32.xlu0 %v1984
        %v1986 = vpop.xlane.xlu0 %1985
        %v1987 = vrcp.pop %v1986
        %v1988 = vmul.f32 %v1986, %v1987
        %v1989 = vsub.f32 1.0, %v1988
        %v1990 = vmul.f32 %v1987, %v1989
        %v1991 = vadd.f32 %v1987, %v1990
        %vm1992 = vweird.f32 %v1986
        %vm1993 = vweird.f32 %v1987
        %vm1994 = vmor %vm1992, %vm1993
        %v1995 = vsel %vm1994, %v1987, %v1991
        %v1996 = vand.u32 2147483647, %v1986
        %vm1997 = vcmp.eq.f32.partialorder %v1996, 8.507059e+37
        %v1998 = vand.u32 %v1986, 2147483648
        %v1999 = vor.u32 1.1754944e-38, %v1998
        %v2000 = vsel %vm1997, %v1999, %v1995
        %v2001 = vmul.f32 %v1983, %v2000
        %v2002 = vmul.f32 %v1711, %v902
        %v2004 = vsel %vm435, %v2001, 0
        %v2007 = vsel %vm445, %v2002, 0
        %2009 = vmatpush.msra.mxu0 0.0
        %2010 = vmatpush.msra.mxu0 0.0
        %2011 = vmatpush.msra.mxu0 0.0
        %2012 = vmatpush.msra.mxu0 0.0
        %2013 = vmatpush.msra.mxu0 0.0
        %2014 = vmatpush.msra.mxu0 0.0
        %2015 = vmatpush.msra.mxu0 0.0
        %2016 = vmatpush.msra.mxu0 0.0
        %2017 = vmatpush.msra.mxu0 0.0
        %2018 = vmatpush.msra.mxu0 0.0
        %2019 = vmatpush.msra.mxu0 0.0
        %2020 = vmatpush.msra.mxu0 0.0
        %2021 = vmatpush.msra.mxu0 0.0
        %2022 = vmatpush.msra.mxu0 0.0
        %2023 = vmatpush.msra.mxu0 0.0
        %2024 = vmatpush.msra.mxu0 %v2007
        %2025 = vmatmul.f32.gmra.mxu0 %v2004
        %v2026 = vpop.f32.mrf.mxu0
        %v2027 = vadd.f32 0.0, %v2026
        %2028 = vdwg.mxu0
        %v2029 = vadd.f32 %v1952, %v2027
        %v2030 = vperm.slane %v1717, 0
        %v2032 = vsel %vm481, %v2029, 0
        %2034 = vmatpush.msra.mxu0 0.0
        %2035 = vmatpush.msra.mxu0 0.0
        %2036 = vmatpush.msra.mxu0 0.0
        %2037 = vmatpush.msra.mxu0 0.0
        %2038 = vmatpush.msra.mxu0 0.0
        %2039 = vmatpush.msra.mxu0 0.0
        %2040 = vmatpush.msra.mxu0 0.0
        %2041 = vmatpush.msra.mxu0 0.0
        %2042 = vmatpush.msra.mxu0 0.0
        %2043 = vmatpush.msra.mxu0 0.0
        %2044 = vmatpush.msra.mxu0 0.0
        %2045 = vmatpush.msra.mxu0 0.0
        %2046 = vmatpush.msra.mxu0 %v1716
        %2047 = vmatpush.msra.mxu0 %v1715
        %2048 = vmatpush.msra.mxu0 %v1714
        %2049 = vmatpush.msra.mxu0 %v1713
        %2050 = vmatmul.f32.gmra.mxu0 %v2032
        %v2051 = vpop.f32.mrf.mxu0
        %v2052 = vadd.f32 %v2030, %v2051
        %2053 = vdwg.mxu0
        %v2054 = vmax.f32 %v2052, 0.0
        %v2055 = vadd.f32 %v2029, %v2054
        %2056 = vmatpush.msra.mxu0 0.0
        %2057 = vmatpush.msra.mxu0 0.0
        %2058 = vmatpush.msra.mxu0 0.0
        %2059 = vmatpush.msra.mxu0 0.0
        %2060 = vmatpush.msra.mxu0 0.0
        %2061 = vmatpush.msra.mxu0 0.0
        %2062 = vmatpush.msra.mxu0 0.0
        %2063 = vmatpush.msra.mxu0 0.0
        %2064 = vmatpush.msra.mxu0 0.0
        %2065 = vmatpush.msra.mxu0 0.0
        %2066 = vmatpush.msra.mxu0 0.0
        %2067 = vmatpush.msra.mxu0 0.0
        %2068 = vmatpush.msra.mxu0 0.0
        %2069 = vmatpush.msra.mxu0 0.0
        %2070 = vmatpush.msra.mxu0 0.0
        %2071 = vmatpush.msra.mxu0 %v1521
        %2072 = vmatmul.f32.gmra.mxu0 %v401
        %v2073 = vpop.f32.mrf.mxu0
        %v2074 = vadd.f32 0.0, %v2073
        %2075 = vmatmul.f32.gmra.mxu0 %v404
        %v2076 = vpop.f32.mrf.mxu0
        %v2077 = vadd.f32 0.0, %v2076
        %2078 = vmatmul.f32.gmra.mxu0 %v407
        %v2079 = vpop.f32.mrf.mxu0
        %v2080 = vadd.f32 0.0, %v2079
        %2081 = vdwg.mxu0
        %v2083 = vsel %vm445, %v2055, 0
        %2085 = vmatpush.msra.mxu0 0.0
        %2086 = vmatpush.msra.mxu0 0.0
        %2087 = vmatpush.msra.mxu0 0.0
        %2088 = vmatpush.msra.mxu0 0.0
        %2089 = vmatpush.msra.mxu0 0.0
        %2090 = vmatpush.msra.mxu0 0.0
        %2091 = vmatpush.msra.mxu0 0.0
        %2092 = vmatpush.msra.mxu0 0.0
        %2093 = vmatpush.msra.mxu0 0.0
        %2094 = vmatpush.msra.mxu0 0.0
        %2095 = vmatpush.msra.mxu0 0.0
        %2096 = vmatpush.msra.mxu0 0.0
        %2097 = vmatpush.msra.mxu0 0.0
        %2098 = vmatpush.msra.mxu0 0.0
        %2099 = vmatpush.msra.mxu0 0.0
        %2100 = vmatpush.msra.mxu0 %v2083
        %2101 = vmatmul.f32.gmra.mxu0 %v437
        %v2102 = vpop.f32.mrf.mxu0
        %v2103 = vadd.f32 0.0, %v2102
        %2104 = vmatmul.f32.gmra.mxu0 %v440
        %v2105 = vpop.f32.mrf.mxu0
        %v2106 = vadd.f32 0.0, %v2105
        %2107 = vmatmul.f32.gmra.mxu0 %v443
        %v2108 = vpop.f32.mrf.mxu0
        %v2109 = vadd.f32 0.0, %v2108
        %2110 = vdwg.mxu0
        %v2111 = vld [vmem:[%s1 + $0x260] sm:$0xff]
        %v2112 = vld [vmem:[%s1 + $0x268] sm:$0xff]
        %v2113 = vld [vmem:[%s1 + $0x270] sm:$0xff]
        %v2114 = vld [vmem:[%s1 + $0x278] sm:$0xff]
        %v2115 = vld [vmem:[%s1 + $0x4e8] sm:$0x1]
        %v2116 = vperm.slane %v2115, 0
        %v2117 = vsel %vm481, %v2055, 0
        %2119 = vmatpush.msra.mxu0 0.0
        %2120 = vmatpush.msra.mxu0 0.0
        %2121 = vmatpush.msra.mxu0 0.0
        %2122 = vmatpush.msra.mxu0 0.0
        %2123 = vmatpush.msra.mxu0 0.0
        %2124 = vmatpush.msra.mxu0 0.0
        %2125 = vmatpush.msra.mxu0 0.0
        %2126 = vmatpush.msra.mxu0 0.0
        %2127 = vmatpush.msra.mxu0 0.0
        %2128 = vmatpush.msra.mxu0 0.0
        %2129 = vmatpush.msra.mxu0 0.0
        %2130 = vmatpush.msra.mxu0 0.0
        %2131 = vmatpush.msra.mxu0 %v2114
        %2132 = vmatpush.msra.mxu0 %v2113
        %2133 = vmatpush.msra.mxu0 %v2112
        %2134 = vmatpush.msra.mxu0 %v2111
        %2135 = vmatmul.f32.gmra.mxu0 %v2117
        %v2136 = vpop.f32.mrf.mxu0
        %v2137 = vadd.f32 %v2116, %v2136
        %2138 = vdwg.mxu0
        %v2139 = vld [vmem:[%s1 + $0x280] sm:$0xff]
        %v2140 = vld [vmem:[%s1 + $0x288] sm:$0xff]
        %v2141 = vld [vmem:[%s1 + $0x290] sm:$0xff]
        %v2142 = vld [vmem:[%s1 + $0x298] sm:$0xff]
        %v2143 = vld [vmem:[%s1 + $0x2a0] sm:$0xff]
        %v2144 = vld [vmem:[%s1 + $0x2a8] sm:$0xff]
        %v2145 = vld [vmem:[%s1 + $0x2b0] sm:$0xff]
        %v2146 = vld [vmem:[%s1 + $0x2b8] sm:$0xff]
        %v2148 = vsel %vm481, %v1629, 0
        %v2151 = vsel %vm481, %v1630, 0
        %v2154 = vsel %vm481, %v1631, 0
        %2156 = vmatpush.msra.mxu0 0.0
        %2157 = vmatpush.msra.mxu0 0.0
        %2158 = vmatpush.msra.mxu0 0.0
        %2159 = vmatpush.msra.mxu0 0.0
        %2160 = vmatpush.msra.mxu0 0.0
        %2161 = vmatpush.msra.mxu0 0.0
        %2162 = vmatpush.msra.mxu0 0.0
        %2163 = vmatpush.msra.mxu0 0.0
        %2164 = vmatpush.msra.mxu0 0.0
        %2165 = vmatpush.msra.mxu0 0.0
        %2166 = vmatpush.msra.mxu0 0.0
        %2167 = vmatpush.msra.mxu0 0.0
        %2168 = vmatpush.msra.mxu0 %v2146
        %2169 = vmatpush.msra.mxu0 %v2145
        %2170 = vmatpush.msra.mxu0 %v2144
        %2171 = vmatpush.msra.mxu0 %v2143
        %2172 = vmatmul.f32.gmra.mxu0 %v2148
        %v2173 = vpop.f32.mrf.mxu0
        %v2174 = vadd.f32 0.0, %v2173
        %2175 = vmatmul.f32.gmra.mxu0 %v2151
        %v2176 = vpop.f32.mrf.mxu0
        %v2177 = vadd.f32 0.0, %v2176
        %2178 = vmatmul.f32.gmra.mxu0 %v2154
        %v2179 = vpop.f32.mrf.mxu0
        %v2180 = vadd.f32 0.0, %v2179
        %2181 = vdwg.mxu0
        %v2183 = vsel %vm481, %v2074, 0
        %v2186 = vsel %vm481, %v2077, 0
        %v2189 = vsel %vm481, %v2080, 0
        %2191 = vmatpush.msra.mxu0 0.0
        %2192 = vmatpush.msra.mxu0 0.0
        %2193 = vmatpush.msra.mxu0 0.0
        %2194 = vmatpush.msra.mxu0 0.0
        %2195 = vmatpush.msra.mxu0 0.0
        %2196 = vmatpush.msra.mxu0 0.0
        %2197 = vmatpush.msra.mxu0 0.0
        %2198 = vmatpush.msra.mxu0 0.0
        %2199 = vmatpush.msra.mxu0 0.0
        %2200 = vmatpush.msra.mxu0 0.0
        %2201 = vmatpush.msra.mxu0 0.0
        %2202 = vmatpush.msra.mxu0 0.0
        %2203 = vmatpush.msra.mxu0 %v2142
        %2204 = vmatpush.msra.mxu0 %v2141
        %2205 = vmatpush.msra.mxu0 %v2140
        %2206 = vmatpush.msra.mxu0 %v2139
        %2207 = vmatmul.f32.gmra.mxu0 %v2183
        %v2208 = vpop.f32.mrf.mxu0
        %v2209 = vadd.f32 %v2174, %v2208
        %2210 = vmatmul.f32.gmra.mxu0 %v2186
        %v2211 = vpop.f32.mrf.mxu0
        %v2212 = vadd.f32 %v2177, %v2211
        %2213 = vmatmul.f32.gmra.mxu0 %v2189
        %v2214 = vpop.f32.mrf.mxu0
        %v2215 = vadd.f32 %v2180, %v2214
        %2216 = vdwg.mxu0
        %v2217 = vld [vmem:[%s1 + $0x4e9] sm:$0x1]
        %v2218 = vperm.slane %v2217, 0
        %v2219 = vadd.f32 %v2209, %v2218
        %v2220 = vadd.f32 %v2212, %v2218
        %v2221 = vadd.f32 %v2215, %v2218
        %v2222 = vld [vmem:[%s1 + $0x2c0] sm:$0xff]
        %v2223 = vld [vmem:[%s1 + $0x2c8] sm:$0xff]
        %v2224 = vld [vmem:[%s1 + $0x2d0] sm:$0xff]
        %v2225 = vld [vmem:[%s1 + $0x2d8] sm:$0xff]
        %v2226 = vld [vmem:[%s1 + $0x2e0] sm:$0xff]
        %v2227 = vld [vmem:[%s1 + $0x2e8] sm:$0xff]
        %v2228 = vld [vmem:[%s1 + $0x2f0] sm:$0xff]
        %v2229 = vld [vmem:[%s1 + $0x2f8] sm:$0xff]
        %2230 = vmatpush.msra.mxu0 0.0
        %2231 = vmatpush.msra.mxu0 0.0
        %2232 = vmatpush.msra.mxu0 0.0
        %2233 = vmatpush.msra.mxu0 0.0
        %2234 = vmatpush.msra.mxu0 0.0
        %2235 = vmatpush.msra.mxu0 0.0
        %2236 = vmatpush.msra.mxu0 0.0
        %2237 = vmatpush.msra.mxu0 0.0
        %2238 = vmatpush.msra.mxu0 0.0
        %2239 = vmatpush.msra.mxu0 0.0
        %2240 = vmatpush.msra.mxu0 0.0
        %2241 = vmatpush.msra.mxu0 0.0
        %2242 = vmatpush.msra.mxu0 %v2229
        %2243 = vmatpush.msra.mxu0 %v2228
        %2244 = vmatpush.msra.mxu0 %v2227
        %2245 = vmatpush.msra.mxu0 %v2226
        %2246 = vmatmul.f32.gmra.mxu0 %v2148
        %v2247 = vpop.f32.mrf.mxu0
        %v2248 = vadd.f32 0.0, %v2247
        %2249 = vmatmul.f32.gmra.mxu0 %v2151
        %v2250 = vpop.f32.mrf.mxu0
        %v2251 = vadd.f32 0.0, %v2250
        %2252 = vmatmul.f32.gmra.mxu0 %v2154
        %v2253 = vpop.f32.mrf.mxu0
        %v2254 = vadd.f32 0.0, %v2253
        %2255 = vdwg.mxu0
        %2256 = vmatpush.msra.mxu0 0.0
        %2257 = vmatpush.msra.mxu0 0.0
        %2258 = vmatpush.msra.mxu0 0.0
        %2259 = vmatpush.msra.mxu0 0.0
        %2260 = vmatpush.msra.mxu0 0.0
        %2261 = vmatpush.msra.mxu0 0.0
        %2262 = vmatpush.msra.mxu0 0.0
        %2263 = vmatpush.msra.mxu0 0.0
        %2264 = vmatpush.msra.mxu0 0.0
        %2265 = vmatpush.msra.mxu0 0.0
        %2266 = vmatpush.msra.mxu0 0.0
        %2267 = vmatpush.msra.mxu0 0.0
        %2268 = vmatpush.msra.mxu0 %v2225
        %2269 = vmatpush.msra.mxu0 %v2224
        %2270 = vmatpush.msra.mxu0 %v2223
        %2271 = vmatpush.msra.mxu0 %v2222
        %2272 = vmatmul.f32.gmra.mxu0 %v2183
        %v2273 = vpop.f32.mrf.mxu0
        %v2274 = vadd.f32 %v2248, %v2273
        %2275 = vmatmul.f32.gmra.mxu0 %v2186
        %v2276 = vpop.f32.mrf.mxu0
        %v2277 = vadd.f32 %v2251, %v2276
        %2278 = vmatmul.f32.gmra.mxu0 %v2189
        %v2279 = vpop.f32.mrf.mxu0
        %v2280 = vadd.f32 %v2254, %v2279
        %2281 = vdwg.mxu0
        %v2282 = vld [vmem:[%s1 + $0x4ea] sm:$0x1]
        %v2283 = vperm.slane %v2282, 0
        %v2284 = vadd.f32 %v2274, %v2283
        %v2285 = vadd.f32 %v2277, %v2283
        %v2286 = vadd.f32 %v2280, %v2283
        %v2287 = vld [vmem:[%s1 + $0x300] sm:$0xff]
        %v2288 = vld [vmem:[%s1 + $0x308] sm:$0xff]
        %v2289 = vld [vmem:[%s1 + $0x310] sm:$0xff]
        %v2290 = vld [vmem:[%s1 + $0x318] sm:$0xff]
        %v2291 = vld [vmem:[%s1 + $0x4eb] sm:$0x1]
        %v2292 = vmul.f32 %v2137, %v657
        %v2294 = vsel %vm481, %v2292, 0
        %v2297 = vsel %vm481, %v2219, 0
        %v2300 = vsel %vm481, %v2220, 0
        %v2303 = vsel %vm481, %v2221, 0
        %2305 = vmatpush.xpose.msra.mxu0 0.0
        %2306 = vmatpush.xpose.msra.mxu0 0.0
        %2307 = vmatpush.xpose.msra.mxu0 0.0
        %2308 = vmatpush.xpose.msra.mxu0 0.0
        %2309 = vmatpush.xpose.msra.mxu0 0.0
        %2310 = vmatpush.xpose.msra.mxu0 0.0
        %2311 = vmatpush.xpose.msra.mxu0 0.0
        %2312 = vmatpush.xpose.msra.mxu0 0.0
        %2313 = vmatpush.xpose.msra.mxu0 0.0
        %2314 = vmatpush.xpose.msra.mxu0 0.0
        %2315 = vmatpush.xpose.msra.mxu0 0.0
        %2316 = vmatpush.xpose.msra.mxu0 0.0
        %2317 = vmatpush.xpose.msra.mxu0 0.0
        %2318 = vmatpush.xpose.msra.mxu0 %v2303
        %2319 = vmatpush.xpose.msra.mxu0 %v2300
        %2320 = vmatpush.xpose.msra.mxu0 %v2297
        %2321 = vmatmul.f32.gmra.mxu0 %v2294
        %v2322 = vpop.f32.mrf.mxu0
        %v2323 = vadd.f32 0.0, %v2322
        %2324 = vdwg.mxu0
        %v2325 = vmul.f32 %v2323, 0.17677669
        %v2326 = vadd.f32 %v2325, %v158
        %v2327 = vsel %vm693, %v2326, -inf
        %2328 = vmax.xlane.f32.xlu0 %v2327
        %v2329 = vpop.xlane.xlu0 %2328
        %v2330 = vsub.f32 %v2326, %v2329
        %v2331 = vmul.f32 %v2330, 1.442695
        %v2332 = vpow.pop %v2331
        %v2333 = vsel %vm693, %v2332, 0.0
        %2334 = vadd.xlane.f32.xlu0 %v2333
        %v2335 = vpop.xlane.xlu0 %2334
        %v2336 = vrcp.pop %v2335
        %v2337 = vmul.f32 %v2335, %v2336
        %v2338 = vsub.f32 1.0, %v2337
        %v2339 = vmul.f32 %v2336, %v2338
        %v2340 = vadd.f32 %v2336, %v2339
        %vm2341 = vweird.f32 %v2335
        %vm2342 = vweird.f32 %v2336
        %vm2343 = vmor %vm2341, %vm2342
        %v2344 = vsel %vm2343, %v2336, %v2340
        %v2345 = vand.u32 2147483647, %v2335
        %vm2346 = vcmp.eq.f32.partialorder %v2345, 8.507059e+37
        %v2347 = vand.u32 %v2335, 2147483648
        %v2348 = vor.u32 1.1754944e-38, %v2347
        %v2349 = vsel %vm2346, %v2348, %v2344
        %v2350 = vmul.f32 %v2332, %v2349
        %v2351 = vmul.f32 %v2284, %v657
        %v2352 = vmul.f32 %v2285, %v657
        %v2353 = vmul.f32 %v2286, %v657
        %v2355 = vsel %vm721, %v2350, 0
        %2357 = vmatpush.msra.mxu0 0.0
        %2358 = vmatpush.msra.mxu0 0.0
        %2359 = vmatpush.msra.mxu0 0.0
        %2360 = vmatpush.msra.mxu0 0.0
        %2361 = vmatpush.msra.mxu0 0.0
        %2362 = vmatpush.msra.mxu0 0.0
        %2363 = vmatpush.msra.mxu0 0.0
        %2364 = vmatpush.msra.mxu0 0.0
        %2365 = vmatpush.msra.mxu0 0.0
        %2366 = vmatpush.msra.mxu0 0.0
        %2367 = vmatpush.msra.mxu0 0.0
        %2368 = vmatpush.msra.mxu0 0.0
        %2369 = vmatpush.msra.mxu0 0.0
        %2370 = vmatpush.msra.mxu0 %v2353
        %2371 = vmatpush.msra.mxu0 %v2352
        %2372 = vmatpush.msra.mxu0 %v2351
        %2373 = vmatmul.f32.gmra.mxu0 %v2355
        %v2374 = vpop.f32.mrf.mxu0
        %v2375 = vadd.f32 0.0, %v2374
        %2376 = vdwg.mxu0
        %v2377 = vadd.f32 %v2137, %v2375
        %v2378 = vmul.f32 %v2137, %v746
        %v2380 = vsel %vm481, %v2378, 0
        %2382 = vmatpush.xpose.msra.mxu0 0.0
        %2383 = vmatpush.xpose.msra.mxu0 0.0
        %2384 = vmatpush.xpose.msra.mxu0 0.0
        %2385 = vmatpush.xpose.msra.mxu0 0.0
        %2386 = vmatpush.xpose.msra.mxu0 0.0
        %2387 = vmatpush.xpose.msra.mxu0 0.0
        %2388 = vmatpush.xpose.msra.mxu0 0.0
        %2389 = vmatpush.xpose.msra.mxu0 0.0
        %2390 = vmatpush.xpose.msra.mxu0 0.0
        %2391 = vmatpush.xpose.msra.mxu0 0.0
        %2392 = vmatpush.xpose.msra.mxu0 0.0
        %2393 = vmatpush.xpose.msra.mxu0 0.0
        %2394 = vmatpush.xpose.msra.mxu0 0.0
        %2395 = vmatpush.xpose.msra.mxu0 %v2303
        %2396 = vmatpush.xpose.msra.mxu0 %v2300
        %2397 = vmatpush.xpose.msra.mxu0 %v2297
        %2398 = vmatmul.f32.gmra.mxu0 %v2380
        %v2399 = vpop.f32.mrf.mxu0
        %v2400 = vadd.f32 0.0, %v2399
        %2401 = vdwg.mxu0
        %v2402 = vmul.f32 %v2400, 0.17677669
        %v2403 = vadd.f32 %v2402, %v158
        %v2404 = vsel %vm693, %v2403, -inf
        %2405 = vmax.xlane.f32.xlu0 %v2404
        %v2406 = vpop.xlane.xlu0 %2405
        %v2407 = vsub.f32 %v2403, %v2406
        %v2408 = vmul.f32 %v2407, 1.442695
        %v2409 = vpow.pop %v2408
        %v2410 = vsel %vm693, %v2409, 0.0
        %2411 = vadd.xlane.f32.xlu0 %v2410
        %v2412 = vpop.xlane.xlu0 %2411
        %v2413 = vrcp.pop %v2412
        %v2414 = vmul.f32 %v2412, %v2413
        %v2415 = vsub.f32 1.0, %v2414
        %v2416 = vmul.f32 %v2413, %v2415
        %v2417 = vadd.f32 %v2413, %v2416
        %vm2418 = vweird.f32 %v2412
        %vm2419 = vweird.f32 %v2413
        %vm2420 = vmor %vm2418, %vm2419
        %v2421 = vsel %vm2420, %v2413, %v2417
        %v2422 = vand.u32 2147483647, %v2412
        %vm2423 = vcmp.eq.f32.partialorder %v2422, 8.507059e+37
        %v2424 = vand.u32 %v2412, 2147483648
        %v2425 = vor.u32 1.1754944e-38, %v2424
        %v2426 = vsel %vm2423, %v2425, %v2421
        %v2427 = vmul.f32 %v2409, %v2426
        %v2428 = vmul.f32 %v2284, %v746
        %v2429 = vmul.f32 %v2285, %v746
        %v2430 = vmul.f32 %v2286, %v746
        %v2432 = vsel %vm721, %v2427, 0
        %2434 = vmatpush.msra.mxu0 0.0
        %2435 = vmatpush.msra.mxu0 0.0
        %2436 = vmatpush.msra.mxu0 0.0
        %2437 = vmatpush.msra.mxu0 0.0
        %2438 = vmatpush.msra.mxu0 0.0
        %2439 = vmatpush.msra.mxu0 0.0
        %2440 = vmatpush.msra.mxu0 0.0
        %2441 = vmatpush.msra.mxu0 0.0
        %2442 = vmatpush.msra.mxu0 0.0
        %2443 = vmatpush.msra.mxu0 0.0
        %2444 = vmatpush.msra.mxu0 0.0
        %2445 = vmatpush.msra.mxu0 0.0
        %2446 = vmatpush.msra.mxu0 0.0
        %2447 = vmatpush.msra.mxu0 %v2430
        %2448 = vmatpush.msra.mxu0 %v2429
        %2449 = vmatpush.msra.mxu0 %v2428
        %2450 = vmatmul.f32.gmra.mxu0 %v2432
        %v2451 = vpop.f32.mrf.mxu0
        %v2452 = vadd.f32 0.0, %v2451
        %2453 = vdwg.mxu0
        %v2454 = vadd.f32 %v2377, %v2452
        %v2455 = vmul.f32 %v2137, %v824
        %v2457 = vsel %vm481, %v2455, 0
        %2459 = vmatpush.xpose.msra.mxu0 0.0
        %2460 = vmatpush.xpose.msra.mxu0 0.0
        %2461 = vmatpush.xpose.msra.mxu0 0.0
        %2462 = vmatpush.xpose.msra.mxu0 0.0
        %2463 = vmatpush.xpose.msra.mxu0 0.0
        %2464 = vmatpush.xpose.msra.mxu0 0.0
        %2465 = vmatpush.xpose.msra.mxu0 0.0
        %2466 = vmatpush.xpose.msra.mxu0 0.0
        %2467 = vmatpush.xpose.msra.mxu0 0.0
        %2468 = vmatpush.xpose.msra.mxu0 0.0
        %2469 = vmatpush.xpose.msra.mxu0 0.0
        %2470 = vmatpush.xpose.msra.mxu0 0.0
        %2471 = vmatpush.xpose.msra.mxu0 0.0
        %2472 = vmatpush.xpose.msra.mxu0 %v2303
        %2473 = vmatpush.xpose.msra.mxu0 %v2300
        %2474 = vmatpush.xpose.msra.mxu0 %v2297
        %2475 = vmatmul.f32.gmra.mxu0 %v2457
        %v2476 = vpop.f32.mrf.mxu0
        %v2477 = vadd.f32 0.0, %v2476
        %2478 = vdwg.mxu0
        %v2479 = vmul.f32 %v2477, 0.17677669
        %v2480 = vadd.f32 %v2479, %v158
        %v2481 = vsel %vm693, %v2480, -inf
        %2482 = vmax.xlane.f32.xlu0 %v2481
        %v2483 = vpop.xlane.xlu0 %2482
        %v2484 = vsub.f32 %v2480, %v2483
        %v2485 = vmul.f32 %v2484, 1.442695
        %v2486 = vpow.pop %v2485
        %v2487 = vsel %vm693, %v2486, 0.0
        %2488 = vadd.xlane.f32.xlu0 %v2487
        %v2489 = vpop.xlane.xlu0 %2488
        %v2490 = vrcp.pop %v2489
        %v2491 = vmul.f32 %v2489, %v2490
        %v2492 = vsub.f32 1.0, %v2491
        %v2493 = vmul.f32 %v2490, %v2492
        %v2494 = vadd.f32 %v2490, %v2493
        %vm2495 = vweird.f32 %v2489
        %vm2496 = vweird.f32 %v2490
        %vm2497 = vmor %vm2495, %vm2496
        %v2498 = vsel %vm2497, %v2490, %v2494
        %v2499 = vand.u32 2147483647, %v2489
        %vm2500 = vcmp.eq.f32.partialorder %v2499, 8.507059e+37
        %v2501 = vand.u32 %v2489, 2147483648
        %v2502 = vor.u32 1.1754944e-38, %v2501
        %v2503 = vsel %vm2500, %v2502, %v2498
        %v2504 = vmul.f32 %v2486, %v2503
        %v2505 = vmul.f32 %v2284, %v824
        %v2506 = vmul.f32 %v2285, %v824
        %v2507 = vmul.f32 %v2286, %v824
        %v2509 = vsel %vm721, %v2504, 0
        %2511 = vmatpush.msra.mxu0 0.0
        %2512 = vmatpush.msra.mxu0 0.0
        %2513 = vmatpush.msra.mxu0 0.0
        %2514 = vmatpush.msra.mxu0 0.0
        %2515 = vmatpush.msra.mxu0 0.0
        %2516 = vmatpush.msra.mxu0 0.0
        %2517 = vmatpush.msra.mxu0 0.0
        %2518 = vmatpush.msra.mxu0 0.0
        %2519 = vmatpush.msra.mxu0 0.0
        %2520 = vmatpush.msra.mxu0 0.0
        %2521 = vmatpush.msra.mxu0 0.0
        %2522 = vmatpush.msra.mxu0 0.0
        %2523 = vmatpush.msra.mxu0 0.0
        %2524 = vmatpush.msra.mxu0 %v2507
        %2525 = vmatpush.msra.mxu0 %v2506
        %2526 = vmatpush.msra.mxu0 %v2505
        %2527 = vmatmul.f32.gmra.mxu0 %v2509
        %v2528 = vpop.f32.mrf.mxu0
        %v2529 = vadd.f32 0.0, %v2528
        %2530 = vdwg.mxu0
        %v2531 = vadd.f32 %v2454, %v2529
        %v2532 = vmul.f32 %v2137, %v902
        %v2534 = vsel %vm481, %v2532, 0
        %2536 = vmatpush.xpose.msra.mxu0 0.0
        %2537 = vmatpush.xpose.msra.mxu0 0.0
        %2538 = vmatpush.xpose.msra.mxu0 0.0
        %2539 = vmatpush.xpose.msra.mxu0 0.0
        %2540 = vmatpush.xpose.msra.mxu0 0.0
        %2541 = vmatpush.xpose.msra.mxu0 0.0
        %2542 = vmatpush.xpose.msra.mxu0 0.0
        %2543 = vmatpush.xpose.msra.mxu0 0.0
        %2544 = vmatpush.xpose.msra.mxu0 0.0
        %2545 = vmatpush.xpose.msra.mxu0 0.0
        %2546 = vmatpush.xpose.msra.mxu0 0.0
        %2547 = vmatpush.xpose.msra.mxu0 0.0
        %2548 = vmatpush.xpose.msra.mxu0 0.0
        %2549 = vmatpush.xpose.msra.mxu0 %v2303
        %2550 = vmatpush.xpose.msra.mxu0 %v2300
        %2551 = vmatpush.xpose.msra.mxu0 %v2297
        %2552 = vmatmul.f32.gmra.mxu0 %v2534
        %v2553 = vpop.f32.mrf.mxu0
        %v2554 = vadd.f32 0.0, %v2553
        %2555 = vdwg.mxu0
        %v2556 = vmul.f32 %v2554, 0.17677669
        %v2557 = vadd.f32 %v2556, %v158
        %v2558 = vsel %vm693, %v2557, -inf
        %2559 = vmax.xlane.f32.xlu0 %v2558
        %v2560 = vpop.xlane.xlu0 %2559
        %v2561 = vsub.f32 %v2557, %v2560
        %v2562 = vmul.f32 %v2561, 1.442695
        %v2563 = vpow.pop %v2562
        %v2564 = vsel %vm693, %v2563, 0.0
        %2565 = vadd.xlane.f32.xlu0 %v2564
        %v2566 = vpop.xlane.xlu0 %2565
        %v2567 = vrcp.pop %v2566
        %v2568 = vmul.f32 %v2566, %v2567
        %v2569 = vsub.f32 1.0, %v2568
        %v2570 = vmul.f32 %v2567, %v2569
        %v2571 = vadd.f32 %v2567, %v2570
        %vm2572 = vweird.f32 %v2566
        %vm2573 = vweird.f32 %v2567
        %vm2574 = vmor %vm2572, %vm2573
        %v2575 = vsel %vm2574, %v2567, %v2571
        %v2576 = vand.u32 2147483647, %v2566
        %vm2577 = vcmp.eq.f32.partialorder %v2576, 8.507059e+37
        %v2578 = vand.u32 %v2566, 2147483648
        %v2579 = vor.u32 1.1754944e-38, %v2578
        %v2580 = vsel %vm2577, %v2579, %v2575
        %v2581 = vmul.f32 %v2563, %v2580
        %v2582 = vmul.f32 %v2284, %v902
        %v2583 = vmul.f32 %v2285, %v902
        %v2584 = vmul.f32 %v2286, %v902
        %v2586 = vsel %vm721, %v2581, 0
        %2588 = vmatpush.msra.mxu0 0.0
        %2589 = vmatpush.msra.mxu0 0.0
        %2590 = vmatpush.msra.mxu0 0.0
        %2591 = vmatpush.msra.mxu0 0.0
        %2592 = vmatpush.msra.mxu0 0.0
        %2593 = vmatpush.msra.mxu0 0.0
        %2594 = vmatpush.msra.mxu0 0.0
        %2595 = vmatpush.msra.mxu0 0.0
        %2596 = vmatpush.msra.mxu0 0.0
        %2597 = vmatpush.msra.mxu0 0.0
        %2598 = vmatpush.msra.mxu0 0.0
        %2599 = vmatpush.msra.mxu0 0.0
        %2600 = vmatpush.msra.mxu0 0.0
        %2601 = vmatpush.msra.mxu0 %v2584
        %2602 = vmatpush.msra.mxu0 %v2583
        %2603 = vmatpush.msra.mxu0 %v2582
        %2604 = vmatmul.f32.gmra.mxu0 %v2586
        %v2605 = vpop.f32.mrf.mxu0
        %v2606 = vadd.f32 0.0, %v2605
        %2607 = vdwg.mxu0
        %v2608 = vadd.f32 %v2531, %v2606
        %v2609 = vperm.slane %v2291, 0
        %v2611 = vsel %vm481, %v2608, 0
        %2613 = vmatpush.msra.mxu0 0.0
        %2614 = vmatpush.msra.mxu0 0.0
        %2615 = vmatpush.msra.mxu0 0.0
        %2616 = vmatpush.msra.mxu0 0.0
        %2617 = vmatpush.msra.mxu0 0.0
        %2618 = vmatpush.msra.mxu0 0.0
        %2619 = vmatpush.msra.mxu0 0.0
        %2620 = vmatpush.msra.mxu0 0.0
        %2621 = vmatpush.msra.mxu0 0.0
        %2622 = vmatpush.msra.mxu0 0.0
        %2623 = vmatpush.msra.mxu0 0.0
        %2624 = vmatpush.msra.mxu0 0.0
        %2625 = vmatpush.msra.mxu0 %v2290
        %2626 = vmatpush.msra.mxu0 %v2289
        %2627 = vmatpush.msra.mxu0 %v2288
        %2628 = vmatpush.msra.mxu0 %v2287
        %2629 = vmatmul.f32.gmra.mxu0 %v2611
        %v2630 = vpop.f32.mrf.mxu0
        %v2631 = vadd.f32 %v2609, %v2630
        %2632 = vdwg.mxu0
        %v2633 = vmax.f32 %v2631, 0.0
        %v2634 = vadd.f32 %v2608, %v2633
        %v2635 = vld [vmem:[%s1 + $0x320] sm:$0xff]
        %v2636 = vld [vmem:[%s1 + $0x328] sm:$0xff]
        %v2637 = vld [vmem:[%s1 + $0x330] sm:$0xff]
        %v2638 = vld [vmem:[%s1 + $0x338] sm:$0xff]
        %v2639 = vld [vmem:[%s1 + $0x4ec] sm:$0x1]
        %v2640 = vperm.slane %v2639, 0
        %v2642 = vsel %vm481, %v1521, 0
        %2644 = vmatpush.msra.mxu0 0.0
        %2645 = vmatpush.msra.mxu0 0.0
        %2646 = vmatpush.msra.mxu0 0.0
        %2647 = vmatpush.msra.mxu0 0.0
        %2648 = vmatpush.msra.mxu0 0.0
        %2649 = vmatpush.msra.mxu0 0.0
        %2650 = vmatpush.msra.mxu0 0.0
        %2651 = vmatpush.msra.mxu0 0.0
        %2652 = vmatpush.msra.mxu0 0.0
        %2653 = vmatpush.msra.mxu0 0.0
        %2654 = vmatpush.msra.mxu0 0.0
        %2655 = vmatpush.msra.mxu0 0.0
        %2656 = vmatpush.msra.mxu0 %v2638
        %2657 = vmatpush.msra.mxu0 %v2637
        %2658 = vmatpush.msra.mxu0 %v2636
        %2659 = vmatpush.msra.mxu0 %v2635
        %2660 = vmatmul.f32.gmra.mxu0 %v2642
        %v2661 = vpop.f32.mrf.mxu0
        %v2662 = vadd.f32 %v2640, %v2661
        %2663 = vdwg.mxu0
        %v2664 = vld [vmem:[%s1 + $0x340] sm:$0xff]
        %v2665 = vld [vmem:[%s1 + $0x348] sm:$0xff]
        %v2666 = vld [vmem:[%s1 + $0x350] sm:$0xff]
        %v2667 = vld [vmem:[%s1 + $0x358] sm:$0xff]
        %v2668 = vld [vmem:[%s1 + $0x360] sm:$0xff]
        %v2669 = vld [vmem:[%s1 + $0x368] sm:$0xff]
        %v2670 = vld [vmem:[%s1 + $0x370] sm:$0xff]
        %v2671 = vld [vmem:[%s1 + $0x378] sm:$0xff]
        %2672 = vmatpush.msra.mxu0 0.0
        %2673 = vmatpush.msra.mxu0 0.0
        %2674 = vmatpush.msra.mxu0 0.0
        %2675 = vmatpush.msra.mxu0 0.0
        %2676 = vmatpush.msra.mxu0 0.0
        %2677 = vmatpush.msra.mxu0 0.0
        %2678 = vmatpush.msra.mxu0 0.0
        %2679 = vmatpush.msra.mxu0 0.0
        %2680 = vmatpush.msra.mxu0 0.0
        %2681 = vmatpush.msra.mxu0 0.0
        %2682 = vmatpush.msra.mxu0 0.0
        %2683 = vmatpush.msra.mxu0 0.0
        %2684 = vmatpush.msra.mxu0 %v2671
        %2685 = vmatpush.msra.mxu0 %v2670
        %2686 = vmatpush.msra.mxu0 %v2669
        %2687 = vmatpush.msra.mxu0 %v2668
        %2688 = vmatmul.f32.gmra.mxu0 %v2148
        %v2689 = vpop.f32.mrf.mxu0
        %v2690 = vadd.f32 0.0, %v2689
        %2691 = vmatmul.f32.gmra.mxu0 %v2151
        %v2692 = vpop.f32.mrf.mxu0
        %v2693 = vadd.f32 0.0, %v2692
        %2694 = vmatmul.f32.gmra.mxu0 %v2154
        %v2695 = vpop.f32.mrf.mxu0
        %v2696 = vadd.f32 0.0, %v2695
        %2697 = vdwg.mxu0
        %v2699 = vsel %vm481, %v2103, 0
        %v2702 = vsel %vm481, %v2106, 0
        %v2705 = vsel %vm481, %v2109, 0
        %2707 = vmatpush.msra.mxu0 0.0
        %2708 = vmatpush.msra.mxu0 0.0
        %2709 = vmatpush.msra.mxu0 0.0
        %2710 = vmatpush.msra.mxu0 0.0
        %2711 = vmatpush.msra.mxu0 0.0
        %2712 = vmatpush.msra.mxu0 0.0
        %2713 = vmatpush.msra.mxu0 0.0
        %2714 = vmatpush.msra.mxu0 0.0
        %2715 = vmatpush.msra.mxu0 0.0
        %2716 = vmatpush.msra.mxu0 0.0
        %2717 = vmatpush.msra.mxu0 0.0
        %2718 = vmatpush.msra.mxu0 0.0
        %2719 = vmatpush.msra.mxu0 %v2667
        %2720 = vmatpush.msra.mxu0 %v2666
        %2721 = vmatpush.msra.mxu0 %v2665
        %2722 = vmatpush.msra.mxu0 %v2664
        %2723 = vmatmul.f32.gmra.mxu0 %v2699
        %v2724 = vpop.f32.mrf.mxu0
        %v2725 = vadd.f32 %v2690, %v2724
        %2726 = vmatmul.f32.gmra.mxu0 %v2702
        %v2727 = vpop.f32.mrf.mxu0
        %v2728 = vadd.f32 %v2693, %v2727
        %2729 = vmatmul.f32.gmra.mxu0 %v2705
        %v2730 = vpop.f32.mrf.mxu0
        %v2731 = vadd.f32 %v2696, %v2730
        %2732 = vdwg.mxu0
        %v2733 = vld [vmem:[%s1 + $0x4ed] sm:$0x1]
        %v2734 = vperm.slane %v2733, 0
        %v2735 = vadd.f32 %v2725, %v2734
        %v2736 = vadd.f32 %v2728, %v2734
        %v2737 = vadd.f32 %v2731, %v2734
        %v2738 = vld [vmem:[%s1 + $0x380] sm:$0xff]
        %v2739 = vld [vmem:[%s1 + $0x388] sm:$0xff]
        %v2740 = vld [vmem:[%s1 + $0x390] sm:$0xff]
        %v2741 = vld [vmem:[%s1 + $0x398] sm:$0xff]
        %v2742 = vld [vmem:[%s1 + $0x3a0] sm:$0xff]
        %v2743 = vld [vmem:[%s1 + $0x3a8] sm:$0xff]
        %v2744 = vld [vmem:[%s1 + $0x3b0] sm:$0xff]
        %v2745 = vld [vmem:[%s1 + $0x3b8] sm:$0xff]
        %2746 = vmatpush.msra.mxu0 0.0
        %2747 = vmatpush.msra.mxu0 0.0
        %2748 = vmatpush.msra.mxu0 0.0
        %2749 = vmatpush.msra.mxu0 0.0
        %2750 = vmatpush.msra.mxu0 0.0
        %2751 = vmatpush.msra.mxu0 0.0
        %2752 = vmatpush.msra.mxu0 0.0
        %2753 = vmatpush.msra.mxu0 0.0
        %2754 = vmatpush.msra.mxu0 0.0
        %2755 = vmatpush.msra.mxu0 0.0
        %2756 = vmatpush.msra.mxu0 0.0
        %2757 = vmatpush.msra.mxu0 0.0
        %2758 = vmatpush.msra.mxu0 %v2745
        %2759 = vmatpush.msra.mxu0 %v2744
        %2760 = vmatpush.msra.mxu0 %v2743
        %2761 = vmatpush.msra.mxu0 %v2742
        %2762 = vmatmul.f32.gmra.mxu0 %v2148
        %v2763 = vpop.f32.mrf.mxu0
        %v2764 = vadd.f32 0.0, %v2763
        %2765 = vmatmul.f32.gmra.mxu0 %v2151
        %v2766 = vpop.f32.mrf.mxu0
        %v2767 = vadd.f32 0.0, %v2766
        %2768 = vmatmul.f32.gmra.mxu0 %v2154
        %v2769 = vpop.f32.mrf.mxu0
        %v2770 = vadd.f32 0.0, %v2769
        %2771 = vdwg.mxu0
        %2772 = vmatpush.msra.mxu0 0.0
        %2773 = vmatpush.msra.mxu0 0.0
        %2774 = vmatpush.msra.mxu0 0.0
        %2775 = vmatpush.msra.mxu0 0.0
        %2776 = vmatpush.msra.mxu0 0.0
        %2777 = vmatpush.msra.mxu0 0.0
        %2778 = vmatpush.msra.mxu0 0.0
        %2779 = vmatpush.msra.mxu0 0.0
        %2780 = vmatpush.msra.mxu0 0.0
        %2781 = vmatpush.msra.mxu0 0.0
        %2782 = vmatpush.msra.mxu0 0.0
        %2783 = vmatpush.msra.mxu0 0.0
        %2784 = vmatpush.msra.mxu0 %v2741
        %2785 = vmatpush.msra.mxu0 %v2740
        %2786 = vmatpush.msra.mxu0 %v2739
        %2787 = vmatpush.msra.mxu0 %v2738
        %2788 = vmatmul.f32.gmra.mxu0 %v2699
        %v2789 = vpop.f32.mrf.mxu0
        %v2790 = vadd.f32 %v2764, %v2789
        %2791 = vmatmul.f32.gmra.mxu0 %v2702
        %v2792 = vpop.f32.mrf.mxu0
        %v2793 = vadd.f32 %v2767, %v2792
        %2794 = vmatmul.f32.gmra.mxu0 %v2705
        %v2795 = vpop.f32.mrf.mxu0
        %v2796 = vadd.f32 %v2770, %v2795
        %2797 = vdwg.mxu0
        %v2798 = vld [vmem:[%s1 + $0x4ee] sm:$0x1]
        %v2799 = vperm.slane %v2798, 0
        %v2800 = vadd.f32 %v2790, %v2799
        %v2801 = vadd.f32 %v2793, %v2799
        %v2802 = vadd.f32 %v2796, %v2799
        %v2803 = vld [vmem:[%s1 + $0x3c0] sm:$0xff]
        %v2804 = vld [vmem:[%s1 + $0x3c8] sm:$0xff]
        %v2805 = vld [vmem:[%s1 + $0x3d0] sm:$0xff]
        %v2806 = vld [vmem:[%s1 + $0x3d8] sm:$0xff]
        %v2807 = vld [vmem:[%s1 + $0x4ef] sm:$0x1]
        %v2808 = vmul.f32 %v2662, %v657
        %v2810 = vsel %vm481, %v2808, 0
        %v2813 = vsel %vm481, %v2735, 0
        %v2816 = vsel %vm481, %v2736, 0
        %v2819 = vsel %vm481, %v2737, 0
        %2821 = vmatpush.xpose.msra.mxu0 0.0
        %2822 = vmatpush.xpose.msra.mxu0 0.0
        %2823 = vmatpush.xpose.msra.mxu0 0.0
        %2824 = vmatpush.xpose.msra.mxu0 0.0
        %2825 = vmatpush.xpose.msra.mxu0 0.0
        %2826 = vmatpush.xpose.msra.mxu0 0.0
        %2827 = vmatpush.xpose.msra.mxu0 0.0
        %2828 = vmatpush.xpose.msra.mxu0 0.0
        %2829 = vmatpush.xpose.msra.mxu0 0.0
        %2830 = vmatpush.xpose.msra.mxu0 0.0
        %2831 = vmatpush.xpose.msra.mxu0 0.0
        %2832 = vmatpush.xpose.msra.mxu0 0.0
        %2833 = vmatpush.xpose.msra.mxu0 0.0
        %2834 = vmatpush.xpose.msra.mxu0 %v2819
        %2835 = vmatpush.xpose.msra.mxu0 %v2816
        %2836 = vmatpush.xpose.msra.mxu0 %v2813
        %2837 = vmatmul.f32.gmra.mxu0 %v2810
        %v2838 = vpop.f32.mrf.mxu0
        %v2839 = vadd.f32 0.0, %v2838
        %2840 = vdwg.mxu0
        %v2841 = vmul.f32 %v2839, 0.17677669
        %v2842 = vadd.f32 %v2841, %v157
        %v2843 = vsel %vm721, %v2842, -inf
        %2844 = vmax.xlane.f32.xlu0 %v2843
        %v2845 = vpop.xlane.xlu0 %2844
        %v2846 = vsub.f32 %v2842, %v2845
        %v2847 = vmul.f32 %v2846, 1.442695
        %v2848 = vpow.pop %v2847
        %v2849 = vsel %vm721, %v2848, 0.0
        %2850 = vadd.xlane.f32.xlu0 %v2849
        %v2851 = vpop.xlane.xlu0 %2850
        %v2852 = vrcp.pop %v2851
        %v2853 = vmul.f32 %v2851, %v2852
        %v2854 = vsub.f32 1.0, %v2853
        %v2855 = vmul.f32 %v2852, %v2854
        %v2856 = vadd.f32 %v2852, %v2855
        %vm2857 = vweird.f32 %v2851
        %vm2858 = vweird.f32 %v2852
        %vm2859 = vmor %vm2857, %vm2858
        %v2860 = vsel %vm2859, %v2852, %v2856
        %v2861 = vand.u32 2147483647, %v2851
        %vm2862 = vcmp.eq.f32.partialorder %v2861, 8.507059e+37
        %v2863 = vand.u32 %v2851, 2147483648
        %v2864 = vor.u32 1.1754944e-38, %v2863
        %v2865 = vsel %vm2862, %v2864, %v2860
        %v2866 = vmul.f32 %v2848, %v2865
        %v2867 = vmul.f32 %v2800, %v657
        %v2868 = vmul.f32 %v2801, %v657
        %v2869 = vmul.f32 %v2802, %v657
        %v2871 = vsel %vm721, %v2866, 0
        %2873 = vmatpush.msra.mxu0 0.0
        %2874 = vmatpush.msra.mxu0 0.0
        %2875 = vmatpush.msra.mxu0 0.0
        %2876 = vmatpush.msra.mxu0 0.0
        %2877 = vmatpush.msra.mxu0 0.0
        %2878 = vmatpush.msra.mxu0 0.0
        %2879 = vmatpush.msra.mxu0 0.0
        %2880 = vmatpush.msra.mxu0 0.0
        %2881 = vmatpush.msra.mxu0 0.0
        %2882 = vmatpush.msra.mxu0 0.0
        %2883 = vmatpush.msra.mxu0 0.0
        %2884 = vmatpush.msra.mxu0 0.0
        %2885 = vmatpush.msra.mxu0 0.0
        %2886 = vmatpush.msra.mxu0 %v2869
        %2887 = vmatpush.msra.mxu0 %v2868
        %2888 = vmatpush.msra.mxu0 %v2867
        %2889 = vmatmul.f32.gmra.mxu0 %v2871
        %v2890 = vpop.f32.mrf.mxu0
        %v2891 = vadd.f32 0.0, %v2890
        %2892 = vdwg.mxu0
        %v2893 = vadd.f32 %v2662, %v2891
        %v2894 = vmul.f32 %v2662, %v746
        %v2896 = vsel %vm481, %v2894, 0
        %2898 = vmatpush.xpose.msra.mxu0 0.0
        %2899 = vmatpush.xpose.msra.mxu0 0.0
        %2900 = vmatpush.xpose.msra.mxu0 0.0
        %2901 = vmatpush.xpose.msra.mxu0 0.0
        %2902 = vmatpush.xpose.msra.mxu0 0.0
        %2903 = vmatpush.xpose.msra.mxu0 0.0
        %2904 = vmatpush.xpose.msra.mxu0 0.0
        %2905 = vmatpush.xpose.msra.mxu0 0.0
        %2906 = vmatpush.xpose.msra.mxu0 0.0
        %2907 = vmatpush.xpose.msra.mxu0 0.0
        %2908 = vmatpush.xpose.msra.mxu0 0.0
        %2909 = vmatpush.xpose.msra.mxu0 0.0
        %2910 = vmatpush.xpose.msra.mxu0 0.0
        %2911 = vmatpush.xpose.msra.mxu0 %v2819
        %2912 = vmatpush.xpose.msra.mxu0 %v2816
        %2913 = vmatpush.xpose.msra.mxu0 %v2813
        %2914 = vmatmul.f32.gmra.mxu0 %v2896
        %v2915 = vpop.f32.mrf.mxu0
        %v2916 = vadd.f32 0.0, %v2915
        %2917 = vdwg.mxu0
        %v2918 = vmul.f32 %v2916, 0.17677669
        %v2919 = vadd.f32 %v2918, %v157
        %v2920 = vsel %vm721, %v2919, -inf
        %2921 = vmax.xlane.f32.xlu0 %v2920
        %v2922 = vpop.xlane.xlu0 %2921
        %v2923 = vsub.f32 %v2919, %v2922
        %v2924 = vmul.f32 %v2923, 1.442695
        %v2925 = vpow.pop %v2924
        %v2926 = vsel %vm721, %v2925, 0.0
        %2927 = vadd.xlane.f32.xlu0 %v2926
        %v2928 = vpop.xlane.xlu0 %2927
        %v2929 = vrcp.pop %v2928
        %v2930 = vmul.f32 %v2928, %v2929
        %v2931 = vsub.f32 1.0, %v2930
        %v2932 = vmul.f32 %v2929, %v2931
        %v2933 = vadd.f32 %v2929, %v2932
        %vm2934 = vweird.f32 %v2928
        %vm2935 = vweird.f32 %v2929
        %vm2936 = vmor %vm2934, %vm2935
        %v2937 = vsel %vm2936, %v2929, %v2933
        %v2938 = vand.u32 2147483647, %v2928
        %vm2939 = vcmp.eq.f32.partialorder %v2938, 8.507059e+37
        %v2940 = vand.u32 %v2928, 2147483648
        %v2941 = vor.u32 1.1754944e-38, %v2940
        %v2942 = vsel %vm2939, %v2941, %v2937
        %v2943 = vmul.f32 %v2925, %v2942
        %v2944 = vmul.f32 %v2800, %v746
        %v2945 = vmul.f32 %v2801, %v746
        %v2946 = vmul.f32 %v2802, %v746
        %v2948 = vsel %vm721, %v2943, 0
        %2950 = vmatpush.msra.mxu0 0.0
        %2951 = vmatpush.msra.mxu0 0.0
        %2952 = vmatpush.msra.mxu0 0.0
        %2953 = vmatpush.msra.mxu0 0.0
        %2954 = vmatpush.msra.mxu0 0.0
        %2955 = vmatpush.msra.mxu0 0.0
        %2956 = vmatpush.msra.mxu0 0.0
        %2957 = vmatpush.msra.mxu0 0.0
        %2958 = vmatpush.msra.mxu0 0.0
        %2959 = vmatpush.msra.mxu0 0.0
        %2960 = vmatpush.msra.mxu0 0.0
        %2961 = vmatpush.msra.mxu0 0.0
        %2962 = vmatpush.msra.mxu0 0.0
        %2963 = vmatpush.msra.mxu0 %v2946
        %2964 = vmatpush.msra.mxu0 %v2945
        %2965 = vmatpush.msra.mxu0 %v2944
        %2966 = vmatmul.f32.gmra.mxu0 %v2948
        %v2967 = vpop.f32.mrf.mxu0
        %v2968 = vadd.f32 0.0, %v2967
        %2969 = vdwg.mxu0
        %v2970 = vadd.f32 %v2893, %v2968
        %v2971 = vmul.f32 %v2662, %v824
        %v2973 = vsel %vm481, %v2971, 0
        %2975 = vmatpush.xpose.msra.mxu0 0.0
        %2976 = vmatpush.xpose.msra.mxu0 0.0
        %2977 = vmatpush.xpose.msra.mxu0 0.0
        %2978 = vmatpush.xpose.msra.mxu0 0.0
        %2979 = vmatpush.xpose.msra.mxu0 0.0
        %2980 = vmatpush.xpose.msra.mxu0 0.0
        %2981 = vmatpush.xpose.msra.mxu0 0.0
        %2982 = vmatpush.xpose.msra.mxu0 0.0
        %2983 = vmatpush.xpose.msra.mxu0 0.0
        %2984 = vmatpush.xpose.msra.mxu0 0.0
        %2985 = vmatpush.xpose.msra.mxu0 0.0
        %2986 = vmatpush.xpose.msra.mxu0 0.0
        %2987 = vmatpush.xpose.msra.mxu0 0.0
        %2988 = vmatpush.xpose.msra.mxu0 %v2819
        %2989 = vmatpush.xpose.msra.mxu0 %v2816
        %2990 = vmatpush.xpose.msra.mxu0 %v2813
        %2991 = vmatmul.f32.gmra.mxu0 %v2973
        %v2992 = vpop.f32.mrf.mxu0
        %v2993 = vadd.f32 0.0, %v2992
        %2994 = vdwg.mxu0
        %v2995 = vmul.f32 %v2993, 0.17677669
        %v2996 = vadd.f32 %v2995, %v157
        %v2997 = vsel %vm721, %v2996, -inf
        %2998 = vmax.xlane.f32.xlu0 %v2997
        %v2999 = vpop.xlane.xlu0 %2998
        %v3000 = vsub.f32 %v2996, %v2999
        %v3001 = vmul.f32 %v3000, 1.442695
        %v3002 = vpow.pop %v3001
        %v3003 = vsel %vm721, %v3002, 0.0
        %3004 = vadd.xlane.f32.xlu0 %v3003
        %v3005 = vpop.xlane.xlu0 %3004
        %v3006 = vrcp.pop %v3005
        %v3007 = vmul.f32 %v3005, %v3006
        %v3008 = vsub.f32 1.0, %v3007
        %v3009 = vmul.f32 %v3006, %v3008
        %v3010 = vadd.f32 %v3006, %v3009
        %vm3011 = vweird.f32 %v3005
        %vm3012 = vweird.f32 %v3006
        %vm3013 = vmor %vm3011, %vm3012
        %v3014 = vsel %vm3013, %v3006, %v3010
        %v3015 = vand.u32 2147483647, %v3005
        %vm3016 = vcmp.eq.f32.partialorder %v3015, 8.507059e+37
        %v3017 = vand.u32 %v3005, 2147483648
        %v3018 = vor.u32 1.1754944e-38, %v3017
        %v3019 = vsel %vm3016, %v3018, %v3014
        %v3020 = vmul.f32 %v3002, %v3019
        %v3021 = vmul.f32 %v2800, %v824
        %v3022 = vmul.f32 %v2801, %v824
        %v3023 = vmul.f32 %v2802, %v824
        %v3025 = vsel %vm721, %v3020, 0
        %3027 = vmatpush.msra.mxu0 0.0
        %3028 = vmatpush.msra.mxu0 0.0
        %3029 = vmatpush.msra.mxu0 0.0
        %3030 = vmatpush.msra.mxu0 0.0
        %3031 = vmatpush.msra.mxu0 0.0
        %3032 = vmatpush.msra.mxu0 0.0
        %3033 = vmatpush.msra.mxu0 0.0
        %3034 = vmatpush.msra.mxu0 0.0
        %3035 = vmatpush.msra.mxu0 0.0
        %3036 = vmatpush.msra.mxu0 0.0
        %3037 = vmatpush.msra.mxu0 0.0
        %3038 = vmatpush.msra.mxu0 0.0
        %3039 = vmatpush.msra.mxu0 0.0
        %3040 = vmatpush.msra.mxu0 %v3023
        %3041 = vmatpush.msra.mxu0 %v3022
        %3042 = vmatpush.msra.mxu0 %v3021
        %3043 = vmatmul.f32.gmra.mxu0 %v3025
        %v3044 = vpop.f32.mrf.mxu0
        %v3045 = vadd.f32 0.0, %v3044
        %3046 = vdwg.mxu0
        %v3047 = vadd.f32 %v2970, %v3045
        %v3048 = vmul.f32 %v2662, %v902
        %v3050 = vsel %vm481, %v3048, 0
        %3052 = vmatpush.xpose.msra.mxu0 0.0
        %3053 = vmatpush.xpose.msra.mxu0 0.0
        %3054 = vmatpush.xpose.msra.mxu0 0.0
        %3055 = vmatpush.xpose.msra.mxu0 0.0
        %3056 = vmatpush.xpose.msra.mxu0 0.0
        %3057 = vmatpush.xpose.msra.mxu0 0.0
        %3058 = vmatpush.xpose.msra.mxu0 0.0
        %3059 = vmatpush.xpose.msra.mxu0 0.0
        %3060 = vmatpush.xpose.msra.mxu0 0.0
        %3061 = vmatpush.xpose.msra.mxu0 0.0
        %3062 = vmatpush.xpose.msra.mxu0 0.0
        %3063 = vmatpush.xpose.msra.mxu0 0.0
        %3064 = vmatpush.xpose.msra.mxu0 0.0
        %3065 = vmatpush.xpose.msra.mxu0 %v2819
        %3066 = vmatpush.xpose.msra.mxu0 %v2816
        %3067 = vmatpush.xpose.msra.mxu0 %v2813
        %3068 = vmatmul.f32.gmra.mxu0 %v3050
        %v3069 = vpop.f32.mrf.mxu0
        %v3070 = vadd.f32 0.0, %v3069
        %3071 = vdwg.mxu0
        %v3072 = vmul.f32 %v3070, 0.17677669
        %v3073 = vadd.f32 %v3072, %v157
        %v3074 = vsel %vm721, %v3073, -inf
        %3075 = vmax.xlane.f32.xlu0 %v3074
        %v3076 = vpop.xlane.xlu0 %3075
        %v3077 = vsub.f32 %v3073, %v3076
        %v3078 = vmul.f32 %v3077, 1.442695
        %v3079 = vpow.pop %v3078
        %v3080 = vsel %vm721, %v3079, 0.0
        %3081 = vadd.xlane.f32.xlu0 %v3080
        %v3082 = vpop.xlane.xlu0 %3081
        %v3083 = vrcp.pop %v3082
        %v3084 = vmul.f32 %v3082, %v3083
        %v3085 = vsub.f32 1.0, %v3084
        %v3086 = vmul.f32 %v3083, %v3085
        %v3087 = vadd.f32 %v3083, %v3086
        %vm3088 = vweird.f32 %v3082
        %vm3089 = vweird.f32 %v3083
        %vm3090 = vmor %vm3088, %vm3089
        %v3091 = vsel %vm3090, %v3083, %v3087
        %v3092 = vand.u32 2147483647, %v3082
        %vm3093 = vcmp.eq.f32.partialorder %v3092, 8.507059e+37
        %v3094 = vand.u32 %v3082, 2147483648
        %v3095 = vor.u32 1.1754944e-38, %v3094
        %v3096 = vsel %vm3093, %v3095, %v3091
        %v3097 = vmul.f32 %v3079, %v3096
        %v3098 = vmul.f32 %v2800, %v902
        %v3099 = vmul.f32 %v2801, %v902
        %v3100 = vmul.f32 %v2802, %v902
        %v3102 = vsel %vm721, %v3097, 0
        %3104 = vmatpush.msra.mxu0 0.0
        %3105 = vmatpush.msra.mxu0 0.0
        %3106 = vmatpush.msra.mxu0 0.0
        %3107 = vmatpush.msra.mxu0 0.0
        %3108 = vmatpush.msra.mxu0 0.0
        %3109 = vmatpush.msra.mxu0 0.0
        %3110 = vmatpush.msra.mxu0 0.0
        %3111 = vmatpush.msra.mxu0 0.0
        %3112 = vmatpush.msra.mxu0 0.0
        %3113 = vmatpush.msra.mxu0 0.0
        %3114 = vmatpush.msra.mxu0 0.0
        %3115 = vmatpush.msra.mxu0 0.0
        %3116 = vmatpush.msra.mxu0 0.0
        %3117 = vmatpush.msra.mxu0 %v3100
        %3118 = vmatpush.msra.mxu0 %v3099
        %3119 = vmatpush.msra.mxu0 %v3098
        %3120 = vmatmul.f32.gmra.mxu0 %v3102
        %v3121 = vpop.f32.mrf.mxu0
        %v3122 = vadd.f32 0.0, %v3121
        %3123 = vdwg.mxu0
        %v3124 = vadd.f32 %v3047, %v3122
        %v3125 = vperm.slane %v2807, 0
        %v3127 = vsel %vm481, %v3124, 0
        %3129 = vmatpush.msra.mxu0 0.0
        %3130 = vmatpush.msra.mxu0 0.0
        %3131 = vmatpush.msra.mxu0 0.0
        %3132 = vmatpush.msra.mxu0 0.0
        %3133 = vmatpush.msra.mxu0 0.0
        %3134 = vmatpush.msra.mxu0 0.0
        %3135 = vmatpush.msra.mxu0 0.0
        %3136 = vmatpush.msra.mxu0 0.0
        %3137 = vmatpush.msra.mxu0 0.0
        %3138 = vmatpush.msra.mxu0 0.0
        %3139 = vmatpush.msra.mxu0 0.0
        %3140 = vmatpush.msra.mxu0 0.0
        %3141 = vmatpush.msra.mxu0 %v2806
        %3142 = vmatpush.msra.mxu0 %v2805
        %3143 = vmatpush.msra.mxu0 %v2804
        %3144 = vmatpush.msra.mxu0 %v2803
        %3145 = vmatmul.f32.gmra.mxu0 %v3127
        %v3146 = vpop.f32.mrf.mxu0
        %v3147 = vadd.f32 %v3125, %v3146
        %3148 = vdwg.mxu0
        %v3149 = vmax.f32 %v3147, 0.0
        %v3150 = vadd.f32 %v3124, %v3149
        %v3151 = vld [vmem:[%s1 + $0x3e0] sm:$0xff]
        %v3152 = vld [vmem:[%s1 + $0x3e8] sm:$0xff]
        %v3153 = vld [vmem:[%s1 + $0x3f0] sm:$0xff]
        %v3154 = vld [vmem:[%s1 + $0x3f8] sm:$0xff]
        %3155 = vmatpush.msra.mxu0 0.0
        %3156 = vmatpush.msra.mxu0 0.0
        %3157 = vmatpush.msra.mxu0 0.0
        %3158 = vmatpush.msra.mxu0 0.0
        %3159 = vmatpush.msra.mxu0 0.0
        %3160 = vmatpush.msra.mxu0 0.0
        %3161 = vmatpush.msra.mxu0 0.0
        %3162 = vmatpush.msra.mxu0 0.0
        %3163 = vmatpush.msra.mxu0 0.0
        %3164 = vmatpush.msra.mxu0 0.0
        %3165 = vmatpush.msra.mxu0 0.0
        %3166 = vmatpush.msra.mxu0 0.0
        %3167 = vmatpush.msra.mxu0 %v3154
        %3168 = vmatpush.msra.mxu0 %v3153
        %3169 = vmatpush.msra.mxu0 %v3152
        %3170 = vmatpush.msra.mxu0 %v3151
        %3171 = vmatmul.f32.gmra.mxu0 %v2148
        %v3172 = vpop.f32.mrf.mxu0
        %v3173 = vadd.f32 0.0, %v3172
        %3174 = vmatmul.f32.gmra.mxu0 %v2151
        %v3175 = vpop.f32.mrf.mxu0
        %v3176 = vadd.f32 0.0, %v3175
        %3177 = vmatmul.f32.gmra.mxu0 %v2154
        %v3178 = vpop.f32.mrf.mxu0
        %v3179 = vadd.f32 0.0, %v3178
        %3180 = vdwg.mxu0
        %v3181 = vadd.f32 %v1629, %v3173
        %v3182 = vadd.f32 %v1630, %v3176
        %v3183 = vadd.f32 %v1631, %v3179
        %v3184 = vld [vmem:[%s1 + $0x400] sm:$0xff]
        %v3185 = vld [vmem:[%s1 + $0x408] sm:$0xff]
        %v3186 = vld [vmem:[%s1 + $0x410] sm:$0xff]
        %v3187 = vld [vmem:[%s1 + $0x418] sm:$0xff]
        %3188 = vmatpush.msra.mxu0 0.0
        %3189 = vmatpush.msra.mxu0 0.0
        %3190 = vmatpush.msra.mxu0 0.0
        %3191 = vmatpush.msra.mxu0 0.0
        %3192 = vmatpush.msra.mxu0 0.0
        %3193 = vmatpush.msra.mxu0 0.0
        %3194 = vmatpush.msra.mxu0 0.0
        %3195 = vmatpush.msra.mxu0 0.0
        %3196 = vmatpush.msra.mxu0 0.0
        %3197 = vmatpush.msra.mxu0 0.0
        %3198 = vmatpush.msra.mxu0 0.0
        %3199 = vmatpush.msra.mxu0 0.0
        %3200 = vmatpush.msra.mxu0 %v3187
        %3201 = vmatpush.msra.mxu0 %v3186
        %3202 = vmatpush.msra.mxu0 %v3185
        %3203 = vmatpush.msra.mxu0 %v3184
        %3204 = vmatmul.f32.gmra.mxu0 %v2183
        %v3205 = vpop.f32.mrf.mxu0
        %v3206 = vadd.f32 0.0, %v3205
        %3207 = vmatmul.f32.gmra.mxu0 %v2186
        %v3208 = vpop.f32.mrf.mxu0
        %v3209 = vadd.f32 0.0, %v3208
        %3210 = vmatmul.f32.gmra.mxu0 %v2189
        %v3211 = vpop.f32.mrf.mxu0
        %v3212 = vadd.f32 0.0, %v3211
        %3213 = vdwg.mxu0
        %v3214 = vadd.f32 %v3181, %v3206
        %v3215 = vadd.f32 %v3182, %v3209
        %v3216 = vadd.f32 %v3183, %v3212
        %v3217 = vld [vmem:[%s1 + $0x420] sm:$0xff]
        %v3218 = vld [vmem:[%s1 + $0x428] sm:$0xff]
        %v3219 = vld [vmem:[%s1 + $0x430] sm:$0xff]
        %v3220 = vld [vmem:[%s1 + $0x438] sm:$0xff]
        %3221 = vmatpush.msra.mxu0 0.0
        %3222 = vmatpush.msra.mxu0 0.0
        %3223 = vmatpush.msra.mxu0 0.0
        %3224 = vmatpush.msra.mxu0 0.0
        %3225 = vmatpush.msra.mxu0 0.0
        %3226 = vmatpush.msra.mxu0 0.0
        %3227 = vmatpush.msra.mxu0 0.0
        %3228 = vmatpush.msra.mxu0 0.0
        %3229 = vmatpush.msra.mxu0 0.0
        %3230 = vmatpush.msra.mxu0 0.0
        %3231 = vmatpush.msra.mxu0 0.0
        %3232 = vmatpush.msra.mxu0 0.0
        %3233 = vmatpush.msra.mxu0 %v3220
        %3234 = vmatpush.msra.mxu0 %v3219
        %3235 = vmatpush.msra.mxu0 %v3218
        %3236 = vmatpush.msra.mxu0 %v3217
        %3237 = vmatmul.f32.gmra.mxu0 %v2699
        %v3238 = vpop.f32.mrf.mxu0
        %v3239 = vadd.f32 0.0, %v3238
        %3240 = vmatmul.f32.gmra.mxu0 %v2702
        %v3241 = vpop.f32.mrf.mxu0
        %v3242 = vadd.f32 0.0, %v3241
        %3243 = vmatmul.f32.gmra.mxu0 %v2705
        %v3244 = vpop.f32.mrf.mxu0
        %v3245 = vadd.f32 0.0, %v3244
        %3246 = vdwg.mxu0
        %v3247 = vadd.f32 %v3214, %v3239
        %v3248 = vadd.f32 %v3215, %v3242
        %v3249 = vadd.f32 %v3216, %v3245
        %v3250 = vld [vmem:[%s1 + $0x4f0] sm:$0x1]
        %v3251 = vperm.slane %v3250, 0
        %v3252 = vadd.f32 %v3247, %v3251
        %v3253 = vadd.f32 %v3248, %v3251
        %v3254 = vadd.f32 %v3249, %v3251
        %v3255 = vmax.f32 %v3252, 0.0
        %v3256 = vmax.f32 %v3253, 0.0
        %v3257 = vmax.f32 %v3254, 0.0
        %v3258 = vmul.f32 %v3255, %v213
        %v3259 = vmul.f32 %v3256, %v218
        %v3260 = vmul.f32 %v3257, %v223
        %v3261 = vld [vmem:[%s1 + $0x440] sm:$0xff]
        %v3262 = vld [vmem:[%s1 + $0x448] sm:$0xff]
        %v3263 = vld [vmem:[%s1 + $0x450] sm:$0xff]
        %v3264 = vld [vmem:[%s1 + $0x458] sm:$0xff]
        %v3265 = vld [vmem:[%s1 + $0x4f1] sm:$0x1]
        %v3266 = vperm.slane %v3265, 0
        %v3268 = vsel %vm481, %v2634, 0
        %3270 = vmatpush.msra.mxu0 0.0
        %3271 = vmatpush.msra.mxu0 0.0
        %3272 = vmatpush.msra.mxu0 0.0
        %3273 = vmatpush.msra.mxu0 0.0
        %3274 = vmatpush.msra.mxu0 0.0
        %3275 = vmatpush.msra.mxu0 0.0
        %3276 = vmatpush.msra.mxu0 0.0
        %3277 = vmatpush.msra.mxu0 0.0
        %3278 = vmatpush.msra.mxu0 0.0
        %3279 = vmatpush.msra.mxu0 0.0
        %3280 = vmatpush.msra.mxu0 0.0
        %3281 = vmatpush.msra.mxu0 0.0
        %3282 = vmatpush.msra.mxu0 %v3264
        %3283 = vmatpush.msra.mxu0 %v3263
        %3284 = vmatpush.msra.mxu0 %v3262
        %3285 = vmatpush.msra.mxu0 %v3261
        %3286 = vmatmul.f32.gmra.mxu0 %v3268
        %v3287 = vpop.f32.mrf.mxu0
        %v3288 = vadd.f32 %v3266, %v3287
        %3289 = vdwg.mxu0
        %v3290 = vld [vmem:[%s1 + $0x460] sm:$0xff]
        %v3291 = vld [vmem:[%s1 + $0x468] sm:$0xff]
        %v3292 = vld [vmem:[%s1 + $0x470] sm:$0xff]
        %v3293 = vld [vmem:[%s1 + $0x478] sm:$0xff]
        %v3294 = vld [vmem:[%s1 + $0x4f2] sm:$0x1]
        %v3295 = vperm.slane %v3294, 0
        %3296 = vmatpush.msra.mxu0 0.0
        %3297 = vmatpush.msra.mxu0 0.0
        %3298 = vmatpush.msra.mxu0 0.0
        %3299 = vmatpush.msra.mxu0 0.0
        %3300 = vmatpush.msra.mxu0 0.0
        %3301 = vmatpush.msra.mxu0 0.0
        %3302 = vmatpush.msra.mxu0 0.0
        %3303 = vmatpush.msra.mxu0 0.0
        %3304 = vmatpush.msra.mxu0 0.0
        %3305 = vmatpush.msra.mxu0 0.0
        %3306 = vmatpush.msra.mxu0 0.0
        %3307 = vmatpush.msra.mxu0 0.0
        %3308 = vmatpush.msra.mxu0 %v3293
        %3309 = vmatpush.msra.mxu0 %v3292
        %3310 = vmatpush.msra.mxu0 %v3291
        %3311 = vmatpush.msra.mxu0 %v3290
        %3312 = vmatmul.f32.gmra.mxu0 %v3268
        %v3313 = vpop.f32.mrf.mxu0
        %v3314 = vadd.f32 %v3295, %v3313
        %3315 = vdwg.mxu0
        %v3316 = vld [vmem:[%s1 + $0x480] sm:$0xff]
        %v3317 = vld [vmem:[%s1 + $0x488] sm:$0xff]
        %v3318 = vld [vmem:[%s1 + $0x490] sm:$0xff]
        %v3319 = vld [vmem:[%s1 + $0x498] sm:$0xff]
        %v3320 = vld [vmem:[%s1 + $0x4f3] sm:$0x1]
        %v3321 = vperm.slane %v3320, 0
        %3322 = vmatpush.msra.mxu0 0.0
        %3323 = vmatpush.msra.mxu0 0.0
        %3324 = vmatpush.msra.mxu0 0.0
        %3325 = vmatpush.msra.mxu0 0.0
        %3326 = vmatpush.msra.mxu0 0.0
        %3327 = vmatpush.msra.mxu0 0.0
        %3328 = vmatpush.msra.mxu0 0.0
        %3329 = vmatpush.msra.mxu0 0.0
        %3330 = vmatpush.msra.mxu0 0.0
        %3331 = vmatpush.msra.mxu0 0.0
        %3332 = vmatpush.msra.mxu0 0.0
        %3333 = vmatpush.msra.mxu0 0.0
        %3334 = vmatpush.msra.mxu0 %v3319
        %3335 = vmatpush.msra.mxu0 %v3318
        %3336 = vmatpush.msra.mxu0 %v3317
        %3337 = vmatpush.msra.mxu0 %v3316
        %3338 = vmatmul.f32.gmra.mxu0 %v3268
        %v3339 = vpop.f32.mrf.mxu0
        %v3340 = vadd.f32 %v3321, %v3339
        %3341 = vdwg.mxu0
        %v3342 = vld [vmem:[%s1 + $0x4a0] sm:$0xff]
        %v3343 = vld [vmem:[%s1 + $0x4a8] sm:$0xff]
        %v3344 = vld [vmem:[%s1 + $0x4b0] sm:$0xff]
        %v3345 = vld [vmem:[%s1 + $0x4b8] sm:$0xff]
        %v3346 = vld [vmem:[%s1 + $0x4f4] sm:$0x1]
        %v3347 = vmul.f32 %v3288, %v657
        %v3349 = vsel %vm481, %v3347, 0
        %v3352 = vsel %vm481, %v3314, 0
        %3354 = vmatpush.xpose.msra.mxu0 0.0
        %3355 = vmatpush.xpose.msra.mxu0 0.0
        %3356 = vmatpush.xpose.msra.mxu0 0.0
        %3357 = vmatpush.xpose.msra.mxu0 0.0
        %3358 = vmatpush.xpose.msra.mxu0 0.0
        %3359 = vmatpush.xpose.msra.mxu0 0.0
        %3360 = vmatpush.xpose.msra.mxu0 0.0
        %3361 = vmatpush.xpose.msra.mxu0 0.0
        %3362 = vmatpush.xpose.msra.mxu0 0.0
        %3363 = vmatpush.xpose.msra.mxu0 0.0
        %3364 = vmatpush.xpose.msra.mxu0 0.0
        %3365 = vmatpush.xpose.msra.mxu0 0.0
        %3366 = vmatpush.xpose.msra.mxu0 0.0
        %3367 = vmatpush.xpose.msra.mxu0 0.0
        %3368 = vmatpush.xpose.msra.mxu0 0.0
        %3369 = vmatpush.xpose.msra.mxu0 %v3352
        %3370 = vmatmul.f32.gmra.mxu0 %v3349
        %v3371 = vpop.f32.mrf.mxu0
        %v3372 = vadd.f32 0.0, %v3371
        %3373 = vdwg.mxu0
        %v3374 = vmul.f32 %v3372, 0.17677669
        %v3375 = vsel %vm1746, %v3374, -inf
        %3376 = vmax.xlane.f32.xlu0 %v3375
        %v3377 = vpop.xlane.xlu0 %3376
        %v3378 = vsub.f32 %v3374, %v3377
        %v3379 = vmul.f32 %v3378, 1.442695
        %v3380 = vpow.pop %v3379
        %v3381 = vsel %vm1746, %v3380, 0.0
        %3382 = vadd.xlane.f32.xlu0 %v3381
        %v3383 = vpop.xlane.xlu0 %3382
        %v3384 = vrcp.pop %v3383
        %v3385 = vmul.f32 %v3383, %v3384
        %v3386 = vsub.f32 1.0, %v3385
        %v3387 = vmul.f32 %v3384, %v3386
        %v3388 = vadd.f32 %v3384, %v3387
        %vm3389 = vweird.f32 %v3383
        %vm3390 = vweird.f32 %v3384
        %vm3391 = vmor %vm3389, %vm3390
        %v3392 = vsel %vm3391, %v3384, %v3388
        %v3393 = vand.u32 2147483647, %v3383
        %vm3394 = vcmp.eq.f32.partialorder %v3393, 8.507059e+37
        %v3395 = vand.u32 %v3383, 2147483648
        %v3396 = vor.u32 1.1754944e-38, %v3395
        %v3397 = vsel %vm3394, %v3396, %v3392
        %v3398 = vmul.f32 %v3380, %v3397
        %v3399 = vmul.f32 %v3340, %v657
        %v3401 = vsel %vm435, %v3398, 0
        %v3404 = vsel %vm445, %v3399, 0
        %3406 = vmatpush.msra.mxu0 0.0
        %3407 = vmatpush.msra.mxu0 0.0
        %3408 = vmatpush.msra.mxu0 0.0
        %3409 = vmatpush.msra.mxu0 0.0
        %3410 = vmatpush.msra.mxu0 0.0
        %3411 = vmatpush.msra.mxu0 0.0
        %3412 = vmatpush.msra.mxu0 0.0
        %3413 = vmatpush.msra.mxu0 0.0
        %3414 = vmatpush.msra.mxu0 0.0
        %3415 = vmatpush.msra.mxu0 0.0
        %3416 = vmatpush.msra.mxu0 0.0
        %3417 = vmatpush.msra.mxu0 0.0
        %3418 = vmatpush.msra.mxu0 0.0
        %3419 = vmatpush.msra.mxu0 0.0
        %3420 = vmatpush.msra.mxu0 0.0
        %3421 = vmatpush.msra.mxu0 %v3404
        %3422 = vmatmul.f32.gmra.mxu0 %v3401
        %v3423 = vpop.f32.mrf.mxu0
        %v3424 = vadd.f32 0.0, %v3423
        %3425 = vdwg.mxu0
        %v3426 = vadd.f32 %v3288, %v3424
        %v3427 = vmul.f32 %v3288, %v746
        %v3429 = vsel %vm481, %v3427, 0
        %3431 = vmatpush.xpose.msra.mxu0 0.0
        %3432 = vmatpush.xpose.msra.mxu0 0.0
        %3433 = vmatpush.xpose.msra.mxu0 0.0
        %3434 = vmatpush.xpose.msra.mxu0 0.0
        %3435 = vmatpush.xpose.msra.mxu0 0.0
        %3436 = vmatpush.xpose.msra.mxu0 0.0
        %3437 = vmatpush.xpose.msra.mxu0 0.0
        %3438 = vmatpush.xpose.msra.mxu0 0.0
        %3439 = vmatpush.xpose.msra.mxu0 0.0
        %3440 = vmatpush.xpose.msra.mxu0 0.0
        %3441 = vmatpush.xpose.msra.mxu0 0.0
        %3442 = vmatpush.xpose.msra.mxu0 0.0
        %3443 = vmatpush.xpose.msra.mxu0 0.0
        %3444 = vmatpush.xpose.msra.mxu0 0.0
        %3445 = vmatpush.xpose.msra.mxu0 0.0
        %3446 = vmatpush.xpose.msra.mxu0 %v3352
        %3447 = vmatmul.f32.gmra.mxu0 %v3429
        %v3448 = vpop.f32.mrf.mxu0
        %v3449 = vadd.f32 0.0, %v3448
        %3450 = vdwg.mxu0
        %v3451 = vmul.f32 %v3449, 0.17677669
        %v3452 = vsel %vm1746, %v3451, -inf
        %3453 = vmax.xlane.f32.xlu0 %v3452
        %v3454 = vpop.xlane.xlu0 %3453
        %v3455 = vsub.f32 %v3451, %v3454
        %v3456 = vmul.f32 %v3455, 1.442695
        %v3457 = vpow.pop %v3456
        %v3458 = vsel %vm1746, %v3457, 0.0
        %3459 = vadd.xlane.f32.xlu0 %v3458
        %v3460 = vpop.xlane.xlu0 %3459
        %v3461 = vrcp.pop %v3460
        %v3462 = vmul.f32 %v3460, %v3461
        %v3463 = vsub.f32 1.0, %v3462
        %v3464 = vmul.f32 %v3461, %v3463
        %v3465 = vadd.f32 %v3461, %v3464
        %vm3466 = vweird.f32 %v3460
        %vm3467 = vweird.f32 %v3461
        %vm3468 = vmor %vm3466, %vm3467
        %v3469 = vsel %vm3468, %v3461, %v3465
        %v3470 = vand.u32 2147483647, %v3460
        %vm3471 = vcmp.eq.f32.partialorder %v3470, 8.507059e+37
        %v3472 = vand.u32 %v3460, 2147483648
        %v3473 = vor.u32 1.1754944e-38, %v3472
        %v3474 = vsel %vm3471, %v3473, %v3469
        %v3475 = vmul.f32 %v3457, %v3474
        %v3476 = vmul.f32 %v3340, %v746
        %v3478 = vsel %vm435, %v3475, 0
        %v3481 = vsel %vm445, %v3476, 0
        %3483 = vmatpush.msra.mxu0 0.0
        %3484 = vmatpush.msra.mxu0 0.0
        %3485 = vmatpush.msra.mxu0 0.0
        %3486 = vmatpush.msra.mxu0 0.0
        %3487 = vmatpush.msra.mxu0 0.0
        %3488 = vmatpush.msra.mxu0 0.0
        %3489 = vmatpush.msra.mxu0 0.0
        %3490 = vmatpush.msra.mxu0 0.0
        %3491 = vmatpush.msra.mxu0 0.0
        %3492 = vmatpush.msra.mxu0 0.0
        %3493 = vmatpush.msra.mxu0 0.0
        %3494 = vmatpush.msra.mxu0 0.0
        %3495 = vmatpush.msra.mxu0 0.0
        %3496 = vmatpush.msra.mxu0 0.0
        %3497 = vmatpush.msra.mxu0 0.0
        %3498 = vmatpush.msra.mxu0 %v3481
        %3499 = vmatmul.f32.gmra.mxu0 %v3478
        %v3500 = vpop.f32.mrf.mxu0
        %v3501 = vadd.f32 0.0, %v3500
        %3502 = vdwg.mxu0
        %v3503 = vadd.f32 %v3426, %v3501
        %v3504 = vmul.f32 %v3288, %v824
        %v3506 = vsel %vm481, %v3504, 0
        %3508 = vmatpush.xpose.msra.mxu0 0.0
        %3509 = vmatpush.xpose.msra.mxu0 0.0
        %3510 = vmatpush.xpose.msra.mxu0 0.0
        %3511 = vmatpush.xpose.msra.mxu0 0.0
        %3512 = vmatpush.xpose.msra.mxu0 0.0
        %3513 = vmatpush.xpose.msra.mxu0 0.0
        %3514 = vmatpush.xpose.msra.mxu0 0.0
        %3515 = vmatpush.xpose.msra.mxu0 0.0
        %3516 = vmatpush.xpose.msra.mxu0 0.0
        %3517 = vmatpush.xpose.msra.mxu0 0.0
        %3518 = vmatpush.xpose.msra.mxu0 0.0
        %3519 = vmatpush.xpose.msra.mxu0 0.0
        %3520 = vmatpush.xpose.msra.mxu0 0.0
        %3521 = vmatpush.xpose.msra.mxu0 0.0
        %3522 = vmatpush.xpose.msra.mxu0 0.0
        %3523 = vmatpush.xpose.msra.mxu0 %v3352
        %3524 = vmatmul.f32.gmra.mxu0 %v3506
        %v3525 = vpop.f32.mrf.mxu0
        %v3526 = vadd.f32 0.0, %v3525
        %3527 = vdwg.mxu0
        %v3528 = vmul.f32 %v3526, 0.17677669
        %v3529 = vsel %vm1746, %v3528, -inf
        %3530 = vmax.xlane.f32.xlu0 %v3529
        %v3531 = vpop.xlane.xlu0 %3530
        %v3532 = vsub.f32 %v3528, %v3531
        %v3533 = vmul.f32 %v3532, 1.442695
        %v3534 = vpow.pop %v3533
        %v3535 = vsel %vm1746, %v3534, 0.0
        %3536 = vadd.xlane.f32.xlu0 %v3535
        %v3537 = vpop.xlane.xlu0 %3536
        %v3538 = vrcp.pop %v3537
        %v3539 = vmul.f32 %v3537, %v3538
        %v3540 = vsub.f32 1.0, %v3539
        %v3541 = vmul.f32 %v3538, %v3540
        %v3542 = vadd.f32 %v3538, %v3541
        %vm3543 = vweird.f32 %v3537
        %vm3544 = vweird.f32 %v3538
        %vm3545 = vmor %vm3543, %vm3544
        %v3546 = vsel %vm3545, %v3538, %v3542
        %v3547 = vand.u32 2147483647, %v3537
        %vm3548 = vcmp.eq.f32.partialorder %v3547, 8.507059e+37
        %v3549 = vand.u32 %v3537, 2147483648
        %v3550 = vor.u32 1.1754944e-38, %v3549
        %v3551 = vsel %vm3548, %v3550, %v3546
        %v3552 = vmul.f32 %v3534, %v3551
        %v3553 = vmul.f32 %v3340, %v824
        %v3555 = vsel %vm435, %v3552, 0
        %v3558 = vsel %vm445, %v3553, 0
        %3560 = vmatpush.msra.mxu0 0.0
        %3561 = vmatpush.msra.mxu0 0.0
        %3562 = vmatpush.msra.mxu0 0.0
        %3563 = vmatpush.msra.mxu0 0.0
        %3564 = vmatpush.msra.mxu0 0.0
        %3565 = vmatpush.msra.mxu0 0.0
        %3566 = vmatpush.msra.mxu0 0.0
        %3567 = vmatpush.msra.mxu0 0.0
        %3568 = vmatpush.msra.mxu0 0.0
        %3569 = vmatpush.msra.mxu0 0.0
        %3570 = vmatpush.msra.mxu0 0.0
        %3571 = vmatpush.msra.mxu0 0.0
        %3572 = vmatpush.msra.mxu0 0.0
        %3573 = vmatpush.msra.mxu0 0.0
        %3574 = vmatpush.msra.mxu0 0.0
        %3575 = vmatpush.msra.mxu0 %v3558
        %3576 = vmatmul.f32.gmra.mxu0 %v3555
        %v3577 = vpop.f32.mrf.mxu0
        %v3578 = vadd.f32 0.0, %v3577
        %3579 = vdwg.mxu0
        %v3580 = vadd.f32 %v3503, %v3578
        %v3581 = vmul.f32 %v3288, %v902
        %v3583 = vsel %vm481, %v3581, 0
        %3585 = vmatpush.xpose.msra.mxu0 0.0
        %3586 = vmatpush.xpose.msra.mxu0 0.0
        %3587 = vmatpush.xpose.msra.mxu0 0.0
        %3588 = vmatpush.xpose.msra.mxu0 0.0
        %3589 = vmatpush.xpose.msra.mxu0 0.0
        %3590 = vmatpush.xpose.msra.mxu0 0.0
        %3591 = vmatpush.xpose.msra.mxu0 0.0
        %3592 = vmatpush.xpose.msra.mxu0 0.0
        %3593 = vmatpush.xpose.msra.mxu0 0.0
        %3594 = vmatpush.xpose.msra.mxu0 0.0
        %3595 = vmatpush.xpose.msra.mxu0 0.0
        %3596 = vmatpush.xpose.msra.mxu0 0.0
        %3597 = vmatpush.xpose.msra.mxu0 0.0
        %3598 = vmatpush.xpose.msra.mxu0 0.0
        %3599 = vmatpush.xpose.msra.mxu0 0.0
        %3600 = vmatpush.xpose.msra.mxu0 %v3352
        %3601 = vmatmul.f32.gmra.mxu0 %v3583
        %v3602 = vpop.f32.mrf.mxu0
        %v3603 = vadd.f32 0.0, %v3602
        %3604 = vdwg.mxu0
        %v3605 = vmul.f32 %v3603, 0.17677669
        %v3606 = vsel %vm1746, %v3605, -inf
        %3607 = vmax.xlane.f32.xlu0 %v3606
        %v3608 = vpop.xlane.xlu0 %3607
        %v3609 = vsub.f32 %v3605, %v3608
        %v3610 = vmul.f32 %v3609, 1.442695
        %v3611 = vpow.pop %v3610
        %v3612 = vsel %vm1746, %v3611, 0.0
        %3613 = vadd.xlane.f32.xlu0 %v3612
        %v3614 = vpop.xlane.xlu0 %3613
        %v3615 = vrcp.pop %v3614
        %v3616 = vmul.f32 %v3614, %v3615
        %v3617 = vsub.f32 1.0, %v3616
        %v3618 = vmul.f32 %v3615, %v3617
        %v3619 = vadd.f32 %v3615, %v3618
        %vm3620 = vweird.f32 %v3614
        %vm3621 = vweird.f32 %v3615
        %vm3622 = vmor %vm3620, %vm3621
        %v3623 = vsel %vm3622, %v3615, %v3619
        %v3624 = vand.u32 2147483647, %v3614
        %vm3625 = vcmp.eq.f32.partialorder %v3624, 8.507059e+37
        %v3626 = vand.u32 %v3614, 2147483648
        %v3627 = vor.u32 1.1754944e-38, %v3626
        %v3628 = vsel %vm3625, %v3627, %v3623
        %v3629 = vmul.f32 %v3611, %v3628
        %v3630 = vmul.f32 %v3340, %v902
        %v3632 = vsel %vm435, %v3629, 0
        %v3635 = vsel %vm445, %v3630, 0
        %3637 = vmatpush.msra.mxu0 0.0
        %3638 = vmatpush.msra.mxu0 0.0
        %3639 = vmatpush.msra.mxu0 0.0
        %3640 = vmatpush.msra.mxu0 0.0
        %3641 = vmatpush.msra.mxu0 0.0
        %3642 = vmatpush.msra.mxu0 0.0
        %3643 = vmatpush.msra.mxu0 0.0
        %3644 = vmatpush.msra.mxu0 0.0
        %3645 = vmatpush.msra.mxu0 0.0
        %3646 = vmatpush.msra.mxu0 0.0
        %3647 = vmatpush.msra.mxu0 0.0
        %3648 = vmatpush.msra.mxu0 0.0
        %3649 = vmatpush.msra.mxu0 0.0
        %3650 = vmatpush.msra.mxu0 0.0
        %3651 = vmatpush.msra.mxu0 0.0
        %3652 = vmatpush.msra.mxu0 %v3635
        %3653 = vmatmul.f32.gmra.mxu0 %v3632
        %v3654 = vpop.f32.mrf.mxu0
        %v3655 = vadd.f32 0.0, %v3654
        %3656 = vdwg.mxu0
        %v3657 = vadd.f32 %v3580, %v3655
        %v3658 = vperm.slane %v3346, 0
        %v3660 = vsel %vm481, %v3657, 0
        %3662 = vmatpush.msra.mxu0 0.0
        %3663 = vmatpush.msra.mxu0 0.0
        %3664 = vmatpush.msra.mxu0 0.0
        %3665 = vmatpush.msra.mxu0 0.0
        %3666 = vmatpush.msra.mxu0 0.0
        %3667 = vmatpush.msra.mxu0 0.0
        %3668 = vmatpush.msra.mxu0 0.0
        %3669 = vmatpush.msra.mxu0 0.0
        %3670 = vmatpush.msra.mxu0 0.0
        %3671 = vmatpush.msra.mxu0 0.0
        %3672 = vmatpush.msra.mxu0 0.0
        %3673 = vmatpush.msra.mxu0 0.0
        %3674 = vmatpush.msra.mxu0 %v3345
        %3675 = vmatpush.msra.mxu0 %v3344
        %3676 = vmatpush.msra.mxu0 %v3343
        %3677 = vmatpush.msra.mxu0 %v3342
        %3678 = vmatmul.f32.gmra.mxu0 %v3660
        %v3679 = vpop.f32.mrf.mxu0
        %v3680 = vadd.f32 %v3658, %v3679
        %3681 = vdwg.mxu0
        %v3682 = vmax.f32 %v3680, 0.0
        %v3683 = vadd.f32 %v3657, %v3682
        %3684 = vmatpush.msra.mxu0 0.0
        %3685 = vmatpush.msra.mxu0 0.0
        %3686 = vmatpush.msra.mxu0 0.0
        %3687 = vmatpush.msra.mxu0 0.0
        %3688 = vmatpush.msra.mxu0 0.0
        %3689 = vmatpush.msra.mxu0 0.0
        %3690 = vmatpush.msra.mxu0 0.0
        %3691 = vmatpush.msra.mxu0 0.0
        %3692 = vmatpush.msra.mxu0 0.0
        %3693 = vmatpush.msra.mxu0 0.0
        %3694 = vmatpush.msra.mxu0 0.0
        %3695 = vmatpush.msra.mxu0 0.0
        %3696 = vmatpush.msra.mxu0 0.0
        %3697 = vmatpush.msra.mxu0 0.0
        %3698 = vmatpush.msra.mxu0 0.0
        %3699 = vmatpush.msra.mxu0 %v3150
        %3700 = vmatmul.f32.gmra.mxu0 %v401
        %v3701 = vpop.f32.mrf.mxu0
        %v3702 = vadd.f32 0.0, %v3701
        %3703 = vmatmul.f32.gmra.mxu0 %v404
        %v3704 = vpop.f32.mrf.mxu0
        %v3705 = vadd.f32 0.0, %v3704
        %3706 = vmatmul.f32.gmra.mxu0 %v407
        %v3707 = vpop.f32.mrf.mxu0
        %v3708 = vadd.f32 0.0, %v3707
        %3709 = vdwg.mxu0
        %v3711 = vsel %vm445, %v3683, 0
        %3713 = vmatpush.msra.mxu0 0.0
        %3714 = vmatpush.msra.mxu0 0.0
        %3715 = vmatpush.msra.mxu0 0.0
        %3716 = vmatpush.msra.mxu0 0.0
        %3717 = vmatpush.msra.mxu0 0.0
        %3718 = vmatpush.msra.mxu0 0.0
        %3719 = vmatpush.msra.mxu0 0.0
        %3720 = vmatpush.msra.mxu0 0.0
        %3721 = vmatpush.msra.mxu0 0.0
        %3722 = vmatpush.msra.mxu0 0.0
        %3723 = vmatpush.msra.mxu0 0.0
        %3724 = vmatpush.msra.mxu0 0.0
        %3725 = vmatpush.msra.mxu0 0.0
        %3726 = vmatpush.msra.mxu0 0.0
        %3727 = vmatpush.msra.mxu0 0.0
        %3728 = vmatpush.msra.mxu0 %v3711
        %3729 = vmatmul.f32.gmra.mxu0 %v437
        %v3730 = vpop.f32.mrf.mxu0
        %v3731 = vadd.f32 0.0, %v3730
        %3732 = vmatmul.f32.gmra.mxu0 %v440
        %v3733 = vpop.f32.mrf.mxu0
        %v3734 = vadd.f32 0.0, %v3733
        %3735 = vmatmul.f32.gmra.mxu0 %v443
        %v3736 = vpop.f32.mrf.mxu0
        %v3737 = vadd.f32 0.0, %v3736
        %3738 = vdwg.mxu0
        %v3739 = vld [vmem:[%s1 + $0x4c5] sm:$0x1]
        %v3740 = vld [vmem:[%s1 + $0x4c6] sm:$0x1]
        %v3742 = vsel %vm481, %v3740, 0
        %v3745 = vsel %vm481, %v3702, 0
        %v3748 = vsel %vm481, %v3705, 0
        %v3751 = vsel %vm481, %v3708, 0
        %3753 = vmatpush.xpose.msra.mxu0 0.0
        %3754 = vmatpush.xpose.msra.mxu0 0.0
        %3755 = vmatpush.xpose.msra.mxu0 0.0
        %3756 = vmatpush.xpose.msra.mxu0 0.0
        %3757 = vmatpush.xpose.msra.mxu0 0.0
        %3758 = vmatpush.xpose.msra.mxu0 0.0
        %3759 = vmatpush.xpose.msra.mxu0 0.0
        %3760 = vmatpush.xpose.msra.mxu0 0.0
        %3761 = vmatpush.xpose.msra.mxu0 0.0
        %3762 = vmatpush.xpose.msra.mxu0 0.0
        %3763 = vmatpush.xpose.msra.mxu0 0.0
        %3764 = vmatpush.xpose.msra.mxu0 0.0
        %3765 = vmatpush.xpose.msra.mxu0 0.0
        %3766 = vmatpush.xpose.msra.mxu0 %v3751
        %3767 = vmatpush.xpose.msra.mxu0 %v3748
        %3768 = vmatpush.xpose.msra.mxu0 %v3745
        %3769 = vmatmul.f32.gmra.mxu0 %v3742
        %v3770 = vpop.f32.mrf.mxu0
        %v3771 = vadd.f32 0.0, %v3770
        %3772 = vdwg.mxu0
        %v3774 = vsel %vm481, %v3739, 0
        %v3777 = vsel %vm481, %v3258, 0
        %v3780 = vsel %vm481, %v3259, 0
        %v3783 = vsel %vm481, %v3260, 0
        %3785 = vmatpush.xpose.msra.mxu0 0.0
        %3786 = vmatpush.xpose.msra.mxu0 0.0
        %3787 = vmatpush.xpose.msra.mxu0 0.0
        %3788 = vmatpush.xpose.msra.mxu0 0.0
        %3789 = vmatpush.xpose.msra.mxu0 0.0
        %3790 = vmatpush.xpose.msra.mxu0 0.0
        %3791 = vmatpush.xpose.msra.mxu0 0.0
        %3792 = vmatpush.xpose.msra.mxu0 0.0
        %3793 = vmatpush.xpose.msra.mxu0 0.0
        %3794 = vmatpush.xpose.msra.mxu0 0.0
        %3795 = vmatpush.xpose.msra.mxu0 0.0
        %3796 = vmatpush.xpose.msra.mxu0 0.0
        %3797 = vmatpush.xpose.msra.mxu0 0.0
        %3798 = vmatpush.xpose.msra.mxu0 %v3783
        %3799 = vmatpush.xpose.msra.mxu0 %v3780
        %3800 = vmatpush.xpose.msra.mxu0 %v3777
        %3801 = vmatmul.f32.gmra.mxu0 %v3774
        %v3802 = vpop.f32.mrf.mxu0
        %v3803 = vadd.f32 %v3771, %v3802
        %3804 = vdwg.mxu0
        %v3805 = vld [vmem:[%s1 + $0x4c7] sm:$0x1]
        %v3807 = vsel %vm481, %v3805, 0
        %v3810 = vsel %vm481, %v3731, 0
        %v3813 = vsel %vm481, %v3734, 0
        %v3816 = vsel %vm481, %v3737, 0
        %3818 = vmatpush.xpose.msra.mxu0 0.0
        %3819 = vmatpush.xpose.msra.mxu0 0.0
        %3820 = vmatpush.xpose.msra.mxu0 0.0
        %3821 = vmatpush.xpose.msra.mxu0 0.0
        %3822 = vmatpush.xpose.msra.mxu0 0.0
        %3823 = vmatpush.xpose.msra.mxu0 0.0
        %3824 = vmatpush.xpose.msra.mxu0 0.0
        %3825 = vmatpush.xpose.msra.mxu0 0.0
        %3826 = vmatpush.xpose.msra.mxu0 0.0
        %3827 = vmatpush.xpose.msra.mxu0 0.0
        %3828 = vmatpush.xpose.msra.mxu0 0.0
        %3829 = vmatpush.xpose.msra.mxu0 0.0
        %3830 = vmatpush.xpose.msra.mxu0 0.0
        %3831 = vmatpush.xpose.msra.mxu0 %v3816
        %3832 = vmatpush.xpose.msra.mxu0 %v3813
        %3833 = vmatpush.xpose.msra.mxu0 %v3810
        %3834 = vmatmul.f32.gmra.mxu0 %v3807
        %v3835 = vpop.f32.mrf.mxu0
        %v3836 = vadd.f32 0.0, %v3835
        %3837 = vdwg.mxu0
        %v3838 = vadd.f32 %v3803, %v3836
        %v3839 = vld [vmem:[%s1 + $0x4c8] sm:$0x1]
        %3841 = vset.pattern.permute.xlu0 0
        %3842 = vperm.xlu0 %3841, %v3839
        %v3843 = vpop.permute.xlu0 %3842
        %v3845 = vadd.f32 %v3838, %v3843
        %vm3846 = vcmask 188416
        %3847 = vst.msk [vmem:[%s135] sm:$0x1] %vm3846, %v3845
        %s3848 = sand.u32 %s71, 1
        %s3849 = scalar_lea.sflag [#allocation3], %s3848
        %s3850 = sand.u32 %s71, 1
        %s3851 = scalar_lea.vmem [#allocation2], %s3850
        // Predicated region
        $region29: #{tpu_custom_call.1} parent=27 // pred_check
          %p3852 = pneg %p81
        $region30: #{tpu_custom_call.1} parent=27 // pred_check_branch
          %3854 = sbr.rel (%p3852) target = $region32
        $region31: #{tpu_custom_call.1} parent=27 // pred_region
          %3856 = vsyncadd %s3849, 0
          %s3857 = scalar_lea.hbm %s2, %s16
          %s3859 = sshll.u32 %s3851, 4
          %s3860 = int_to_ptr.vmem [resolvable:$true] %s3859
          %s3861 = sshll.u32 %s3857, 4
          %s3862 = int_to_ptr.hbm [resolvable:$true] %s3861
          %3864 = dma.vmem_to_hbm [thread:$0]  %s3860, 16, %s3862, %s3849
        $region32: #{tpu_custom_call.1} parent=27 // pred_fallthru
          _
      $region28: #{tpu_custom_call.1} parent=5 // pred_fallthru
        _
      %p3865 = scmp.le.s32.totalorder 2, %s11
      // Predicated region
      $region33: #{tpu_custom_call.1} parent=5 // pred_check
        %p3866 = pneg %p3865
      $region34: #{tpu_custom_call.1} parent=5 // pred_check_branch
        %3868 = sbr.rel (%p3866) target = $region36
      $region35: #{tpu_custom_call.1} parent=5 // pred_region
        %s3869 = ssub.s32 %s11, 2
        // Predicated region
        $region37: #{tpu_custom_call.1} parent=35 // pred_check
          %p3870 = pneg %p87
        $region38: #{tpu_custom_call.1} parent=35 // pred_check_branch
          %3872 = sbr.rel (%p3870) target = $region40
        $region39: #{tpu_custom_call.1} parent=35 // pred_region
          %s3873 = sand.u32 %s72, 1
          %s3874 = scalar_lea.sflag [#allocation3], %s3873
          %s3875 = sand.u32 %s72, 1
          %s3876 = scalar_lea.vmem [#allocation2], %s3875
          %3878 = dma.done %s3874, 16
        $region40: #{tpu_custom_call.1} parent=35 // pred_fallthru
          _
      $region36: #{tpu_custom_call.1} parent=5 // pred_fallthru
        _
    $region6: #{tpu_custom_call.1} parent=1 // loop_footer
      %s15 = sadd.s32 1, %s11
    $region7: #{tpu_custom_call.1} parent=1 // loop_footer_branch
      %10 = sbr.rel target = $region3
    $region8: #{tpu_custom_call.1} parent=1 // loop_exit
      _
    %3879 = vsyncpa [#allocation3], 1
    %s3880 = scalar_lea.sflag [#allocation3], 1
    %3881 = vsyncpa %s3880, 1

</llo_original>
